<compile_context>
chip_gen: v7x
topology: tpu7x:2x2x1
jax: 0.10.0
libtpu: 0.0.40
codegen_flags: <defaults>
</compile_context>

<pallas_src>
import math
import jax
import jax.numpy as jnp
from jax.experimental import pallas as pl
from jax.experimental.pallas import tpu as pltpu

# ---------------- hyper-parameters (the `opt` object) ----------------
VOCAB = 100
EMB = 32             # opt.embedding_size (dw)
POS_DIM = 8          # opt.pos_dim        (dp)
LIMIT = 15           # opt.limit_size
FILTER_SIZE = 3      # opt.filter_size
NUM_FILTERS = 32     # opt.num_filters
CLASSES = 5          # opt.classes_num
PCNN_LAMBDA = 0.05   # opt.pcnn_lambda
DROP_RATE = 0.1      # opt.dropout_rate (eval-mode identity here)

N = 8                # sentences in batch
L = 16               # sequence length (power of 2 -> cheap in-sentence index)
M_TOT = N * L        # 128 flattened token rows
DP = EMB + 2 * POS_DIM      # PCNN embedding dim [x ; p1 ; p2] = 48
DE = 3 * EMB                # entity-aware dim   [x ; x_e1 ; x_e2] = 96
NF = NUM_FILTERS
NF3 = 3 * NUM_FILTERS
POS_VOCAB = 2 * LIMIT + 1   # 31
VOCAB_PAD = 128             # lane-tidy padded tables for in-kernel one-hot gather
POS_PAD = 32
LOG_L = L.bit_length() - 1

assert (L & (L - 1)) == 0, "L must be a power of two (bitwise in-sentence index)"


# ==================== Pallas kernel: whole SeG forward ====================
def seg_fused_kernel(tok_ref, p1_ref, p2_ref, amask_ref, pmask_ref,
                     e1n_ref, e2n_ref, wemb_ref, p1emb_ref, p2emb_ref,
                     w_fuse_ref, b_fuse_ref, conv_w_ref, conv_b_ref,
                     bagw_ref, cls_w_ref, cls_b_ref, out_ref):
    f32 = jnp.float32

    # ---- fused embedding gathers: one-hot MXU matmuls (tables live in VMEM).
    tok = tok_ref[...]                                              # (M,1) i32
    voc_iota = jax.lax.broadcasted_iota(jnp.int32, (M_TOT, VOCAB_PAD), 1)
    tok_oh = (voc_iota == tok).astype(f32)                          # (M,128)
    X = jnp.dot(tok_oh, wemb_ref[...], preferred_element_type=f32)  # (M,EMB)

    pos_iota = jax.lax.broadcasted_iota(jnp.int32, (M_TOT, POS_PAD), 1)
    p1_oh = (pos_iota == p1_ref[...]).astype(f32)
    p2_oh = (pos_iota == p2_ref[...]).astype(f32)
    P1 = jnp.dot(p1_oh, p1emb_ref[...], preferred_element_type=f32)  # (M,POS_DIM)
    P2 = jnp.dot(p2_oh, p2emb_ref[...], preferred_element_type=f32)
    xp = jnp.concatenate([X, P1, P2], axis=-1)                       # (M, DP)

    # ---- entity means as mask matmuls.
    # Eb[r,c] = [same sentence(r,c)] * e_mask[c]/count(sentence) ; Xe_k = Eb_k @ X
    rowid = jax.lax.broadcasted_iota(jnp.int32, (M_TOT, 1), 0)       # (M,1)
    colid = jax.lax.broadcasted_iota(jnp.int32, (1, M_TOT), 1)       # (1,M)
    same_f = ((rowid >> LOG_L) == (colid >> LOG_L)).astype(f32)      # (M,M)
    xe1 = jnp.dot(same_f * e1n_ref[...], X, preferred_element_type=f32)  # (M,EMB)
    xe2 = jnp.dot(same_f * e2n_ref[...], X, preferred_element_type=f32)
    xe = jnp.concatenate([X, xe1, xe2], axis=-1)                     # (M, DE)

    # ---- entity-aware gated fusion (PCNN branch): gate pre-activation and
    # value projection in one matmul: fused = [xe@Wa+ba | xe@Wb+bb] -> (M, 2*DP)
    fused = jnp.dot(xe, w_fuse_ref[...], preferred_element_type=f32) + b_fuse_ref[...]
    a_p = jax.nn.sigmoid(PCNN_LAMBDA * fused[:, :DP])
    xe_proj = fused[:, DP:]
    amask = amask_ref[...]                                           # (M,1)
    xf = (a_p * xp + (1.0 - a_p) * xe_proj) * amask                  # (M, DP)
    # TODO(synk): multiplying by att_mask imposes zero-padding semantics at the
    # sentence boundary; an unmasked reference Conv1d over pad embeddings may
    # differ slightly on the last valid tokens.

    # ---- Conv1d (SAME, per sentence) as three ACCUMULATING K=48 matmuls.
    # Boundary masks hoisted; shifts stay on the (idle) XLU via pltpu.roll.
    t = rowid & (L - 1)                                              # in-sentence idx
    v_left = (t >= 1).astype(f32)                                    # tap -1 validity
    v_right = (t <= L - 2).astype(f32)                               # tap +1 validity
    xf_l = pltpu.roll(xf, shift=1, axis=0) * v_left                  # xf[r-1]
    xf_r = pltpu.roll(xf, shift=M_TOT - 1, axis=0) * v_right         # xf[r+1]
    conv = jnp.dot(xf_l, conv_w_ref[0], preferred_element_type=f32)
    conv = conv + jnp.dot(xf, conv_w_ref[1], preferred_element_type=f32)
    conv = conv + jnp.dot(xf_r, conv_w_ref[2], preferred_element_type=f32)
    conv = conv + conv_b_ref[...]                                    # (M, NF)

    # ---- piecewise max-pool (3 entity-delimited segments) per sentence + tanh.
    conv3 = conv.reshape(N, L, NF)        # reshaped once, reused by all 3 pieces
    pm3 = pmask_ref[...].reshape(N, L, 3)
    pieces = []
    for p in range(3):
        m = pm3[:, :, p:p + 1]                                       # (N,L,1)
        masked = jnp.where(m > 0.5, conv3, -1e30)
        pieces.append(jnp.max(masked, axis=1))                       # (N,NF)
    s = jnp.tanh(jnp.concatenate(pieces, axis=-1))                   # (N, 3*NF)

    # ---- bag aggregation (mean over scope as matmul) + classifier, fused.
    # Dropout is identity in eval mode. TODO(synk): training-mode dropout omitted.
    b = jnp.dot(bagw_ref[...], s, preferred_element_type=f32)        # (num_bags, NF3)
    out_ref[...] = jnp.dot(b, cls_w_ref[...], preferred_element_type=f32) + cls_b_ref[...]


# ---------------- jitted wrapper: one launch, no grid ----------------
@jax.jit
def seg_forward(packed, token_idxes, att_masks, e1_masks, e2_masks,
                pos1es, pos2es, pos_masks, bagW):
    tok = token_idxes.reshape(M_TOT, 1).astype(jnp.int32)
    p1 = pos1es.reshape(M_TOT, 1).astype(jnp.int32)
    p2 = pos2es.reshape(M_TOT, 1).astype(jnp.int32)
    am = att_masks.reshape(M_TOT, 1).astype(jnp.float32)
    pm = pos_masks.reshape(M_TOT, 3).astype(jnp.float32)

    def norm_mask(m):
        m = m.astype(jnp.float32)
        denom = jnp.maximum(m.sum(axis=1, keepdims=True), 1.0)
        return (m / denom).reshape(1, M_TOT)

    e1n = norm_mask(e1_masks)
    e2n = norm_mask(e2_masks)

    return pl.pallas_call(
        seg_fused_kernel,
        out_shape=jax.ShapeDtypeStruct((bagW.shape[0], CLASSES), jnp.float32),
    )(tok, p1, p2, am, pm, e1n, e2n,
      packed["word_emb"], packed["pos1_emb"], packed["pos2_emb"],
      packed["w_fuse"], packed["b_fuse"], packed["conv_w"], packed["conv_b"],
      bagW.astype(jnp.float32), packed["cls_w"], packed["cls_b"])


# ---------------- deterministic parameter / input construction ----------------
def xavier_uniform(key, shape):
    limit = math.sqrt(6.0 / (shape[0] + shape[1]))
    return jax.random.uniform(key, shape, jnp.float32, -limit, limit)


def make_params(key):
    ks = jax.random.split(key, 8)
    return {
        "word_emb": jax.random.normal(ks[0], (VOCAB, EMB), jnp.float32) * 0.1,
        "pos1_emb": jax.random.normal(ks[1], (POS_VOCAB, POS_DIM), jnp.float32) * 0.1,
        "pos2_emb": jax.random.normal(ks[2], (POS_VOCAB, POS_DIM), jnp.float32) * 0.1,
        # PCNN entity-aware fusion gate (weights stored (in, out))
        "wa_p": xavier_uniform(ks[3], (DE, DP)), "ba_p": jnp.zeros((1, DP), jnp.float32),
        "wb_p": xavier_uniform(ks[4], (DE, DP)), "bb_p": jnp.zeros((1, DP), jnp.float32),
        # conv weight stored per-tap: (window, in, out) -> accumulating dots
        "conv_w": xavier_uniform(ks[5], (FILTER_SIZE * DP, NF)).reshape(FILTER_SIZE, DP, NF),
        "conv_b": jnp.zeros((1, NF), jnp.float32),
        # classifier (xavier_uniform, zero bias, per _init_weight)
        "cls_w": xavier_uniform(ks[6], (NF3, CLASSES)), "cls_b": jnp.zeros((1, CLASSES), jnp.float32),
        # NOTE: SAN / fc1 / fc2 (selective gate) params omitted: that branch
        # never influences the reference forward's returned logits.
    }


def pack_params(p):
    """One-time packing hoisted out of the per-call path (jit sees only packed arrays)."""
    word_pad = jnp.zeros((VOCAB_PAD, EMB), jnp.float32).at[:VOCAB].set(p["word_emb"])
    pos1_pad = jnp.zeros((POS_PAD, POS_DIM), jnp.float32).at[:POS_VOCAB].set(p["pos1_emb"])
    pos2_pad = jnp.zeros((POS_PAD, POS_DIM), jnp.float32).at[:POS_VOCAB].set(p["pos2_emb"])
    return {
        "word_emb": word_pad, "pos1_emb": pos1_pad, "pos2_emb": pos2_pad,
        "w_fuse": jnp.concatenate([p["wa_p"], p["wb_p"]], axis=1),   # (DE, 2*DP)
        "b_fuse": jnp.concatenate([p["ba_p"], p["bb_p"]], axis=1),   # (1, 2*DP)
        "conv_w": p["conv_w"],                                       # (FILTER_SIZE, DP, NF)
        "conv_b": p["conv_b"],
        "cls_w": p["cls_w"], "cls_b": p["cls_b"],
    }


if __name__ == "__main__":
    key = jax.random.PRNGKey(0)
    pkey, dkey = jax.random.split(key)
    packed = pack_params(make_params(pkey))

    # ----- deterministic example batch -----
    token_idxes = jax.random.randint(dkey, (N, L), 0, VOCAB)
    e1_pos, e2_pos = 3, 8
    valid_lens = [12 + (i % 4) for i in range(N)]

    att_masks = jnp.array([[1.0 if t < valid_lens[i] else 0.0 for t in range(L)]
                           for i in range(N)], jnp.float32)
    e1_masks = jnp.array([[1.0 if t == e1_pos else 0.0 for t in range(L)]
                          for _ in range(N)], jnp.float32)
    e2_masks = jnp.array([[1.0 if t == e2_pos else 0.0 for t in range(L)]
                          for _ in range(N)], jnp.float32)
    pos1es = jnp.broadcast_to(
        jnp.clip(jnp.arange(L)[None, :] - e1_pos + LIMIT, 0, POS_VOCAB - 1), (N, L)).astype(jnp.int32)
    pos2es = jnp.broadcast_to(
        jnp.clip(jnp.arange(L)[None, :] - e2_pos + LIMIT, 0, POS_VOCAB - 1), (N, L)).astype(jnp.int32)

    # piecewise-pooling masks: one-hot over the 3 segments split by the entities
    pos_masks = []
    for i in range(N):
        row = []
        for t in range(L):
            if t >= valid_lens[i]:
                row.append([0.0, 0.0, 0.0])
            elif t <= e1_pos:
                row.append([1.0, 0.0, 0.0])
            elif t <= e2_pos:
                row.append([0.0, 1.0, 0.0])
            else:
                row.append([0.0, 0.0, 1.0])
        pos_masks.append(row)
    pos_masks = jnp.array(pos_masks, jnp.float32)                    # (N, L, 3)

    # bag scopes -> mean-over-scope expressed as a matmul weight matrix
    scope = [(0, 4), (4, 8)]
    bagW = jnp.array([[1.0 / (s1 - s0) if s0 <= i < s1 else 0.0 for i in range(N)]
                      for (s0, s1) in scope], jnp.float32)           # (num_bags, N)

    out = seg_forward(packed, token_idxes, att_masks, e1_masks, e2_masks,
                      pos1es, pos2es, pos_masks, bagW)
    out = jax.block_until_ready(out)
    assert out.shape == (len(scope), CLASSES)
    assert bool(jnp.all(jnp.isfinite(out)))
    print("KERNEL_OK")
</pallas_src>

<mosaic_0001>
module attributes {stable_mosaic.version = 11 : i64} {
  func.func @seg_fused_kernel(%arg0: memref<128x1xi32, #tpu.memory_space<vmem>>, %arg1: memref<128x1xi32, #tpu.memory_space<vmem>>, %arg2: memref<128x1xi32, #tpu.memory_space<vmem>>, %arg3: memref<128x1xf32, #tpu.memory_space<vmem>>, %arg4: memref<128x3xf32, #tpu.memory_space<vmem>>, %arg5: memref<1x128xf32, #tpu.memory_space<vmem>>, %arg6: memref<1x128xf32, #tpu.memory_space<vmem>>, %arg7: memref<128x32xf32, #tpu.memory_space<vmem>>, %arg8: memref<32x8xf32, #tpu.memory_space<vmem>>, %arg9: memref<32x8xf32, #tpu.memory_space<vmem>>, %arg10: memref<96x96xf32, #tpu.memory_space<vmem>>, %arg11: memref<1x96xf32, #tpu.memory_space<vmem>>, %arg12: memref<3x48x32xf32, #tpu.memory_space<vmem>>, %arg13: memref<1x32xf32, #tpu.memory_space<vmem>>, %arg14: memref<2x8xf32, #tpu.memory_space<vmem>>, %arg15: memref<96x5xf32, #tpu.memory_space<vmem>>, %arg16: memref<1x5xf32, #tpu.memory_space<vmem>>, %arg17: memref<2x5xf32, #tpu.memory_space<vmem>>) attributes {dimension_semantics = [], scalar_prefetch = 0 : i64, scratch_operands = 0 : i64, tpu.core_type = #tpu.core_type<tc>} {
    %c0 = arith.constant 0 : index
    %c0_0 = arith.constant 0 : index
    %0 = vector.load %arg0[%c0, %c0_0] : memref<128x1xi32, #tpu.memory_space<vmem>>, vector<128x1xi32>
    %1 = tpu.iota {dimensions = array<i32: 1>} : vector<128x128xi32>
    %2 = vector.broadcast %0 : vector<128x1xi32> to vector<128x128xi32>
    %3 = arith.cmpi eq, %1, %2 : vector<128x128xi32>
    %4 = arith.extui %3 : vector<128x128xi1> to vector<128x128xi32>
    %5 = arith.sitofp %4 : vector<128x128xi32> to vector<128x128xf32>
    %c0_1 = arith.constant 0 : index
    %c0_2 = arith.constant 0 : index
    %6 = vector.load %arg7[%c0_1, %c0_2] : memref<128x32xf32, #tpu.memory_space<vmem>>, vector<128x32xf32>
    %cst = arith.constant dense<0.000000e+00> : vector<128x32xf32>
    %7 = tpu.matmul %5, %6, %cst {dimension_numbers = #tpu.dot_dimension_numbers<[1], [0], [0], [1], [0, 0, 1, 1], [], []>} : vector<128x128xf32>, vector<128x32xf32>, vector<128x32xf32> -> vector<128x32xf32>
    %8 = tpu.iota {dimensions = array<i32: 1>} : vector<128x32xi32>
    %c0_3 = arith.constant 0 : index
    %c0_4 = arith.constant 0 : index
    %9 = vector.load %arg1[%c0_3, %c0_4] : memref<128x1xi32, #tpu.memory_space<vmem>>, vector<128x1xi32>
    %10 = vector.broadcast %9 : vector<128x1xi32> to vector<128x32xi32>
    %11 = arith.cmpi eq, %8, %10 : vector<128x32xi32>
    %12 = arith.extui %11 : vector<128x32xi1> to vector<128x32xi32>
    %13 = arith.sitofp %12 : vector<128x32xi32> to vector<128x32xf32>
    %c0_5 = arith.constant 0 : index
    %c0_6 = arith.constant 0 : index
    %14 = vector.load %arg2[%c0_5, %c0_6] : memref<128x1xi32, #tpu.memory_space<vmem>>, vector<128x1xi32>
    %15 = vector.broadcast %14 : vector<128x1xi32> to vector<128x32xi32>
    %16 = arith.cmpi eq, %8, %15 : vector<128x32xi32>
    %17 = arith.extui %16 : vector<128x32xi1> to vector<128x32xi32>
    %18 = arith.sitofp %17 : vector<128x32xi32> to vector<128x32xf32>
    %c0_7 = arith.constant 0 : index
    %c0_8 = arith.constant 0 : index
    %19 = vector.load %arg8[%c0_7, %c0_8] : memref<32x8xf32, #tpu.memory_space<vmem>>, vector<32x8xf32>
    %cst_9 = arith.constant dense<0.000000e+00> : vector<128x8xf32>
    %20 = tpu.matmul %13, %19, %cst_9 {dimension_numbers = #tpu.dot_dimension_numbers<[1], [0], [0], [1], [0, 0, 1, 1], [], []>} : vector<128x32xf32>, vector<32x8xf32>, vector<128x8xf32> -> vector<128x8xf32>
    %c0_10 = arith.constant 0 : index
    %c0_11 = arith.constant 0 : index
    %21 = vector.load %arg9[%c0_10, %c0_11] : memref<32x8xf32, #tpu.memory_space<vmem>>, vector<32x8xf32>
    %cst_12 = arith.constant dense<0.000000e+00> : vector<128x8xf32>
    %22 = tpu.matmul %18, %21, %cst_12 {dimension_numbers = #tpu.dot_dimension_numbers<[1], [0], [0], [1], [0, 0, 1, 1], [], []>} : vector<128x32xf32>, vector<32x8xf32>, vector<128x8xf32> -> vector<128x8xf32>
    %23 = tpu.concatenate %7, %20, %22 in 1 : vector<128x32xf32>, vector<128x8xf32>, vector<128x8xf32> -> vector<128x48xf32>
    %24 = tpu.iota {dimensions = array<i32: 0>} : vector<128x1xi32>
    %25 = tpu.iota {dimensions = array<i32: 1>} : vector<1x128xi32>
    %c4_i32 = arith.constant 4 : i32
    %26 = vector.broadcast %c4_i32 : i32 to vector<128x1xi32>
    %27 = arith.shrsi %24, %26 : vector<128x1xi32>
    %c4_i32_13 = arith.constant 4 : i32
    %28 = vector.broadcast %c4_i32_13 : i32 to vector<1x128xi32>
    %29 = arith.shrsi %25, %28 : vector<1x128xi32>
    %30 = vector.broadcast %27 : vector<128x1xi32> to vector<128x128xi32>
    %31 = vector.broadcast %29 : vector<1x128xi32> to vector<128x128xi32>
    %32 = arith.cmpi eq, %30, %31 : vector<128x128xi32>
    %33 = arith.extui %32 : vector<128x128xi1> to vector<128x128xi32>
    %34 = arith.sitofp %33 : vector<128x128xi32> to vector<128x128xf32>
    %c0_14 = arith.constant 0 : index
    %c0_15 = arith.constant 0 : index
    %35 = vector.load %arg5[%c0_14, %c0_15] : memref<1x128xf32, #tpu.memory_space<vmem>>, vector<1x128xf32>
    %36 = vector.broadcast %35 : vector<1x128xf32> to vector<128x128xf32>
    %37 = arith.mulf %34, %36 : vector<128x128xf32>
    %cst_16 = arith.constant dense<0.000000e+00> : vector<128x32xf32>
    %38 = tpu.matmul %37, %7, %cst_16 {dimension_numbers = #tpu.dot_dimension_numbers<[1], [0], [0], [1], [0, 0, 1, 1], [], []>} : vector<128x128xf32>, vector<128x32xf32>, vector<128x32xf32> -> vector<128x32xf32>
    %c0_17 = arith.constant 0 : index
    %c0_18 = arith.constant 0 : index
    %39 = vector.load %arg6[%c0_17, %c0_18] : memref<1x128xf32, #tpu.memory_space<vmem>>, vector<1x128xf32>
    %40 = vector.broadcast %39 : vector<1x128xf32> to vector<128x128xf32>
    %41 = arith.mulf %34, %40 : vector<128x128xf32>
    %cst_19 = arith.constant dense<0.000000e+00> : vector<128x32xf32>
    %42 = tpu.matmul %41, %7, %cst_19 {dimension_numbers = #tpu.dot_dimension_numbers<[1], [0], [0], [1], [0, 0, 1, 1], [], []>} : vector<128x128xf32>, vector<128x32xf32>, vector<128x32xf32> -> vector<128x32xf32>
    %43 = tpu.concatenate %7, %38, %42 in 1 : vector<128x32xf32>, vector<128x32xf32>, vector<128x32xf32> -> vector<128x96xf32>
    %c0_20 = arith.constant 0 : index
    %c0_21 = arith.constant 0 : index
    %44 = vector.load %arg10[%c0_20, %c0_21] : memref<96x96xf32, #tpu.memory_space<vmem>>, vector<96x96xf32>
    %cst_22 = arith.constant dense<0.000000e+00> : vector<128x96xf32>
    %45 = tpu.matmul %43, %44, %cst_22 {dimension_numbers = #tpu.dot_dimension_numbers<[1], [0], [0], [1], [0, 0, 1, 1], [], []>} : vector<128x96xf32>, vector<96x96xf32>, vector<128x96xf32> -> vector<128x96xf32>
    %c0_23 = arith.constant 0 : index
    %c0_24 = arith.constant 0 : index
    %46 = vector.load %arg11[%c0_23, %c0_24] : memref<1x96xf32, #tpu.memory_space<vmem>>, vector<1x96xf32>
    %47 = vector.broadcast %46 : vector<1x96xf32> to vector<128x96xf32>
    %48 = arith.addf %45, %47 : vector<128x96xf32>
    %49 = vector.extract_strided_slice %48 {offsets = [0, 0], sizes = [128, 48], strides = [1, 1]} : vector<128x96xf32> to vector<128x48xf32>
    %cst_25 = arith.constant 5.000000e-02 : f32
    %50 = vector.broadcast %cst_25 : f32 to vector<128x48xf32>
    %51 = arith.mulf %50, %49 : vector<128x48xf32>
    %52 = arith.negf %51 : vector<128x48xf32>
    %53 = math.exp %52 : vector<128x48xf32>
    %cst_26 = arith.constant 1.000000e+00 : f32
    %54 = vector.broadcast %cst_26 : f32 to vector<128x48xf32>
    %55 = arith.addf %54, %53 : vector<128x48xf32>
    %56 = arith.divf %54, %55 : vector<128x48xf32>
    %57 = vector.extract_strided_slice %48 {offsets = [0, 48], sizes = [128, 48], strides = [1, 1]} : vector<128x96xf32> to vector<128x48xf32>
    %c0_27 = arith.constant 0 : index
    %c0_28 = arith.constant 0 : index
    %58 = vector.load %arg3[%c0_27, %c0_28] : memref<128x1xf32, #tpu.memory_space<vmem>>, vector<128x1xf32>
    %59 = arith.mulf %56, %23 : vector<128x48xf32>
    %cst_29 = arith.constant 1.000000e+00 : f32
    %60 = vector.broadcast %cst_29 : f32 to vector<128x48xf32>
    %61 = arith.subf %60, %56 : vector<128x48xf32>
    %62 = arith.mulf %61, %57 : vector<128x48xf32>
    %63 = arith.addf %59, %62 : vector<128x48xf32>
    %64 = vector.broadcast %58 : vector<128x1xf32> to vector<128x48xf32>
    %65 = arith.mulf %63, %64 : vector<128x48xf32>
    %c15_i32 = arith.constant 15 : i32
    %66 = vector.broadcast %c15_i32 : i32 to vector<128x1xi32>
    %67 = arith.andi %24, %66 : vector<128x1xi32>
    %c1_i32 = arith.constant 1 : i32
    %68 = vector.broadcast %c1_i32 : i32 to vector<128x1xi32>
    %69 = arith.cmpi sge, %67, %68 : vector<128x1xi32>
    %70 = arith.extui %69 : vector<128x1xi1> to vector<128x1xi32>
    %71 = arith.sitofp %70 : vector<128x1xi32> to vector<128x1xf32>
    %c14_i32 = arith.constant 14 : i32
    %72 = vector.broadcast %c14_i32 : i32 to vector<128x1xi32>
    %73 = arith.cmpi sle, %67, %72 : vector<128x1xi32>
    %74 = arith.extui %73 : vector<128x1xi1> to vector<128x1xi32>
    %75 = arith.sitofp %74 : vector<128x1xi32> to vector<128x1xf32>
    %c1_i32_30 = arith.constant 1 : i32
    %76 = tpu.dynamic_rotate %65 by %c1_i32_30 dim 0 : vector<128x48xf32>, i32 -> vector<128x48xf32>
    %77 = vector.broadcast %71 : vector<128x1xf32> to vector<128x48xf32>
    %78 = arith.mulf %76, %77 : vector<128x48xf32>
    %c127_i32 = arith.constant 127 : i32
    %79 = tpu.dynamic_rotate %65 by %c127_i32 dim 0 : vector<128x48xf32>, i32 -> vector<128x48xf32>
    %80 = vector.broadcast %75 : vector<128x1xf32> to vector<128x48xf32>
    %81 = arith.mulf %79, %80 : vector<128x48xf32>
    %c0_31 = arith.constant 0 : index
    %c0_32 = arith.constant 0 : index
    %c0_33 = arith.constant 0 : index
    %82 = vector.load %arg12[%c0_31, %c0_32, %c0_33] : memref<3x48x32xf32, #tpu.memory_space<vmem>>, vector<1x48x32xf32>
    %83 = vector.shape_cast %82 : vector<1x48x32xf32> to vector<48x32xf32>
    %cst_34 = arith.constant dense<0.000000e+00> : vector<128x32xf32>
    %84 = tpu.matmul %78, %83, %cst_34 {dimension_numbers = #tpu.dot_dimension_numbers<[1], [0], [0], [1], [0, 0, 1, 1], [], []>} : vector<128x48xf32>, vector<48x32xf32>, vector<128x32xf32> -> vector<128x32xf32>
    %c1 = arith.constant 1 : index
    %c0_35 = arith.constant 0 : index
    %c0_36 = arith.constant 0 : index
    %85 = vector.load %arg12[%c1, %c0_35, %c0_36] : memref<3x48x32xf32, #tpu.memory_space<vmem>>, vector<1x48x32xf32>
    %86 = vector.shape_cast %85 : vector<1x48x32xf32> to vector<48x32xf32>
    %cst_37 = arith.constant dense<0.000000e+00> : vector<128x32xf32>
    %87 = tpu.matmul %65, %86, %cst_37 {dimension_numbers = #tpu.dot_dimension_numbers<[1], [0], [0], [1], [0, 0, 1, 1], [], []>} : vector<128x48xf32>, vector<48x32xf32>, vector<128x32xf32> -> vector<128x32xf32>
    %88 = arith.addf %84, %87 : vector<128x32xf32>
    %c2 = arith.constant 2 : index
    %c0_38 = arith.constant 0 : index
    %c0_39 = arith.constant 0 : index
    %89 = vector.load %arg12[%c2, %c0_38, %c0_39] : memref<3x48x32xf32, #tpu.memory_space<vmem>>, vector<1x48x32xf32>
    %90 = vector.shape_cast %89 : vector<1x48x32xf32> to vector<48x32xf32>
    %cst_40 = arith.constant dense<0.000000e+00> : vector<128x32xf32>
    %91 = tpu.matmul %81, %90, %cst_40 {dimension_numbers = #tpu.dot_dimension_numbers<[1], [0], [0], [1], [0, 0, 1, 1], [], []>} : vector<128x48xf32>, vector<48x32xf32>, vector<128x32xf32> -> vector<128x32xf32>
    %92 = arith.addf %88, %91 : vector<128x32xf32>
    %c0_41 = arith.constant 0 : index
    %c0_42 = arith.constant 0 : index
    %93 = vector.load %arg13[%c0_41, %c0_42] : memref<1x32xf32, #tpu.memory_space<vmem>>, vector<1x32xf32>
    %94 = vector.broadcast %93 : vector<1x32xf32> to vector<128x32xf32>
    %95 = arith.addf %92, %94 : vector<128x32xf32>
    %96 = vector.shape_cast %95 : vector<128x32xf32> to vector<8x16x32xf32>
    %c0_43 = arith.constant 0 : index
    %c0_44 = arith.constant 0 : index
    %97 = vector.load %arg4[%c0_43, %c0_44] : memref<128x3xf32, #tpu.memory_space<vmem>>, vector<128x3xf32>
    %98 = vector.shape_cast %97 : vector<128x3xf32> to vector<8x16x3xf32>
    %99 = vector.extract_strided_slice %98 {offsets = [0, 0, 0], sizes = [8, 16, 1], strides = [1, 1, 1]} : vector<8x16x3xf32> to vector<8x16x1xf32>
    %cst_45 = arith.constant 5.000000e-01 : f32
    %100 = vector.broadcast %cst_45 : f32 to vector<8x16x1xf32>
    %101 = arith.cmpf ogt, %99, %100 : vector<8x16x1xf32>
    %cst_46 = arith.constant -1.000000e+30 : f32
    %102 = vector.shape_cast %101 : vector<8x16x1xi1> to vector<8x16x1xi1>
    %103 = vector.broadcast %102 : vector<8x16x1xi1> to vector<8x16x32xi1>
    %104 = vector.broadcast %cst_46 : f32 to vector<8x16x32xf32>
    %105 = arith.select %103, %96, %104 : vector<8x16x32xi1>, vector<8x16x32xf32>
    %cst_47 = arith.constant dense<0xFF800000> : vector<8x32xf32>
    %106 = vector.multi_reduction <maximumf>, %105, %cst_47 [1] : vector<8x16x32xf32> to vector<8x32xf32>
    %107 = vector.extract_strided_slice %98 {offsets = [0, 0, 1], sizes = [8, 16, 1], strides = [1, 1, 1]} : vector<8x16x3xf32> to vector<8x16x1xf32>
    %cst_48 = arith.constant 5.000000e-01 : f32
    %108 = vector.broadcast %cst_48 : f32 to vector<8x16x1xf32>
    %109 = arith.cmpf ogt, %107, %108 : vector<8x16x1xf32>
    %cst_49 = arith.constant -1.000000e+30 : f32
    %110 = vector.shape_cast %109 : vector<8x16x1xi1> to vector<8x16x1xi1>
    %111 = vector.broadcast %110 : vector<8x16x1xi1> to vector<8x16x32xi1>
    %112 = vector.broadcast %cst_49 : f32 to vector<8x16x32xf32>
    %113 = arith.select %111, %96, %112 : vector<8x16x32xi1>, vector<8x16x32xf32>
    %cst_50 = arith.constant dense<0xFF800000> : vector<8x32xf32>
    %114 = vector.multi_reduction <maximumf>, %113, %cst_50 [1] : vector<8x16x32xf32> to vector<8x32xf32>
    %115 = vector.extract_strided_slice %98 {offsets = [0, 0, 2], sizes = [8, 16, 1], strides = [1, 1, 1]} : vector<8x16x3xf32> to vector<8x16x1xf32>
    %cst_51 = arith.constant 5.000000e-01 : f32
    %116 = vector.broadcast %cst_51 : f32 to vector<8x16x1xf32>
    %117 = arith.cmpf ogt, %115, %116 : vector<8x16x1xf32>
    %cst_52 = arith.constant -1.000000e+30 : f32
    %118 = vector.shape_cast %117 : vector<8x16x1xi1> to vector<8x16x1xi1>
    %119 = vector.broadcast %118 : vector<8x16x1xi1> to vector<8x16x32xi1>
    %120 = vector.broadcast %cst_52 : f32 to vector<8x16x32xf32>
    %121 = arith.select %119, %96, %120 : vector<8x16x32xi1>, vector<8x16x32xf32>
    %cst_53 = arith.constant dense<0xFF800000> : vector<8x32xf32>
    %122 = vector.multi_reduction <maximumf>, %121, %cst_53 [1] : vector<8x16x32xf32> to vector<8x32xf32>
    %123 = tpu.concatenate %106, %114, %122 in 1 : vector<8x32xf32>, vector<8x32xf32>, vector<8x32xf32> -> vector<8x96xf32>
    %124 = math.tanh %123 : vector<8x96xf32>
    %c0_54 = arith.constant 0 : index
    %c0_55 = arith.constant 0 : index
    %125 = vector.load %arg14[%c0_54, %c0_55] : memref<2x8xf32, #tpu.memory_space<vmem>>, vector<2x8xf32>
    %cst_56 = arith.constant dense<0.000000e+00> : vector<2x96xf32>
    %126 = tpu.matmul %125, %124, %cst_56 {dimension_numbers = #tpu.dot_dimension_numbers<[1], [0], [0], [1], [0, 0, 1, 1], [], []>} : vector<2x8xf32>, vector<8x96xf32>, vector<2x96xf32> -> vector<2x96xf32>
    %c0_57 = arith.constant 0 : index
    %c0_58 = arith.constant 0 : index
    %127 = vector.load %arg15[%c0_57, %c0_58] : memref<96x5xf32, #tpu.memory_space<vmem>>, vector<96x5xf32>
    %cst_59 = arith.constant dense<0.000000e+00> : vector<2x5xf32>
    %128 = tpu.matmul %126, %127, %cst_59 {dimension_numbers = #tpu.dot_dimension_numbers<[1], [0], [0], [1], [0, 0, 1, 1], [], []>} : vector<2x96xf32>, vector<96x5xf32>, vector<2x5xf32> -> vector<2x5xf32>
    %c0_60 = arith.constant 0 : index
    %c0_61 = arith.constant 0 : index
    %129 = vector.load %arg16[%c0_60, %c0_61] : memref<1x5xf32, #tpu.memory_space<vmem>>, vector<1x5xf32>
    %130 = vector.broadcast %129 : vector<1x5xf32> to vector<2x5xf32>
    %131 = arith.addf %128, %130 : vector<2x5xf32>
    %c0_62 = arith.constant 0 : index
    %c0_63 = arith.constant 0 : index
    %132 = vector.load %arg17[%c0_62, %c0_63] : memref<2x5xf32, #tpu.memory_space<vmem>>, vector<2x5xf32>
    tpu.vector_store %arg17[%c0_62, %c0_63], %131 {strides = array<i32>} : memref<2x5xf32, #tpu.memory_space<vmem>>, vector<2x5xf32>,
    return
  }
}

</mosaic_0001>

<llo_original>
// kernel: seg_forward.1
$region0: #{seg_forward.1}
  #allocation0 [shape = 'u32[]', space=smem, size = 0x4, offset = 0x4, fixed_abs, tag = 'smem constant byte address 0x4 - core index']
  #allocation1 [shape = 'u32[144,128]{1,0:T(1,128)}', space=vmem, size = 0x12000, scoped, tag = 'internal scratch']
  %s0 = inlined_call_operand.vmem [shape: s32[128,1], index: 0, kind: input, shape index: {}]
  %s1 = inlined_call_operand.vmem [shape: s32[128,1], index: 1, kind: input, shape index: {}]
  %s2 = inlined_call_operand.vmem [shape: s32[128,1], index: 2, kind: input, shape index: {}]
  %s3 = inlined_call_operand.vmem [shape: f32[128,1], index: 3, kind: input, shape index: {}]
  %s4 = inlined_call_operand.vmem [shape: f32[128,3], index: 4, kind: input, shape index: {}]
  %s5 = inlined_call_operand.vmem [shape: f32[1,128], index: 5, kind: input, shape index: {}]
  %s6 = inlined_call_operand.vmem [shape: f32[1,128], index: 6, kind: input, shape index: {}]
  %s7 = inlined_call_operand.vmem [shape: f32[128,32], index: 7, kind: input, shape index: {}]
  %s8 = inlined_call_operand.vmem [shape: f32[32,8], index: 8, kind: input, shape index: {}]
  %s9 = inlined_call_operand.vmem [shape: f32[32,8], index: 9, kind: input, shape index: {}]
  %s10 = inlined_call_operand.vmem [shape: f32[96,96], index: 10, kind: input, shape index: {}]
  %s11 = inlined_call_operand.vmem [shape: f32[1,96], index: 11, kind: input, shape index: {}]
  %s12 = inlined_call_operand.vmem [shape: f32[3,48,32], index: 12, kind: input, shape index: {}]
  %s13 = inlined_call_operand.vmem [shape: f32[1,32], index: 13, kind: input, shape index: {}]
  %s14 = inlined_call_operand.vmem [shape: f32[2,8], index: 14, kind: input, shape index: {}]
  %s15 = inlined_call_operand.vmem [shape: f32[96,5], index: 15, kind: input, shape index: {}]
  %s16 = inlined_call_operand.vmem [shape: f32[1,5], index: 16, kind: input, shape index: {}]
  %s17 = inlined_call_operand.hbm [shape: f32[2,5], index: 17, kind: output, shape index: {}]
  %s18 = sld [smem:[#allocation0]]
  $region78: #{seg_forward.1} parent=0
    _
  %s20 = ssub.s32 1, %s18
  %s21 = scalar_select 0, %s20, %s18
  $region1: #{seg_forward.1} parent=0
    #allocation2 [shape = 'u8[1024]{0}', space=vmem, size = 0x400, scoped, tag = 'output window, operand 0, single buffered']
    #allocation3 [shape = 's32[1]{0}', space=sflag, size = 0x4, scoped, tag = 'scoped memory for seg_forward.1']
    %22 = vsyncpa [#allocation3], 0
    // Predicated region
    $region2: #{seg_forward.1} parent=1 // pred_check
      _
    $region3: #{seg_forward.1} parent=1 // pred_check_branch
      %24 = sbr.rel (0) target = $region5
    $region4: #{seg_forward.1} parent=1 // pred_region
      _
    $region5: #{seg_forward.1} parent=1 // pred_fallthru
      _
    // Predicated region
    $region6: #{seg_forward.1} parent=1 // pred_check
      _
    $region7: #{seg_forward.1} parent=1 // pred_check_branch
      %26 = sbr.rel (0) target = $region9
    $region8: #{seg_forward.1} parent=1 // pred_region
      _
    $region9: #{seg_forward.1} parent=1 // pred_fallthru
      _
    // Predicated region
    $region10: #{seg_forward.1} parent=1 // pred_check
      _
    $region11: #{seg_forward.1} parent=1 // pred_check_branch
      %28 = sbr.rel (0) target = $region13
    $region12: #{seg_forward.1} parent=1 // pred_region
      _
    $region13: #{seg_forward.1} parent=1 // pred_fallthru
      _
    // Predicated region
    $region14: #{seg_forward.1} parent=1 // pred_check
      _
    $region15: #{seg_forward.1} parent=1 // pred_check_branch
      %30 = sbr.rel (0) target = $region17
    $region16: #{seg_forward.1} parent=1 // pred_region
      _
    $region17: #{seg_forward.1} parent=1 // pred_fallthru
      _
    // Predicated region
    $region18: #{seg_forward.1} parent=1 // pred_check
      _
    $region19: #{seg_forward.1} parent=1 // pred_check_branch
      %32 = sbr.rel (0) target = $region21
    $region20: #{seg_forward.1} parent=1 // pred_region
      _
    $region21: #{seg_forward.1} parent=1 // pred_fallthru
      _
    // Predicated region
    $region22: #{seg_forward.1} parent=1 // pred_check
      _
    $region23: #{seg_forward.1} parent=1 // pred_check_branch
      %34 = sbr.rel (0) target = $region25
    $region24: #{seg_forward.1} parent=1 // pred_region
      _
    $region25: #{seg_forward.1} parent=1 // pred_fallthru
      _
    // Predicated region
    $region26: #{seg_forward.1} parent=1 // pred_check
      _
    $region27: #{seg_forward.1} parent=1 // pred_check_branch
      %36 = sbr.rel (0) target = $region29
    $region28: #{seg_forward.1} parent=1 // pred_region
      _
    $region29: #{seg_forward.1} parent=1 // pred_fallthru
      _
    // Predicated region
    $region30: #{seg_forward.1} parent=1 // pred_check
      _
    $region31: #{seg_forward.1} parent=1 // pred_check_branch
      %38 = sbr.rel (0) target = $region33
    $region32: #{seg_forward.1} parent=1 // pred_region
      _
    $region33: #{seg_forward.1} parent=1 // pred_fallthru
      _
    // Predicated region
    $region34: #{seg_forward.1} parent=1 // pred_check
      _
    $region35: #{seg_forward.1} parent=1 // pred_check_branch
      %40 = sbr.rel (0) target = $region37
    $region36: #{seg_forward.1} parent=1 // pred_region
      _
    $region37: #{seg_forward.1} parent=1 // pred_fallthru
      _
    // Predicated region
    $region38: #{seg_forward.1} parent=1 // pred_check
      _
    $region39: #{seg_forward.1} parent=1 // pred_check_branch
      %42 = sbr.rel (0) target = $region41
    $region40: #{seg_forward.1} parent=1 // pred_region
      _
    $region41: #{seg_forward.1} parent=1 // pred_fallthru
      _
    // Predicated region
    $region42: #{seg_forward.1} parent=1 // pred_check
      _
    $region43: #{seg_forward.1} parent=1 // pred_check_branch
      %44 = sbr.rel (0) target = $region45
    $region44: #{seg_forward.1} parent=1 // pred_region
      _
    $region45: #{seg_forward.1} parent=1 // pred_fallthru
      _
    // Predicated region
    $region46: #{seg_forward.1} parent=1 // pred_check
      _
    $region47: #{seg_forward.1} parent=1 // pred_check_branch
      %46 = sbr.rel (0) target = $region49
    $region48: #{seg_forward.1} parent=1 // pred_region
      _
    $region49: #{seg_forward.1} parent=1 // pred_fallthru
      _
    // Predicated region
    $region50: #{seg_forward.1} parent=1 // pred_check
      _
    $region51: #{seg_forward.1} parent=1 // pred_check_branch
      %48 = sbr.rel (0) target = $region53
    $region52: #{seg_forward.1} parent=1 // pred_region
      _
    $region53: #{seg_forward.1} parent=1 // pred_fallthru
      _
    // Predicated region
    $region54: #{seg_forward.1} parent=1 // pred_check
      _
    $region55: #{seg_forward.1} parent=1 // pred_check_branch
      %50 = sbr.rel (0) target = $region57
    $region56: #{seg_forward.1} parent=1 // pred_region
      _
    $region57: #{seg_forward.1} parent=1 // pred_fallthru
      _
    // Predicated region
    $region58: #{seg_forward.1} parent=1 // pred_check
      _
    $region59: #{seg_forward.1} parent=1 // pred_check_branch
      %52 = sbr.rel (0) target = $region61
    $region60: #{seg_forward.1} parent=1 // pred_region
      _
    $region61: #{seg_forward.1} parent=1 // pred_fallthru
      _
    // Predicated region
    $region62: #{seg_forward.1} parent=1 // pred_check
      _
    $region63: #{seg_forward.1} parent=1 // pred_check_branch
      %54 = sbr.rel (0) target = $region65
    $region64: #{seg_forward.1} parent=1 // pred_region
      _
    $region65: #{seg_forward.1} parent=1 // pred_fallthru
      _
    // Predicated region
    $region66: #{seg_forward.1} parent=1 // pred_check
      _
    $region67: #{seg_forward.1} parent=1 // pred_check_branch
      %56 = sbr.rel (0) target = $region69
    $region68: #{seg_forward.1} parent=1 // pred_region
      _
    $region69: #{seg_forward.1} parent=1 // pred_fallthru
      _
    %v57 = vld [vmem:[%s0] sm:$0xff]
    %v58 = vld [vmem:[%s0 + $0x8] sm:$0xff]
    %v59 = vld [vmem:[%s0 + $0x10] sm:$0xff]
    %v60 = vld [vmem:[%s0 + $0x18] sm:$0xff]
    %v61 = vld [vmem:[%s0 + $0x20] sm:$0xff]
    %v62 = vld [vmem:[%s0 + $0x28] sm:$0xff]
    %v63 = vld [vmem:[%s0 + $0x30] sm:$0xff]
    %v64 = vld [vmem:[%s0 + $0x38] sm:$0xff]
    %v65 = vld [vmem:[%s0 + $0x40] sm:$0xff]
    %v66 = vld [vmem:[%s0 + $0x48] sm:$0xff]
    %v67 = vld [vmem:[%s0 + $0x50] sm:$0xff]
    %v68 = vld [vmem:[%s0 + $0x58] sm:$0xff]
    %v69 = vld [vmem:[%s0 + $0x60] sm:$0xff]
    %v70 = vld [vmem:[%s0 + $0x68] sm:$0xff]
    %v71 = vld [vmem:[%s0 + $0x70] sm:$0xff]
    %v72 = vld [vmem:[%s0 + $0x78] sm:$0xff]
    %v73 = vlaneseq
    %v74 = vand.u32 %v73, 127
    %75 = vset.pattern.permute.xlu0 0
    %76 = vperm.xlu0 %75, %v57
    %v77 = vpop.permute.xlu0 %76
    %78 = vset.pattern.permute.xlu0 0
    %79 = vperm.xlu0 %78, %v58
    %v80 = vpop.permute.xlu0 %79
    %81 = vset.pattern.permute.xlu0 0
    %82 = vperm.xlu0 %81, %v59
    %v83 = vpop.permute.xlu0 %82
    %84 = vset.pattern.permute.xlu0 0
    %85 = vperm.xlu0 %84, %v60
    %v86 = vpop.permute.xlu0 %85
    %87 = vset.pattern.permute.xlu0 0
    %88 = vperm.xlu0 %87, %v61
    %v89 = vpop.permute.xlu0 %88
    %90 = vset.pattern.permute.xlu0 0
    %91 = vperm.xlu0 %90, %v62
    %v92 = vpop.permute.xlu0 %91
    %93 = vset.pattern.permute.xlu0 0
    %94 = vperm.xlu0 %93, %v63
    %v95 = vpop.permute.xlu0 %94
    %96 = vset.pattern.permute.xlu0 0
    %97 = vperm.xlu0 %96, %v64
    %v98 = vpop.permute.xlu0 %97
    %99 = vset.pattern.permute.xlu0 0
    %100 = vperm.xlu0 %99, %v65
    %v101 = vpop.permute.xlu0 %100
    %102 = vset.pattern.permute.xlu0 0
    %103 = vperm.xlu0 %102, %v66
    %v104 = vpop.permute.xlu0 %103
    %105 = vset.pattern.permute.xlu0 0
    %106 = vperm.xlu0 %105, %v67
    %v107 = vpop.permute.xlu0 %106
    %108 = vset.pattern.permute.xlu0 0
    %109 = vperm.xlu0 %108, %v68
    %v110 = vpop.permute.xlu0 %109
    %111 = vset.pattern.permute.xlu0 0
    %112 = vperm.xlu0 %111, %v69
    %v113 = vpop.permute.xlu0 %112
    %114 = vset.pattern.permute.xlu0 0
    %115 = vperm.xlu0 %114, %v70
    %v116 = vpop.permute.xlu0 %115
    %117 = vset.pattern.permute.xlu0 0
    %118 = vperm.xlu0 %117, %v71
    %v119 = vpop.permute.xlu0 %118
    %120 = vset.pattern.permute.xlu0 0
    %121 = vperm.xlu0 %120, %v72
    %v122 = vpop.permute.xlu0 %121
    %vm123 = vcmp.eq.s32.totalorder %v74, %v77
    %vm124 = vcmp.eq.s32.totalorder %v74, %v80
    %vm125 = vcmp.eq.s32.totalorder %v74, %v83
    %vm126 = vcmp.eq.s32.totalorder %v74, %v86
    %vm127 = vcmp.eq.s32.totalorder %v74, %v89
    %vm128 = vcmp.eq.s32.totalorder %v74, %v92
    %vm129 = vcmp.eq.s32.totalorder %v74, %v95
    %vm130 = vcmp.eq.s32.totalorder %v74, %v98
    %vm131 = vcmp.eq.s32.totalorder %v74, %v101
    %vm132 = vcmp.eq.s32.totalorder %v74, %v104
    %vm133 = vcmp.eq.s32.totalorder %v74, %v107
    %vm134 = vcmp.eq.s32.totalorder %v74, %v110
    %vm135 = vcmp.eq.s32.totalorder %v74, %v113
    %vm136 = vcmp.eq.s32.totalorder %v74, %v116
    %vm137 = vcmp.eq.s32.totalorder %v74, %v119
    %vm138 = vcmp.eq.s32.totalorder %v74, %v122
    %v139 = vsel %vm123, 1, 0
    %v140 = vsel %vm124, 1, 0
    %v141 = vsel %vm125, 1, 0
    %v142 = vsel %vm126, 1, 0
    %v143 = vsel %vm127, 1, 0
    %v144 = vsel %vm128, 1, 0
    %v145 = vsel %vm129, 1, 0
    %v146 = vsel %vm130, 1, 0
    %v147 = vsel %vm131, 1, 0
    %v148 = vsel %vm132, 1, 0
    %v149 = vsel %vm133, 1, 0
    %v150 = vsel %vm134, 1, 0
    %v151 = vsel %vm135, 1, 0
    %v152 = vsel %vm136, 1, 0
    %v153 = vsel %vm137, 1, 0
    %v154 = vsel %vm138, 1, 0
    %v155 = vcvt.s32.f32 %v139
    %v156 = vcvt.s32.f32 %v140
    %v157 = vcvt.s32.f32 %v141
    %v158 = vcvt.s32.f32 %v142
    %v159 = vcvt.s32.f32 %v143
    %v160 = vcvt.s32.f32 %v144
    %v161 = vcvt.s32.f32 %v145
    %v162 = vcvt.s32.f32 %v146
    %v163 = vcvt.s32.f32 %v147
    %v164 = vcvt.s32.f32 %v148
    %v165 = vcvt.s32.f32 %v149
    %v166 = vcvt.s32.f32 %v150
    %v167 = vcvt.s32.f32 %v151
    %v168 = vcvt.s32.f32 %v152
    %v169 = vcvt.s32.f32 %v153
    %v170 = vcvt.s32.f32 %v154
    %v171 = vld [vmem:[%s7] sm:$0xff]
    %v172 = vld [vmem:[%s7 + $0x8] sm:$0xff]
    %v173 = vld [vmem:[%s7 + $0x10] sm:$0xff]
    %v174 = vld [vmem:[%s7 + $0x18] sm:$0xff]
    %v175 = vld [vmem:[%s7 + $0x20] sm:$0xff]
    %v176 = vld [vmem:[%s7 + $0x28] sm:$0xff]
    %v177 = vld [vmem:[%s7 + $0x30] sm:$0xff]
    %v178 = vld [vmem:[%s7 + $0x38] sm:$0xff]
    %v179 = vld [vmem:[%s7 + $0x40] sm:$0xff]
    %v180 = vld [vmem:[%s7 + $0x48] sm:$0xff]
    %v181 = vld [vmem:[%s7 + $0x50] sm:$0xff]
    %v182 = vld [vmem:[%s7 + $0x58] sm:$0xff]
    %v183 = vld [vmem:[%s7 + $0x60] sm:$0xff]
    %v184 = vld [vmem:[%s7 + $0x68] sm:$0xff]
    %v185 = vld [vmem:[%s7 + $0x70] sm:$0xff]
    %v186 = vld [vmem:[%s7 + $0x78] sm:$0xff]
    %187 = vmatprep.subr.mxu0 0.0
    %188 = vmatpush1.msra.mxu0 %v171
    %189 = vmatprep.subr.mxu0 0.0
    %190 = vmatpush1.msra.mxu0 %v172
    %191 = vmatprep.subr.mxu0 0.0
    %192 = vmatpush1.msra.mxu0 %v173
    %193 = vmatprep.subr.mxu0 0.0
    %194 = vmatpush1.msra.mxu0 %v174
    %195 = vmatprep.subr.mxu0 0.0
    %196 = vmatpush1.msra.mxu0 %v175
    %197 = vmatprep.subr.mxu0 0.0
    %198 = vmatpush1.msra.mxu0 %v176
    %199 = vmatprep.subr.mxu0 0.0
    %200 = vmatpush1.msra.mxu0 %v177
    %201 = vmatprep.subr.mxu0 0.0
    %202 = vmatpush1.msra.mxu0 %v178
    %203 = vmatprep.subr.mxu0 0.0
    %204 = vmatpush1.msra.mxu0 %v179
    %205 = vmatprep.subr.mxu0 0.0
    %206 = vmatpush1.msra.mxu0 %v180
    %207 = vmatprep.subr.mxu0 0.0
    %208 = vmatpush1.msra.mxu0 %v181
    %209 = vmatprep.subr.mxu0 0.0
    %210 = vmatpush1.msra.mxu0 %v182
    %211 = vmatprep.subr.mxu0 0.0
    %212 = vmatpush1.msra.mxu0 %v183
    %213 = vmatprep.subr.mxu0 0.0
    %214 = vmatpush1.msra.mxu0 %v184
    %215 = vmatprep.subr.mxu0 0.0
    %216 = vmatpush1.msra.mxu0 %v185
    %217 = vmatprep.subr.mxu0 0.0
    %218 = vmatpush1.msra.mxu0 %v186
    %219 = vmatprep.subr.mxu0 0.0
    %220 = vmatpush1.msra.mxu0 0.0
    %221 = vmatprep.subr.mxu0 0.0
    %222 = vmatpush1.msra.mxu0 0.0
    %223 = vmatprep.subr.mxu0 0.0
    %224 = vmatpush1.msra.mxu0 0.0
    %225 = vmatprep.subr.mxu0 0.0
    %226 = vmatpush1.msra.mxu0 0.0
    %227 = vmatprep.subr.mxu0 0.0
    %228 = vmatpush1.msra.mxu0 0.0
    %229 = vmatprep.subr.mxu0 0.0
    %230 = vmatpush1.msra.mxu0 0.0
    %231 = vmatprep.subr.mxu0 0.0
    %232 = vmatpush1.msra.mxu0 0.0
    %233 = vmatprep.subr.mxu0 0.0
    %234 = vmatpush1.msra.mxu0 0.0
    %235 = vmatprep.subr.mxu0 0.0
    %236 = vmatpush1.msra.mxu0 0.0
    %237 = vmatprep.subr.mxu0 0.0
    %238 = vmatpush1.msra.mxu0 0.0
    %239 = vmatprep.subr.mxu0 0.0
    %240 = vmatpush1.msra.mxu0 0.0
    %241 = vmatprep.subr.mxu0 0.0
    %242 = vmatpush1.msra.mxu0 0.0
    %243 = vmatprep.subr.mxu0 0.0
    %244 = vmatpush1.msra.mxu0 0.0
    %245 = vmatprep.subr.mxu0 0.0
    %246 = vmatpush1.msra.mxu0 0.0
    %247 = vmatprep.subr.mxu0 0.0
    %248 = vmatpush1.msra.mxu0 0.0
    %249 = vmatprep.subr.mxu0 0.0
    %250 = vmatpush1.msra.mxu0 0.0
    %251 = vmatprep.mubr.f32.mxu0 0.0
    %252 = vmatmul.mubr.f32.gmra.mrb[0].mxu0 %v155
    %v253 = vpop.f32.mrb[0].mxu0
    %v254 = vadd.f32 0.0, %v253
    %v255 = vpop.f32.mrb[0].mxu0
    %256 = vmatprep.mubr.f32.mxu0 0.0
    %257 = vmatmul.mubr.f32.gmra.mrb[0].mxu0 %v156
    %v258 = vpop.f32.mrb[0].mxu0
    %v259 = vadd.f32 0.0, %v258
    %v260 = vpop.f32.mrb[0].mxu0
    %261 = vmatprep.mubr.f32.mxu0 0.0
    %262 = vmatmul.mubr.f32.gmra.mrb[0].mxu0 %v157
    %v263 = vpop.f32.mrb[0].mxu0
    %v264 = vadd.f32 0.0, %v263
    %v265 = vpop.f32.mrb[0].mxu0
    %266 = vmatprep.mubr.f32.mxu0 0.0
    %267 = vmatmul.mubr.f32.gmra.mrb[0].mxu0 %v158
    %v268 = vpop.f32.mrb[0].mxu0
    %v269 = vadd.f32 0.0, %v268
    %v270 = vpop.f32.mrb[0].mxu0
    %271 = vmatprep.mubr.f32.mxu0 0.0
    %272 = vmatmul.mubr.f32.gmra.mrb[0].mxu0 %v159
    %v273 = vpop.f32.mrb[0].mxu0
    %v274 = vadd.f32 0.0, %v273
    %v275 = vpop.f32.mrb[0].mxu0
    %276 = vmatprep.mubr.f32.mxu0 0.0
    %277 = vmatmul.mubr.f32.gmra.mrb[0].mxu0 %v160
    %v278 = vpop.f32.mrb[0].mxu0
    %v279 = vadd.f32 0.0, %v278
    %v280 = vpop.f32.mrb[0].mxu0
    %281 = vmatprep.mubr.f32.mxu0 0.0
    %282 = vmatmul.mubr.f32.gmra.mrb[0].mxu0 %v161
    %v283 = vpop.f32.mrb[0].mxu0
    %v284 = vadd.f32 0.0, %v283
    %v285 = vpop.f32.mrb[0].mxu0
    %286 = vmatprep.mubr.f32.mxu0 0.0
    %287 = vmatmul.mubr.f32.gmra.mrb[0].mxu0 %v162
    %v288 = vpop.f32.mrb[0].mxu0
    %v289 = vadd.f32 0.0, %v288
    %v290 = vpop.f32.mrb[0].mxu0
    %291 = vmatprep.mubr.f32.mxu0 0.0
    %292 = vmatmul.mubr.f32.gmra.mrb[0].mxu0 %v163
    %v293 = vpop.f32.mrb[0].mxu0
    %v294 = vadd.f32 0.0, %v293
    %v295 = vpop.f32.mrb[0].mxu0
    %296 = vmatprep.mubr.f32.mxu0 0.0
    %297 = vmatmul.mubr.f32.gmra.mrb[0].mxu0 %v164
    %v298 = vpop.f32.mrb[0].mxu0
    %v299 = vadd.f32 0.0, %v298
    %v300 = vpop.f32.mrb[0].mxu0
    %301 = vmatprep.mubr.f32.mxu0 0.0
    %302 = vmatmul.mubr.f32.gmra.mrb[0].mxu0 %v165
    %v303 = vpop.f32.mrb[0].mxu0
    %v304 = vadd.f32 0.0, %v303
    %v305 = vpop.f32.mrb[0].mxu0
    %306 = vmatprep.mubr.f32.mxu0 0.0
    %307 = vmatmul.mubr.f32.gmra.mrb[0].mxu0 %v166
    %v308 = vpop.f32.mrb[0].mxu0
    %v309 = vadd.f32 0.0, %v308
    %v310 = vpop.f32.mrb[0].mxu0
    %311 = vmatprep.mubr.f32.mxu0 0.0
    %312 = vmatmul.mubr.f32.gmra.mrb[0].mxu0 %v167
    %v313 = vpop.f32.mrb[0].mxu0
    %v314 = vadd.f32 0.0, %v313
    %v315 = vpop.f32.mrb[0].mxu0
    %316 = vmatprep.mubr.f32.mxu0 0.0
    %317 = vmatmul.mubr.f32.gmra.mrb[0].mxu0 %v168
    %v318 = vpop.f32.mrb[0].mxu0
    %v319 = vadd.f32 0.0, %v318
    %v320 = vpop.f32.mrb[0].mxu0
    %321 = vmatprep.mubr.f32.mxu0 0.0
    %322 = vmatmul.mubr.f32.gmra.mrb[0].mxu0 %v169
    %v323 = vpop.f32.mrb[0].mxu0
    %v324 = vadd.f32 0.0, %v323
    %v325 = vpop.f32.mrb[0].mxu0
    %326 = vmatprep.mubr.f32.mxu0 0.0
    %327 = vmatmul.mubr.f32.gmra.mrb[0].mxu0 %v170
    %v328 = vpop.f32.mrb[0].mxu0
    %v329 = vadd.f32 0.0, %v328
    %v330 = vpop.f32.mrb[0].mxu0
    %331 = vdwg.mxu0
    %v332 = vld [vmem:[%s1] sm:$0xff]
    %v333 = vld [vmem:[%s1 + $0x8] sm:$0xff]
    %v334 = vld [vmem:[%s1 + $0x10] sm:$0xff]
    %v335 = vld [vmem:[%s1 + $0x18] sm:$0xff]
    %v336 = vld [vmem:[%s1 + $0x20] sm:$0xff]
    %v337 = vld [vmem:[%s1 + $0x28] sm:$0xff]
    %v338 = vld [vmem:[%s1 + $0x30] sm:$0xff]
    %v339 = vld [vmem:[%s1 + $0x38] sm:$0xff]
    %v340 = vld [vmem:[%s1 + $0x40] sm:$0xff]
    %v341 = vld [vmem:[%s1 + $0x48] sm:$0xff]
    %v342 = vld [vmem:[%s1 + $0x50] sm:$0xff]
    %v343 = vld [vmem:[%s1 + $0x58] sm:$0xff]
    %v344 = vld [vmem:[%s1 + $0x60] sm:$0xff]
    %v345 = vld [vmem:[%s1 + $0x68] sm:$0xff]
    %v346 = vld [vmem:[%s1 + $0x70] sm:$0xff]
    %v347 = vld [vmem:[%s1 + $0x78] sm:$0xff]
    %348 = vset.pattern.permute.xlu0 0
    %349 = vperm.xlu0 %348, %v332
    %v350 = vpop.permute.xlu0 %349
    %351 = vset.pattern.permute.xlu0 0
    %352 = vperm.xlu0 %351, %v333
    %v353 = vpop.permute.xlu0 %352
    %354 = vset.pattern.permute.xlu0 0
    %355 = vperm.xlu0 %354, %v334
    %v356 = vpop.permute.xlu0 %355
    %357 = vset.pattern.permute.xlu0 0
    %358 = vperm.xlu0 %357, %v335
    %v359 = vpop.permute.xlu0 %358
    %360 = vset.pattern.permute.xlu0 0
    %361 = vperm.xlu0 %360, %v336
    %v362 = vpop.permute.xlu0 %361
    %363 = vset.pattern.permute.xlu0 0
    %364 = vperm.xlu0 %363, %v337
    %v365 = vpop.permute.xlu0 %364
    %366 = vset.pattern.permute.xlu0 0
    %367 = vperm.xlu0 %366, %v338
    %v368 = vpop.permute.xlu0 %367
    %369 = vset.pattern.permute.xlu0 0
    %370 = vperm.xlu0 %369, %v339
    %v371 = vpop.permute.xlu0 %370
    %372 = vset.pattern.permute.xlu0 0
    %373 = vperm.xlu0 %372, %v340
    %v374 = vpop.permute.xlu0 %373
    %375 = vset.pattern.permute.xlu0 0
    %376 = vperm.xlu0 %375, %v341
    %v377 = vpop.permute.xlu0 %376
    %378 = vset.pattern.permute.xlu0 0
    %379 = vperm.xlu0 %378, %v342
    %v380 = vpop.permute.xlu0 %379
    %381 = vset.pattern.permute.xlu0 0
    %382 = vperm.xlu0 %381, %v343
    %v383 = vpop.permute.xlu0 %382
    %384 = vset.pattern.permute.xlu0 0
    %385 = vperm.xlu0 %384, %v344
    %v386 = vpop.permute.xlu0 %385
    %387 = vset.pattern.permute.xlu0 0
    %388 = vperm.xlu0 %387, %v345
    %v389 = vpop.permute.xlu0 %388
    %390 = vset.pattern.permute.xlu0 0
    %391 = vperm.xlu0 %390, %v346
    %v392 = vpop.permute.xlu0 %391
    %393 = vset.pattern.permute.xlu0 0
    %394 = vperm.xlu0 %393, %v347
    %v395 = vpop.permute.xlu0 %394
    %vm396 = vcmp.eq.s32.totalorder %v74, %v350
    %vm397 = vcmp.eq.s32.totalorder %v74, %v353
    %vm398 = vcmp.eq.s32.totalorder %v74, %v356
    %vm399 = vcmp.eq.s32.totalorder %v74, %v359
    %vm400 = vcmp.eq.s32.totalorder %v74, %v362
    %vm401 = vcmp.eq.s32.totalorder %v74, %v365
    %vm402 = vcmp.eq.s32.totalorder %v74, %v368
    %vm403 = vcmp.eq.s32.totalorder %v74, %v371
    %vm404 = vcmp.eq.s32.totalorder %v74, %v374
    %vm405 = vcmp.eq.s32.totalorder %v74, %v377
    %vm406 = vcmp.eq.s32.totalorder %v74, %v380
    %vm407 = vcmp.eq.s32.totalorder %v74, %v383
    %vm408 = vcmp.eq.s32.totalorder %v74, %v386
    %vm409 = vcmp.eq.s32.totalorder %v74, %v389
    %vm410 = vcmp.eq.s32.totalorder %v74, %v392
    %vm411 = vcmp.eq.s32.totalorder %v74, %v395
    %v412 = vsel %vm396, 1, 0
    %v413 = vsel %vm397, 1, 0
    %v414 = vsel %vm398, 1, 0
    %v415 = vsel %vm399, 1, 0
    %v416 = vsel %vm400, 1, 0
    %v417 = vsel %vm401, 1, 0
    %v418 = vsel %vm402, 1, 0
    %v419 = vsel %vm403, 1, 0
    %v420 = vsel %vm404, 1, 0
    %v421 = vsel %vm405, 1, 0
    %v422 = vsel %vm406, 1, 0
    %v423 = vsel %vm407, 1, 0
    %v424 = vsel %vm408, 1, 0
    %v425 = vsel %vm409, 1, 0
    %v426 = vsel %vm410, 1, 0
    %v427 = vsel %vm411, 1, 0
    %v428 = vcvt.s32.f32 %v412
    %v429 = vcvt.s32.f32 %v413
    %v430 = vcvt.s32.f32 %v414
    %v431 = vcvt.s32.f32 %v415
    %v432 = vcvt.s32.f32 %v416
    %v433 = vcvt.s32.f32 %v417
    %v434 = vcvt.s32.f32 %v418
    %v435 = vcvt.s32.f32 %v419
    %v436 = vcvt.s32.f32 %v420
    %v437 = vcvt.s32.f32 %v421
    %v438 = vcvt.s32.f32 %v422
    %v439 = vcvt.s32.f32 %v423
    %v440 = vcvt.s32.f32 %v424
    %v441 = vcvt.s32.f32 %v425
    %v442 = vcvt.s32.f32 %v426
    %v443 = vcvt.s32.f32 %v427
    %v444 = vld [vmem:[%s2] sm:$0xff]
    %v445 = vld [vmem:[%s2 + $0x8] sm:$0xff]
    %v446 = vld [vmem:[%s2 + $0x10] sm:$0xff]
    %v447 = vld [vmem:[%s2 + $0x18] sm:$0xff]
    %v448 = vld [vmem:[%s2 + $0x20] sm:$0xff]
    %v449 = vld [vmem:[%s2 + $0x28] sm:$0xff]
    %v450 = vld [vmem:[%s2 + $0x30] sm:$0xff]
    %v451 = vld [vmem:[%s2 + $0x38] sm:$0xff]
    %v452 = vld [vmem:[%s2 + $0x40] sm:$0xff]
    %v453 = vld [vmem:[%s2 + $0x48] sm:$0xff]
    %v454 = vld [vmem:[%s2 + $0x50] sm:$0xff]
    %v455 = vld [vmem:[%s2 + $0x58] sm:$0xff]
    %v456 = vld [vmem:[%s2 + $0x60] sm:$0xff]
    %v457 = vld [vmem:[%s2 + $0x68] sm:$0xff]
    %v458 = vld [vmem:[%s2 + $0x70] sm:$0xff]
    %v459 = vld [vmem:[%s2 + $0x78] sm:$0xff]
    %460 = vset.pattern.permute.xlu0 0
    %461 = vperm.xlu0 %460, %v444
    %v462 = vpop.permute.xlu0 %461
    %463 = vset.pattern.permute.xlu0 0
    %464 = vperm.xlu0 %463, %v445
    %v465 = vpop.permute.xlu0 %464
    %466 = vset.pattern.permute.xlu0 0
    %467 = vperm.xlu0 %466, %v446
    %v468 = vpop.permute.xlu0 %467
    %469 = vset.pattern.permute.xlu0 0
    %470 = vperm.xlu0 %469, %v447
    %v471 = vpop.permute.xlu0 %470
    %472 = vset.pattern.permute.xlu0 0
    %473 = vperm.xlu0 %472, %v448
    %v474 = vpop.permute.xlu0 %473
    %475 = vset.pattern.permute.xlu0 0
    %476 = vperm.xlu0 %475, %v449
    %v477 = vpop.permute.xlu0 %476
    %478 = vset.pattern.permute.xlu0 0
    %479 = vperm.xlu0 %478, %v450
    %v480 = vpop.permute.xlu0 %479
    %481 = vset.pattern.permute.xlu0 0
    %482 = vperm.xlu0 %481, %v451
    %v483 = vpop.permute.xlu0 %482
    %484 = vset.pattern.permute.xlu0 0
    %485 = vperm.xlu0 %484, %v452
    %v486 = vpop.permute.xlu0 %485
    %487 = vset.pattern.permute.xlu0 0
    %488 = vperm.xlu0 %487, %v453
    %v489 = vpop.permute.xlu0 %488
    %490 = vset.pattern.permute.xlu0 0
    %491 = vperm.xlu0 %490, %v454
    %v492 = vpop.permute.xlu0 %491
    %493 = vset.pattern.permute.xlu0 0
    %494 = vperm.xlu0 %493, %v455
    %v495 = vpop.permute.xlu0 %494
    %496 = vset.pattern.permute.xlu0 0
    %497 = vperm.xlu0 %496, %v456
    %v498 = vpop.permute.xlu0 %497
    %499 = vset.pattern.permute.xlu0 0
    %500 = vperm.xlu0 %499, %v457
    %v501 = vpop.permute.xlu0 %500
    %502 = vset.pattern.permute.xlu0 0
    %503 = vperm.xlu0 %502, %v458
    %v504 = vpop.permute.xlu0 %503
    %505 = vset.pattern.permute.xlu0 0
    %506 = vperm.xlu0 %505, %v459
    %v507 = vpop.permute.xlu0 %506
    %vm508 = vcmp.eq.s32.totalorder %v74, %v462
    %vm509 = vcmp.eq.s32.totalorder %v74, %v465
    %vm510 = vcmp.eq.s32.totalorder %v74, %v468
    %vm511 = vcmp.eq.s32.totalorder %v74, %v471
    %vm512 = vcmp.eq.s32.totalorder %v74, %v474
    %vm513 = vcmp.eq.s32.totalorder %v74, %v477
    %vm514 = vcmp.eq.s32.totalorder %v74, %v480
    %vm515 = vcmp.eq.s32.totalorder %v74, %v483
    %vm516 = vcmp.eq.s32.totalorder %v74, %v486
    %vm517 = vcmp.eq.s32.totalorder %v74, %v489
    %vm518 = vcmp.eq.s32.totalorder %v74, %v492
    %vm519 = vcmp.eq.s32.totalorder %v74, %v495
    %vm520 = vcmp.eq.s32.totalorder %v74, %v498
    %vm521 = vcmp.eq.s32.totalorder %v74, %v501
    %vm522 = vcmp.eq.s32.totalorder %v74, %v504
    %vm523 = vcmp.eq.s32.totalorder %v74, %v507
    %v524 = vsel %vm508, 1, 0
    %v525 = vsel %vm509, 1, 0
    %v526 = vsel %vm510, 1, 0
    %v527 = vsel %vm511, 1, 0
    %v528 = vsel %vm512, 1, 0
    %v529 = vsel %vm513, 1, 0
    %v530 = vsel %vm514, 1, 0
    %v531 = vsel %vm515, 1, 0
    %v532 = vsel %vm516, 1, 0
    %v533 = vsel %vm517, 1, 0
    %v534 = vsel %vm518, 1, 0
    %v535 = vsel %vm519, 1, 0
    %v536 = vsel %vm520, 1, 0
    %v537 = vsel %vm521, 1, 0
    %v538 = vsel %vm522, 1, 0
    %v539 = vsel %vm523, 1, 0
    %v540 = vcvt.s32.f32 %v524
    %v541 = vcvt.s32.f32 %v525
    %v542 = vcvt.s32.f32 %v526
    %v543 = vcvt.s32.f32 %v527
    %v544 = vcvt.s32.f32 %v528
    %v545 = vcvt.s32.f32 %v529
    %v546 = vcvt.s32.f32 %v530
    %v547 = vcvt.s32.f32 %v531
    %v548 = vcvt.s32.f32 %v532
    %v549 = vcvt.s32.f32 %v533
    %v550 = vcvt.s32.f32 %v534
    %v551 = vcvt.s32.f32 %v535
    %v552 = vcvt.s32.f32 %v536
    %v553 = vcvt.s32.f32 %v537
    %v554 = vcvt.s32.f32 %v538
    %v555 = vcvt.s32.f32 %v539
    %v556 = vld [vmem:[%s8] sm:$0xff]
    %v557 = vld [vmem:[%s8 + $0x8] sm:$0xff]
    %v558 = vld [vmem:[%s8 + $0x10] sm:$0xff]
    %v559 = vld [vmem:[%s8 + $0x18] sm:$0xff]
    %vm560 = vcmask 261120
    %v562 = vsel %vm560, %v428, 0
    %v565 = vsel %vm560, %v429, 0
    %v568 = vsel %vm560, %v430, 0
    %v571 = vsel %vm560, %v431, 0
    %v574 = vsel %vm560, %v432, 0
    %v577 = vsel %vm560, %v433, 0
    %v580 = vsel %vm560, %v434, 0
    %v583 = vsel %vm560, %v435, 0
    %v586 = vsel %vm560, %v436, 0
    %v589 = vsel %vm560, %v437, 0
    %v592 = vsel %vm560, %v438, 0
    %v595 = vsel %vm560, %v439, 0
    %v598 = vsel %vm560, %v440, 0
    %v601 = vsel %vm560, %v441, 0
    %v604 = vsel %vm560, %v442, 0
    %v607 = vsel %vm560, %v443, 0
    %609 = vmatprep.subr.mxu0 0.0
    %610 = vmatpush1.msra.mxu0 %v556
    %611 = vmatprep.subr.mxu0 0.0
    %612 = vmatpush1.msra.mxu0 %v557
    %613 = vmatprep.subr.mxu0 0.0
    %614 = vmatpush1.msra.mxu0 %v558
    %615 = vmatprep.subr.mxu0 0.0
    %616 = vmatpush1.msra.mxu0 %v559
    %617 = vmatprep.subr.mxu0 0.0
    %618 = vmatpush1.msra.mxu0 0.0
    %619 = vmatprep.subr.mxu0 0.0
    %620 = vmatpush1.msra.mxu0 0.0
    %621 = vmatprep.subr.mxu0 0.0
    %622 = vmatpush1.msra.mxu0 0.0
    %623 = vmatprep.subr.mxu0 0.0
    %624 = vmatpush1.msra.mxu0 0.0
    %625 = vmatprep.subr.mxu0 0.0
    %626 = vmatpush1.msra.mxu0 0.0
    %627 = vmatprep.subr.mxu0 0.0
    %628 = vmatpush1.msra.mxu0 0.0
    %629 = vmatprep.subr.mxu0 0.0
    %630 = vmatpush1.msra.mxu0 0.0
    %631 = vmatprep.subr.mxu0 0.0
    %632 = vmatpush1.msra.mxu0 0.0
    %633 = vmatprep.subr.mxu0 0.0
    %634 = vmatpush1.msra.mxu0 0.0
    %635 = vmatprep.subr.mxu0 0.0
    %636 = vmatpush1.msra.mxu0 0.0
    %637 = vmatprep.subr.mxu0 0.0
    %638 = vmatpush1.msra.mxu0 0.0
    %639 = vmatprep.subr.mxu0 0.0
    %640 = vmatpush1.msra.mxu0 0.0
    %641 = vmatprep.subr.mxu0 0.0
    %642 = vmatpush1.msra.mxu0 0.0
    %643 = vmatprep.subr.mxu0 0.0
    %644 = vmatpush1.msra.mxu0 0.0
    %645 = vmatprep.subr.mxu0 0.0
    %646 = vmatpush1.msra.mxu0 0.0
    %647 = vmatprep.subr.mxu0 0.0
    %648 = vmatpush1.msra.mxu0 0.0
    %649 = vmatprep.subr.mxu0 0.0
    %650 = vmatpush1.msra.mxu0 0.0
    %651 = vmatprep.subr.mxu0 0.0
    %652 = vmatpush1.msra.mxu0 0.0
    %653 = vmatprep.subr.mxu0 0.0
    %654 = vmatpush1.msra.mxu0 0.0
    %655 = vmatprep.subr.mxu0 0.0
    %656 = vmatpush1.msra.mxu0 0.0
    %657 = vmatprep.subr.mxu0 0.0
    %658 = vmatpush1.msra.mxu0 0.0
    %659 = vmatprep.subr.mxu0 0.0
    %660 = vmatpush1.msra.mxu0 0.0
    %661 = vmatprep.subr.mxu0 0.0
    %662 = vmatpush1.msra.mxu0 0.0
    %663 = vmatprep.subr.mxu0 0.0
    %664 = vmatpush1.msra.mxu0 0.0
    %665 = vmatprep.subr.mxu0 0.0
    %666 = vmatpush1.msra.mxu0 0.0
    %667 = vmatprep.subr.mxu0 0.0
    %668 = vmatpush1.msra.mxu0 0.0
    %669 = vmatprep.subr.mxu0 0.0
    %670 = vmatpush1.msra.mxu0 0.0
    %671 = vmatprep.subr.mxu0 0.0
    %672 = vmatpush1.msra.mxu0 0.0
    %673 = vmatprep.mubr.f32.mxu0 0.0
    %674 = vmatmul.mubr.f32.gmra.mrb[0].mxu0 %v562
    %v675 = vpop.f32.mrb[0].mxu0
    %v676 = vadd.f32 0.0, %v675
    %v677 = vpop.f32.mrb[0].mxu0
    %678 = vmatprep.mubr.f32.mxu0 0.0
    %679 = vmatmul.mubr.f32.gmra.mrb[0].mxu0 %v565
    %v680 = vpop.f32.mrb[0].mxu0
    %v681 = vadd.f32 0.0, %v680
    %v682 = vpop.f32.mrb[0].mxu0
    %683 = vmatprep.mubr.f32.mxu0 0.0
    %684 = vmatmul.mubr.f32.gmra.mrb[0].mxu0 %v568
    %v685 = vpop.f32.mrb[0].mxu0
    %v686 = vadd.f32 0.0, %v685
    %v687 = vpop.f32.mrb[0].mxu0
    %688 = vmatprep.mubr.f32.mxu0 0.0
    %689 = vmatmul.mubr.f32.gmra.mrb[0].mxu0 %v571
    %v690 = vpop.f32.mrb[0].mxu0
    %v691 = vadd.f32 0.0, %v690
    %v692 = vpop.f32.mrb[0].mxu0
    %693 = vmatprep.mubr.f32.mxu0 0.0
    %694 = vmatmul.mubr.f32.gmra.mrb[0].mxu0 %v574
    %v695 = vpop.f32.mrb[0].mxu0
    %v696 = vadd.f32 0.0, %v695
    %v697 = vpop.f32.mrb[0].mxu0
    %698 = vmatprep.mubr.f32.mxu0 0.0
    %699 = vmatmul.mubr.f32.gmra.mrb[0].mxu0 %v577
    %v700 = vpop.f32.mrb[0].mxu0
    %v701 = vadd.f32 0.0, %v700
    %v702 = vpop.f32.mrb[0].mxu0
    %703 = vmatprep.mubr.f32.mxu0 0.0
    %704 = vmatmul.mubr.f32.gmra.mrb[0].mxu0 %v580
    %v705 = vpop.f32.mrb[0].mxu0
    %v706 = vadd.f32 0.0, %v705
    %v707 = vpop.f32.mrb[0].mxu0
    %708 = vmatprep.mubr.f32.mxu0 0.0
    %709 = vmatmul.mubr.f32.gmra.mrb[0].mxu0 %v583
    %v710 = vpop.f32.mrb[0].mxu0
    %v711 = vadd.f32 0.0, %v710
    %v712 = vpop.f32.mrb[0].mxu0
    %713 = vmatprep.mubr.f32.mxu0 0.0
    %714 = vmatmul.mubr.f32.gmra.mrb[0].mxu0 %v586
    %v715 = vpop.f32.mrb[0].mxu0
    %v716 = vadd.f32 0.0, %v715
    %v717 = vpop.f32.mrb[0].mxu0
    %718 = vmatprep.mubr.f32.mxu0 0.0
    %719 = vmatmul.mubr.f32.gmra.mrb[0].mxu0 %v589
    %v720 = vpop.f32.mrb[0].mxu0
    %v721 = vadd.f32 0.0, %v720
    %v722 = vpop.f32.mrb[0].mxu0
    %723 = vmatprep.mubr.f32.mxu0 0.0
    %724 = vmatmul.mubr.f32.gmra.mrb[0].mxu0 %v592
    %v725 = vpop.f32.mrb[0].mxu0
    %v726 = vadd.f32 0.0, %v725
    %v727 = vpop.f32.mrb[0].mxu0
    %728 = vmatprep.mubr.f32.mxu0 0.0
    %729 = vmatmul.mubr.f32.gmra.mrb[0].mxu0 %v595
    %v730 = vpop.f32.mrb[0].mxu0
    %v731 = vadd.f32 0.0, %v730
    %v732 = vpop.f32.mrb[0].mxu0
    %733 = vmatprep.mubr.f32.mxu0 0.0
    %734 = vmatmul.mubr.f32.gmra.mrb[0].mxu0 %v598
    %v735 = vpop.f32.mrb[0].mxu0
    %v736 = vadd.f32 0.0, %v735
    %v737 = vpop.f32.mrb[0].mxu0
    %738 = vmatprep.mubr.f32.mxu0 0.0
    %739 = vmatmul.mubr.f32.gmra.mrb[0].mxu0 %v601
    %v740 = vpop.f32.mrb[0].mxu0
    %v741 = vadd.f32 0.0, %v740
    %v742 = vpop.f32.mrb[0].mxu0
    %743 = vmatprep.mubr.f32.mxu0 0.0
    %744 = vmatmul.mubr.f32.gmra.mrb[0].mxu0 %v604
    %v745 = vpop.f32.mrb[0].mxu0
    %v746 = vadd.f32 0.0, %v745
    %v747 = vpop.f32.mrb[0].mxu0
    %748 = vmatprep.mubr.f32.mxu0 0.0
    %749 = vmatmul.mubr.f32.gmra.mrb[0].mxu0 %v607
    %v750 = vpop.f32.mrb[0].mxu0
    %v751 = vadd.f32 0.0, %v750
    %v752 = vpop.f32.mrb[0].mxu0
    %753 = vdwg.mxu0
    %v754 = vld [vmem:[%s9] sm:$0xff]
    %v755 = vld [vmem:[%s9 + $0x8] sm:$0xff]
    %v756 = vld [vmem:[%s9 + $0x10] sm:$0xff]
    %v757 = vld [vmem:[%s9 + $0x18] sm:$0xff]
    %v759 = vsel %vm560, %v540, 0
    %v762 = vsel %vm560, %v541, 0
    %v765 = vsel %vm560, %v542, 0
    %v768 = vsel %vm560, %v543, 0
    %v771 = vsel %vm560, %v544, 0
    %v774 = vsel %vm560, %v545, 0
    %v777 = vsel %vm560, %v546, 0
    %v780 = vsel %vm560, %v547, 0
    %v783 = vsel %vm560, %v548, 0
    %v786 = vsel %vm560, %v549, 0
    %v789 = vsel %vm560, %v550, 0
    %v792 = vsel %vm560, %v551, 0
    %v795 = vsel %vm560, %v552, 0
    %v798 = vsel %vm560, %v553, 0
    %v801 = vsel %vm560, %v554, 0
    %v804 = vsel %vm560, %v555, 0
    %806 = vmatprep.subr.mxu0 0.0
    %807 = vmatpush1.msra.mxu0 %v754
    %808 = vmatprep.subr.mxu0 0.0
    %809 = vmatpush1.msra.mxu0 %v755
    %810 = vmatprep.subr.mxu0 0.0
    %811 = vmatpush1.msra.mxu0 %v756
    %812 = vmatprep.subr.mxu0 0.0
    %813 = vmatpush1.msra.mxu0 %v757
    %814 = vmatprep.subr.mxu0 0.0
    %815 = vmatpush1.msra.mxu0 0.0
    %816 = vmatprep.subr.mxu0 0.0
    %817 = vmatpush1.msra.mxu0 0.0
    %818 = vmatprep.subr.mxu0 0.0
    %819 = vmatpush1.msra.mxu0 0.0
    %820 = vmatprep.subr.mxu0 0.0
    %821 = vmatpush1.msra.mxu0 0.0
    %822 = vmatprep.subr.mxu0 0.0
    %823 = vmatpush1.msra.mxu0 0.0
    %824 = vmatprep.subr.mxu0 0.0
    %825 = vmatpush1.msra.mxu0 0.0
    %826 = vmatprep.subr.mxu0 0.0
    %827 = vmatpush1.msra.mxu0 0.0
    %828 = vmatprep.subr.mxu0 0.0
    %829 = vmatpush1.msra.mxu0 0.0
    %830 = vmatprep.subr.mxu0 0.0
    %831 = vmatpush1.msra.mxu0 0.0
    %832 = vmatprep.subr.mxu0 0.0
    %833 = vmatpush1.msra.mxu0 0.0
    %834 = vmatprep.subr.mxu0 0.0
    %835 = vmatpush1.msra.mxu0 0.0
    %836 = vmatprep.subr.mxu0 0.0
    %837 = vmatpush1.msra.mxu0 0.0
    %838 = vmatprep.subr.mxu0 0.0
    %839 = vmatpush1.msra.mxu0 0.0
    %840 = vmatprep.subr.mxu0 0.0
    %841 = vmatpush1.msra.mxu0 0.0
    %842 = vmatprep.subr.mxu0 0.0
    %843 = vmatpush1.msra.mxu0 0.0
    %844 = vmatprep.subr.mxu0 0.0
    %845 = vmatpush1.msra.mxu0 0.0
    %846 = vmatprep.subr.mxu0 0.0
    %847 = vmatpush1.msra.mxu0 0.0
    %848 = vmatprep.subr.mxu0 0.0
    %849 = vmatpush1.msra.mxu0 0.0
    %850 = vmatprep.subr.mxu0 0.0
    %851 = vmatpush1.msra.mxu0 0.0
    %852 = vmatprep.subr.mxu0 0.0
    %853 = vmatpush1.msra.mxu0 0.0
    %854 = vmatprep.subr.mxu0 0.0
    %855 = vmatpush1.msra.mxu0 0.0
    %856 = vmatprep.subr.mxu0 0.0
    %857 = vmatpush1.msra.mxu0 0.0
    %858 = vmatprep.subr.mxu0 0.0
    %859 = vmatpush1.msra.mxu0 0.0
    %860 = vmatprep.subr.mxu0 0.0
    %861 = vmatpush1.msra.mxu0 0.0
    %862 = vmatprep.subr.mxu0 0.0
    %863 = vmatpush1.msra.mxu0 0.0
    %864 = vmatprep.subr.mxu0 0.0
    %865 = vmatpush1.msra.mxu0 0.0
    %866 = vmatprep.subr.mxu0 0.0
    %867 = vmatpush1.msra.mxu0 0.0
    %868 = vmatprep.subr.mxu0 0.0
    %869 = vmatpush1.msra.mxu0 0.0
    %870 = vmatprep.mubr.f32.mxu0 0.0
    %871 = vmatmul.mubr.f32.gmra.mrb[0].mxu0 %v759
    %v872 = vpop.f32.mrb[0].mxu0
    %v873 = vadd.f32 0.0, %v872
    %v874 = vpop.f32.mrb[0].mxu0
    %875 = vmatprep.mubr.f32.mxu0 0.0
    %876 = vmatmul.mubr.f32.gmra.mrb[0].mxu0 %v762
    %v877 = vpop.f32.mrb[0].mxu0
    %v878 = vadd.f32 0.0, %v877
    %v879 = vpop.f32.mrb[0].mxu0
    %880 = vmatprep.mubr.f32.mxu0 0.0
    %881 = vmatmul.mubr.f32.gmra.mrb[0].mxu0 %v765
    %v882 = vpop.f32.mrb[0].mxu0
    %v883 = vadd.f32 0.0, %v882
    %v884 = vpop.f32.mrb[0].mxu0
    %885 = vmatprep.mubr.f32.mxu0 0.0
    %886 = vmatmul.mubr.f32.gmra.mrb[0].mxu0 %v768
    %v887 = vpop.f32.mrb[0].mxu0
    %v888 = vadd.f32 0.0, %v887
    %v889 = vpop.f32.mrb[0].mxu0
    %890 = vmatprep.mubr.f32.mxu0 0.0
    %891 = vmatmul.mubr.f32.gmra.mrb[0].mxu0 %v771
    %v892 = vpop.f32.mrb[0].mxu0
    %v893 = vadd.f32 0.0, %v892
    %v894 = vpop.f32.mrb[0].mxu0
    %895 = vmatprep.mubr.f32.mxu0 0.0
    %896 = vmatmul.mubr.f32.gmra.mrb[0].mxu0 %v774
    %v897 = vpop.f32.mrb[0].mxu0
    %v898 = vadd.f32 0.0, %v897
    %v899 = vpop.f32.mrb[0].mxu0
    %900 = vmatprep.mubr.f32.mxu0 0.0
    %901 = vmatmul.mubr.f32.gmra.mrb[0].mxu0 %v777
    %v902 = vpop.f32.mrb[0].mxu0
    %v903 = vadd.f32 0.0, %v902
    %v904 = vpop.f32.mrb[0].mxu0
    %905 = vmatprep.mubr.f32.mxu0 0.0
    %906 = vmatmul.mubr.f32.gmra.mrb[0].mxu0 %v780
    %v907 = vpop.f32.mrb[0].mxu0
    %v908 = vadd.f32 0.0, %v907
    %v909 = vpop.f32.mrb[0].mxu0
    %910 = vmatprep.mubr.f32.mxu0 0.0
    %911 = vmatmul.mubr.f32.gmra.mrb[0].mxu0 %v783
    %v912 = vpop.f32.mrb[0].mxu0
    %v913 = vadd.f32 0.0, %v912
    %v914 = vpop.f32.mrb[0].mxu0
    %915 = vmatprep.mubr.f32.mxu0 0.0
    %916 = vmatmul.mubr.f32.gmra.mrb[0].mxu0 %v786
    %v917 = vpop.f32.mrb[0].mxu0
    %v918 = vadd.f32 0.0, %v917
    %v919 = vpop.f32.mrb[0].mxu0
    %920 = vmatprep.mubr.f32.mxu0 0.0
    %921 = vmatmul.mubr.f32.gmra.mrb[0].mxu0 %v789
    %v922 = vpop.f32.mrb[0].mxu0
    %v923 = vadd.f32 0.0, %v922
    %v924 = vpop.f32.mrb[0].mxu0
    %925 = vmatprep.mubr.f32.mxu0 0.0
    %926 = vmatmul.mubr.f32.gmra.mrb[0].mxu0 %v792
    %v927 = vpop.f32.mrb[0].mxu0
    %v928 = vadd.f32 0.0, %v927
    %v929 = vpop.f32.mrb[0].mxu0
    %930 = vmatprep.mubr.f32.mxu0 0.0
    %931 = vmatmul.mubr.f32.gmra.mrb[0].mxu0 %v795
    %v932 = vpop.f32.mrb[0].mxu0
    %v933 = vadd.f32 0.0, %v932
    %v934 = vpop.f32.mrb[0].mxu0
    %935 = vmatprep.mubr.f32.mxu0 0.0
    %936 = vmatmul.mubr.f32.gmra.mrb[0].mxu0 %v798
    %v937 = vpop.f32.mrb[0].mxu0
    %v938 = vadd.f32 0.0, %v937
    %v939 = vpop.f32.mrb[0].mxu0
    %940 = vmatprep.mubr.f32.mxu0 0.0
    %941 = vmatmul.mubr.f32.gmra.mrb[0].mxu0 %v801
    %v942 = vpop.f32.mrb[0].mxu0
    %v943 = vadd.f32 0.0, %v942
    %v944 = vpop.f32.mrb[0].mxu0
    %945 = vmatprep.mubr.f32.mxu0 0.0
    %946 = vmatmul.mubr.f32.gmra.mrb[0].mxu0 %v804
    %v947 = vpop.f32.mrb[0].mxu0
    %v948 = vadd.f32 0.0, %v947
    %v949 = vpop.f32.mrb[0].mxu0
    %950 = vdwg.mxu0
    %967 = vrot.lane.b32.xlu0 %v676, 32
    %v968 = vpop.permute.xlu0 %967
    %969 = vrot.lane.b32.xlu0 %v681, 32
    %v970 = vpop.permute.xlu0 %969
    %971 = vrot.lane.b32.xlu0 %v686, 32
    %v972 = vpop.permute.xlu0 %971
    %973 = vrot.lane.b32.xlu0 %v691, 32
    %v974 = vpop.permute.xlu0 %973
    %975 = vrot.lane.b32.xlu0 %v696, 32
    %v976 = vpop.permute.xlu0 %975
    %977 = vrot.lane.b32.xlu0 %v701, 32
    %v978 = vpop.permute.xlu0 %977
    %979 = vrot.lane.b32.xlu0 %v706, 32
    %v980 = vpop.permute.xlu0 %979
    %981 = vrot.lane.b32.xlu0 %v711, 32
    %v982 = vpop.permute.xlu0 %981
    %983 = vrot.lane.b32.xlu0 %v716, 32
    %v984 = vpop.permute.xlu0 %983
    %985 = vrot.lane.b32.xlu0 %v721, 32
    %v986 = vpop.permute.xlu0 %985
    %987 = vrot.lane.b32.xlu0 %v726, 32
    %v988 = vpop.permute.xlu0 %987
    %989 = vrot.lane.b32.xlu0 %v731, 32
    %v990 = vpop.permute.xlu0 %989
    %991 = vrot.lane.b32.xlu0 %v736, 32
    %v992 = vpop.permute.xlu0 %991
    %993 = vrot.lane.b32.xlu0 %v741, 32
    %v994 = vpop.permute.xlu0 %993
    %995 = vrot.lane.b32.xlu0 %v746, 32
    %v996 = vpop.permute.xlu0 %995
    %997 = vrot.lane.b32.xlu0 %v751, 32
    %v998 = vpop.permute.xlu0 %997
    %1031 = vrot.lane.b32.xlu0 %v873, 40
    %v1032 = vpop.permute.xlu0 %1031
    %1033 = vrot.lane.b32.xlu0 %v878, 40
    %v1034 = vpop.permute.xlu0 %1033
    %1035 = vrot.lane.b32.xlu0 %v883, 40
    %v1036 = vpop.permute.xlu0 %1035
    %1037 = vrot.lane.b32.xlu0 %v888, 40
    %v1038 = vpop.permute.xlu0 %1037
    %1039 = vrot.lane.b32.xlu0 %v893, 40
    %v1040 = vpop.permute.xlu0 %1039
    %1041 = vrot.lane.b32.xlu0 %v898, 40
    %v1042 = vpop.permute.xlu0 %1041
    %1043 = vrot.lane.b32.xlu0 %v903, 40
    %v1044 = vpop.permute.xlu0 %1043
    %1045 = vrot.lane.b32.xlu0 %v908, 40
    %v1046 = vpop.permute.xlu0 %1045
    %1047 = vrot.lane.b32.xlu0 %v913, 40
    %v1048 = vpop.permute.xlu0 %1047
    %1049 = vrot.lane.b32.xlu0 %v918, 40
    %v1050 = vpop.permute.xlu0 %1049
    %1051 = vrot.lane.b32.xlu0 %v923, 40
    %v1052 = vpop.permute.xlu0 %1051
    %1053 = vrot.lane.b32.xlu0 %v928, 40
    %v1054 = vpop.permute.xlu0 %1053
    %1055 = vrot.lane.b32.xlu0 %v933, 40
    %v1056 = vpop.permute.xlu0 %1055
    %1057 = vrot.lane.b32.xlu0 %v938, 40
    %v1058 = vpop.permute.xlu0 %1057
    %1059 = vrot.lane.b32.xlu0 %v943, 40
    %v1060 = vpop.permute.xlu0 %1059
    %1061 = vrot.lane.b32.xlu0 %v948, 40
    %v1062 = vpop.permute.xlu0 %1061
    %v1079 = vsel %vm560, %v254, %v968
    %v1080 = vsel %vm560, %v259, %v970
    %v1081 = vsel %vm560, %v264, %v972
    %v1082 = vsel %vm560, %v269, %v974
    %v1083 = vsel %vm560, %v274, %v976
    %v1084 = vsel %vm560, %v279, %v978
    %v1085 = vsel %vm560, %v284, %v980
    %v1086 = vsel %vm560, %v289, %v982
    %v1087 = vsel %vm560, %v294, %v984
    %v1088 = vsel %vm560, %v299, %v986
    %v1089 = vsel %vm560, %v304, %v988
    %v1090 = vsel %vm560, %v309, %v990
    %v1091 = vsel %vm560, %v314, %v992
    %v1092 = vsel %vm560, %v319, %v994
    %v1093 = vsel %vm560, %v324, %v996
    %v1094 = vsel %vm560, %v329, %v998
    %vm1095 = vcmask 326656
    %v1096 = vsel %vm1095, %v1079, %v1032
    %v1097 = vsel %vm1095, %v1080, %v1034
    %v1098 = vsel %vm1095, %v1081, %v1036
    %v1099 = vsel %vm1095, %v1082, %v1038
    %v1100 = vsel %vm1095, %v1083, %v1040
    %v1101 = vsel %vm1095, %v1084, %v1042
    %v1102 = vsel %vm1095, %v1085, %v1044
    %v1103 = vsel %vm1095, %v1086, %v1046
    %v1104 = vsel %vm1095, %v1087, %v1048
    %v1105 = vsel %vm1095, %v1088, %v1050
    %v1106 = vsel %vm1095, %v1089, %v1052
    %v1107 = vsel %vm1095, %v1090, %v1054
    %v1108 = vsel %vm1095, %v1091, %v1056
    %v1109 = vsel %vm1095, %v1092, %v1058
    %v1110 = vsel %vm1095, %v1093, %v1060
    %v1111 = vsel %vm1095, %v1094, %v1062
    %v1112 = vlaneseq
    %v1113 = vshrl.u32 %v1112, 7
    %v1114 = vadd.s32 %v1113, 8
    %v1115 = vadd.s32 %v1113, 16
    %v1116 = vadd.s32 %v1113, 24
    %v1117 = vadd.s32 %v1113, 32
    %v1118 = vadd.s32 %v1113, 40
    %v1119 = vadd.s32 %v1113, 48
    %v1120 = vadd.s32 %v1113, 56
    %v1121 = vadd.s32 %v1113, 64
    %v1122 = vadd.s32 %v1113, 72
    %v1123 = vadd.s32 %v1113, 80
    %v1124 = vadd.s32 %v1113, 88
    %v1125 = vadd.s32 %v1113, 96
    %v1126 = vadd.s32 %v1113, 104
    %v1127 = vadd.s32 %v1113, 112
    %v1128 = vadd.s32 %v1113, 120
    %v1129 = vshra.s32 %v1113, 4
    %v1130 = vshra.s32 %v1114, 4
    %v1131 = vshra.s32 %v1115, 4
    %v1132 = vshra.s32 %v1116, 4
    %v1133 = vshra.s32 %v1117, 4
    %v1134 = vshra.s32 %v1118, 4
    %v1135 = vshra.s32 %v1119, 4
    %v1136 = vshra.s32 %v1120, 4
    %v1137 = vshra.s32 %v1121, 4
    %v1138 = vshra.s32 %v1122, 4
    %v1139 = vshra.s32 %v1123, 4
    %v1140 = vshra.s32 %v1124, 4
    %v1141 = vshra.s32 %v1125, 4
    %v1142 = vshra.s32 %v1126, 4
    %v1143 = vshra.s32 %v1127, 4
    %v1144 = vshra.s32 %v1128, 4
    %v1145 = vshra.s32 %v74, 4
    %vm1146 = vcmp.eq.s32.totalorder %v1129, %v1145
    %vm1147 = vcmp.eq.s32.totalorder %v1130, %v1145
    %vm1148 = vcmp.eq.s32.totalorder %v1131, %v1145
    %vm1149 = vcmp.eq.s32.totalorder %v1132, %v1145
    %vm1150 = vcmp.eq.s32.totalorder %v1133, %v1145
    %vm1151 = vcmp.eq.s32.totalorder %v1134, %v1145
    %vm1152 = vcmp.eq.s32.totalorder %v1135, %v1145
    %vm1153 = vcmp.eq.s32.totalorder %v1136, %v1145
    %vm1154 = vcmp.eq.s32.totalorder %v1137, %v1145
    %vm1155 = vcmp.eq.s32.totalorder %v1138, %v1145
    %vm1156 = vcmp.eq.s32.totalorder %v1139, %v1145
    %vm1157 = vcmp.eq.s32.totalorder %v1140, %v1145
    %vm1158 = vcmp.eq.s32.totalorder %v1141, %v1145
    %vm1159 = vcmp.eq.s32.totalorder %v1142, %v1145
    %vm1160 = vcmp.eq.s32.totalorder %v1143, %v1145
    %vm1161 = vcmp.eq.s32.totalorder %v1144, %v1145
    %v1162 = vsel %vm1146, 1, 0
    %v1163 = vsel %vm1147, 1, 0
    %v1164 = vsel %vm1148, 1, 0
    %v1165 = vsel %vm1149, 1, 0
    %v1166 = vsel %vm1150, 1, 0
    %v1167 = vsel %vm1151, 1, 0
    %v1168 = vsel %vm1152, 1, 0
    %v1169 = vsel %vm1153, 1, 0
    %v1170 = vsel %vm1154, 1, 0
    %v1171 = vsel %vm1155, 1, 0
    %v1172 = vsel %vm1156, 1, 0
    %v1173 = vsel %vm1157, 1, 0
    %v1174 = vsel %vm1158, 1, 0
    %v1175 = vsel %vm1159, 1, 0
    %v1176 = vsel %vm1160, 1, 0
    %v1177 = vsel %vm1161, 1, 0
    %v1178 = vcvt.s32.f32 %v1162
    %v1179 = vcvt.s32.f32 %v1163
    %v1180 = vcvt.s32.f32 %v1164
    %v1181 = vcvt.s32.f32 %v1165
    %v1182 = vcvt.s32.f32 %v1166
    %v1183 = vcvt.s32.f32 %v1167
    %v1184 = vcvt.s32.f32 %v1168
    %v1185 = vcvt.s32.f32 %v1169
    %v1186 = vcvt.s32.f32 %v1170
    %v1187 = vcvt.s32.f32 %v1171
    %v1188 = vcvt.s32.f32 %v1172
    %v1189 = vcvt.s32.f32 %v1173
    %v1190 = vcvt.s32.f32 %v1174
    %v1191 = vcvt.s32.f32 %v1175
    %v1192 = vcvt.s32.f32 %v1176
    %v1193 = vcvt.s32.f32 %v1177
    %v1194 = vld [vmem:[%s5] sm:$0x1]
    %v1196 = vlaneseq
    %v1197 = vshrl.u32 %v1196, 7
    %v1198 = vsub.s32 0, %v1197
    %v1199 = vrot.slane %v1194, %v1198
    %v1201 = vmul.f32 %v1178, %v1199
    %v1202 = vmul.f32 %v1179, %v1199
    %v1203 = vmul.f32 %v1180, %v1199
    %v1204 = vmul.f32 %v1181, %v1199
    %v1205 = vmul.f32 %v1182, %v1199
    %v1206 = vmul.f32 %v1183, %v1199
    %v1207 = vmul.f32 %v1184, %v1199
    %v1208 = vmul.f32 %v1185, %v1199
    %v1209 = vmul.f32 %v1186, %v1199
    %v1210 = vmul.f32 %v1187, %v1199
    %v1211 = vmul.f32 %v1188, %v1199
    %v1212 = vmul.f32 %v1189, %v1199
    %v1213 = vmul.f32 %v1190, %v1199
    %v1214 = vmul.f32 %v1191, %v1199
    %v1215 = vmul.f32 %v1192, %v1199
    %v1216 = vmul.f32 %v1193, %v1199
    %1217 = vmatprep.subr.mxu0 0.0
    %1218 = vmatpush1.msra.mxu0 %v254
    %1219 = vmatprep.subr.mxu0 0.0
    %1220 = vmatpush1.msra.mxu0 %v259
    %1221 = vmatprep.subr.mxu0 0.0
    %1222 = vmatpush1.msra.mxu0 %v264
    %1223 = vmatprep.subr.mxu0 0.0
    %1224 = vmatpush1.msra.mxu0 %v269
    %1225 = vmatprep.subr.mxu0 0.0
    %1226 = vmatpush1.msra.mxu0 %v274
    %1227 = vmatprep.subr.mxu0 0.0
    %1228 = vmatpush1.msra.mxu0 %v279
    %1229 = vmatprep.subr.mxu0 0.0
    %1230 = vmatpush1.msra.mxu0 %v284
    %1231 = vmatprep.subr.mxu0 0.0
    %1232 = vmatpush1.msra.mxu0 %v289
    %1233 = vmatprep.subr.mxu0 0.0
    %1234 = vmatpush1.msra.mxu0 %v294
    %1235 = vmatprep.subr.mxu0 0.0
    %1236 = vmatpush1.msra.mxu0 %v299
    %1237 = vmatprep.subr.mxu0 0.0
    %1238 = vmatpush1.msra.mxu0 %v304
    %1239 = vmatprep.subr.mxu0 0.0
    %1240 = vmatpush1.msra.mxu0 %v309
    %1241 = vmatprep.subr.mxu0 0.0
    %1242 = vmatpush1.msra.mxu0 %v314
    %1243 = vmatprep.subr.mxu0 0.0
    %1244 = vmatpush1.msra.mxu0 %v319
    %1245 = vmatprep.subr.mxu0 0.0
    %1246 = vmatpush1.msra.mxu0 %v324
    %1247 = vmatprep.subr.mxu0 0.0
    %1248 = vmatpush1.msra.mxu0 %v329
    %1249 = vmatprep.subr.mxu0 0.0
    %1250 = vmatpush1.msra.mxu0 0.0
    %1251 = vmatprep.subr.mxu0 0.0
    %1252 = vmatpush1.msra.mxu0 0.0
    %1253 = vmatprep.subr.mxu0 0.0
    %1254 = vmatpush1.msra.mxu0 0.0
    %1255 = vmatprep.subr.mxu0 0.0
    %1256 = vmatpush1.msra.mxu0 0.0
    %1257 = vmatprep.subr.mxu0 0.0
    %1258 = vmatpush1.msra.mxu0 0.0
    %1259 = vmatprep.subr.mxu0 0.0
    %1260 = vmatpush1.msra.mxu0 0.0
    %1261 = vmatprep.subr.mxu0 0.0
    %1262 = vmatpush1.msra.mxu0 0.0
    %1263 = vmatprep.subr.mxu0 0.0
    %1264 = vmatpush1.msra.mxu0 0.0
    %1265 = vmatprep.subr.mxu0 0.0
    %1266 = vmatpush1.msra.mxu0 0.0
    %1267 = vmatprep.subr.mxu0 0.0
    %1268 = vmatpush1.msra.mxu0 0.0
    %1269 = vmatprep.subr.mxu0 0.0
    %1270 = vmatpush1.msra.mxu0 0.0
    %1271 = vmatprep.subr.mxu0 0.0
    %1272 = vmatpush1.msra.mxu0 0.0
    %1273 = vmatprep.subr.mxu0 0.0
    %1274 = vmatpush1.msra.mxu0 0.0
    %1275 = vmatprep.subr.mxu0 0.0
    %1276 = vmatpush1.msra.mxu0 0.0
    %1277 = vmatprep.subr.mxu0 0.0
    %1278 = vmatpush1.msra.mxu0 0.0
    %1279 = vmatprep.subr.mxu0 0.0
    %1280 = vmatpush1.msra.mxu0 0.0
    %1281 = vmatprep.mubr.f32.mxu0 0.0
    %1282 = vmatmul.mubr.f32.gmra.mrb[0].mxu0 %v1201
    %v1283 = vpop.f32.mrb[0].mxu0
    %v1284 = vadd.f32 0.0, %v1283
    %v1285 = vpop.f32.mrb[0].mxu0
    %1286 = vmatprep.mubr.f32.mxu0 0.0
    %1287 = vmatmul.mubr.f32.gmra.mrb[0].mxu0 %v1202
    %v1288 = vpop.f32.mrb[0].mxu0
    %v1289 = vadd.f32 0.0, %v1288
    %v1290 = vpop.f32.mrb[0].mxu0
    %1291 = vmatprep.mubr.f32.mxu0 0.0
    %1292 = vmatmul.mubr.f32.gmra.mrb[0].mxu0 %v1203
    %v1293 = vpop.f32.mrb[0].mxu0
    %v1294 = vadd.f32 0.0, %v1293
    %v1295 = vpop.f32.mrb[0].mxu0
    %1296 = vmatprep.mubr.f32.mxu0 0.0
    %1297 = vmatmul.mubr.f32.gmra.mrb[0].mxu0 %v1204
    %v1298 = vpop.f32.mrb[0].mxu0
    %v1299 = vadd.f32 0.0, %v1298
    %v1300 = vpop.f32.mrb[0].mxu0
    %1301 = vmatprep.mubr.f32.mxu0 0.0
    %1302 = vmatmul.mubr.f32.gmra.mrb[0].mxu0 %v1205
    %v1303 = vpop.f32.mrb[0].mxu0
    %v1304 = vadd.f32 0.0, %v1303
    %v1305 = vpop.f32.mrb[0].mxu0
    %1306 = vmatprep.mubr.f32.mxu0 0.0
    %1307 = vmatmul.mubr.f32.gmra.mrb[0].mxu0 %v1206
    %v1308 = vpop.f32.mrb[0].mxu0
    %v1309 = vadd.f32 0.0, %v1308
    %v1310 = vpop.f32.mrb[0].mxu0
    %1311 = vmatprep.mubr.f32.mxu0 0.0
    %1312 = vmatmul.mubr.f32.gmra.mrb[0].mxu0 %v1207
    %v1313 = vpop.f32.mrb[0].mxu0
    %v1314 = vadd.f32 0.0, %v1313
    %v1315 = vpop.f32.mrb[0].mxu0
    %1316 = vmatprep.mubr.f32.mxu0 0.0
    %1317 = vmatmul.mubr.f32.gmra.mrb[0].mxu0 %v1208
    %v1318 = vpop.f32.mrb[0].mxu0
    %v1319 = vadd.f32 0.0, %v1318
    %v1320 = vpop.f32.mrb[0].mxu0
    %1321 = vmatprep.mubr.f32.mxu0 0.0
    %1322 = vmatmul.mubr.f32.gmra.mrb[0].mxu0 %v1209
    %v1323 = vpop.f32.mrb[0].mxu0
    %v1324 = vadd.f32 0.0, %v1323
    %v1325 = vpop.f32.mrb[0].mxu0
    %1326 = vmatprep.mubr.f32.mxu0 0.0
    %1327 = vmatmul.mubr.f32.gmra.mrb[0].mxu0 %v1210
    %v1328 = vpop.f32.mrb[0].mxu0
    %v1329 = vadd.f32 0.0, %v1328
    %v1330 = vpop.f32.mrb[0].mxu0
    %1331 = vmatprep.mubr.f32.mxu0 0.0
    %1332 = vmatmul.mubr.f32.gmra.mrb[0].mxu0 %v1211
    %v1333 = vpop.f32.mrb[0].mxu0
    %v1334 = vadd.f32 0.0, %v1333
    %v1335 = vpop.f32.mrb[0].mxu0
    %1336 = vmatprep.mubr.f32.mxu0 0.0
    %1337 = vmatmul.mubr.f32.gmra.mrb[0].mxu0 %v1212
    %v1338 = vpop.f32.mrb[0].mxu0
    %v1339 = vadd.f32 0.0, %v1338
    %v1340 = vpop.f32.mrb[0].mxu0
    %1341 = vmatprep.mubr.f32.mxu0 0.0
    %1342 = vmatmul.mubr.f32.gmra.mrb[0].mxu0 %v1213
    %v1343 = vpop.f32.mrb[0].mxu0
    %v1344 = vadd.f32 0.0, %v1343
    %v1345 = vpop.f32.mrb[0].mxu0
    %1346 = vmatprep.mubr.f32.mxu0 0.0
    %1347 = vmatmul.mubr.f32.gmra.mrb[0].mxu0 %v1214
    %v1348 = vpop.f32.mrb[0].mxu0
    %v1349 = vadd.f32 0.0, %v1348
    %v1350 = vpop.f32.mrb[0].mxu0
    %1351 = vmatprep.mubr.f32.mxu0 0.0
    %1352 = vmatmul.mubr.f32.gmra.mrb[0].mxu0 %v1215
    %v1353 = vpop.f32.mrb[0].mxu0
    %v1354 = vadd.f32 0.0, %v1353
    %v1355 = vpop.f32.mrb[0].mxu0
    %1356 = vmatprep.mubr.f32.mxu0 0.0
    %1357 = vmatmul.mubr.f32.gmra.mrb[0].mxu0 %v1216
    %v1358 = vpop.f32.mrb[0].mxu0
    %v1359 = vadd.f32 0.0, %v1358
    %v1360 = vpop.f32.mrb[0].mxu0
    %1361 = vdwg.mxu0
    %v1362 = vld [vmem:[%s6] sm:$0x1]
    %v1364 = vlaneseq
    %v1365 = vshrl.u32 %v1364, 7
    %v1366 = vsub.s32 0, %v1365
    %v1367 = vrot.slane %v1362, %v1366
    %v1369 = vmul.f32 %v1178, %v1367
    %v1370 = vmul.f32 %v1179, %v1367
    %v1371 = vmul.f32 %v1180, %v1367
    %v1372 = vmul.f32 %v1181, %v1367
    %v1373 = vmul.f32 %v1182, %v1367
    %v1374 = vmul.f32 %v1183, %v1367
    %v1375 = vmul.f32 %v1184, %v1367
    %v1376 = vmul.f32 %v1185, %v1367
    %v1377 = vmul.f32 %v1186, %v1367
    %v1378 = vmul.f32 %v1187, %v1367
    %v1379 = vmul.f32 %v1188, %v1367
    %v1380 = vmul.f32 %v1189, %v1367
    %v1381 = vmul.f32 %v1190, %v1367
    %v1382 = vmul.f32 %v1191, %v1367
    %v1383 = vmul.f32 %v1192, %v1367
    %v1384 = vmul.f32 %v1193, %v1367
    %1385 = vmatprep.subr.mxu0 0.0
    %1386 = vmatpush1.msra.mxu0 %v254
    %1387 = vmatprep.subr.mxu0 0.0
    %1388 = vmatpush1.msra.mxu0 %v259
    %1389 = vmatprep.subr.mxu0 0.0
    %1390 = vmatpush1.msra.mxu0 %v264
    %1391 = vmatprep.subr.mxu0 0.0
    %1392 = vmatpush1.msra.mxu0 %v269
    %1393 = vmatprep.subr.mxu0 0.0
    %1394 = vmatpush1.msra.mxu0 %v274
    %1395 = vmatprep.subr.mxu0 0.0
    %1396 = vmatpush1.msra.mxu0 %v279
    %1397 = vmatprep.subr.mxu0 0.0
    %1398 = vmatpush1.msra.mxu0 %v284
    %1399 = vmatprep.subr.mxu0 0.0
    %1400 = vmatpush1.msra.mxu0 %v289
    %1401 = vmatprep.subr.mxu0 0.0
    %1402 = vmatpush1.msra.mxu0 %v294
    %1403 = vmatprep.subr.mxu0 0.0
    %1404 = vmatpush1.msra.mxu0 %v299
    %1405 = vmatprep.subr.mxu0 0.0
    %1406 = vmatpush1.msra.mxu0 %v304
    %1407 = vmatprep.subr.mxu0 0.0
    %1408 = vmatpush1.msra.mxu0 %v309
    %1409 = vmatprep.subr.mxu0 0.0
    %1410 = vmatpush1.msra.mxu0 %v314
    %1411 = vmatprep.subr.mxu0 0.0
    %1412 = vmatpush1.msra.mxu0 %v319
    %1413 = vmatprep.subr.mxu0 0.0
    %1414 = vmatpush1.msra.mxu0 %v324
    %1415 = vmatprep.subr.mxu0 0.0
    %1416 = vmatpush1.msra.mxu0 %v329
    %1417 = vmatprep.subr.mxu0 0.0
    %1418 = vmatpush1.msra.mxu0 0.0
    %1419 = vmatprep.subr.mxu0 0.0
    %1420 = vmatpush1.msra.mxu0 0.0
    %1421 = vmatprep.subr.mxu0 0.0
    %1422 = vmatpush1.msra.mxu0 0.0
    %1423 = vmatprep.subr.mxu0 0.0
    %1424 = vmatpush1.msra.mxu0 0.0
    %1425 = vmatprep.subr.mxu0 0.0
    %1426 = vmatpush1.msra.mxu0 0.0
    %1427 = vmatprep.subr.mxu0 0.0
    %1428 = vmatpush1.msra.mxu0 0.0
    %1429 = vmatprep.subr.mxu0 0.0
    %1430 = vmatpush1.msra.mxu0 0.0
    %1431 = vmatprep.subr.mxu0 0.0
    %1432 = vmatpush1.msra.mxu0 0.0
    %1433 = vmatprep.subr.mxu0 0.0
    %1434 = vmatpush1.msra.mxu0 0.0
    %1435 = vmatprep.subr.mxu0 0.0
    %1436 = vmatpush1.msra.mxu0 0.0
    %1437 = vmatprep.subr.mxu0 0.0
    %1438 = vmatpush1.msra.mxu0 0.0
    %1439 = vmatprep.subr.mxu0 0.0
    %1440 = vmatpush1.msra.mxu0 0.0
    %1441 = vmatprep.subr.mxu0 0.0
    %1442 = vmatpush1.msra.mxu0 0.0
    %1443 = vmatprep.subr.mxu0 0.0
    %1444 = vmatpush1.msra.mxu0 0.0
    %1445 = vmatprep.subr.mxu0 0.0
    %1446 = vmatpush1.msra.mxu0 0.0
    %1447 = vmatprep.subr.mxu0 0.0
    %1448 = vmatpush1.msra.mxu0 0.0
    %1449 = vmatprep.mubr.f32.mxu0 0.0
    %1450 = vmatmul.mubr.f32.gmra.mrb[0].mxu0 %v1369
    %v1451 = vpop.f32.mrb[0].mxu0
    %v1452 = vadd.f32 0.0, %v1451
    %v1453 = vpop.f32.mrb[0].mxu0
    %1454 = vmatprep.mubr.f32.mxu0 0.0
    %1455 = vmatmul.mubr.f32.gmra.mrb[0].mxu0 %v1370
    %v1456 = vpop.f32.mrb[0].mxu0
    %v1457 = vadd.f32 0.0, %v1456
    %v1458 = vpop.f32.mrb[0].mxu0
    %1459 = vmatprep.mubr.f32.mxu0 0.0
    %1460 = vmatmul.mubr.f32.gmra.mrb[0].mxu0 %v1371
    %v1461 = vpop.f32.mrb[0].mxu0
    %v1462 = vadd.f32 0.0, %v1461
    %v1463 = vpop.f32.mrb[0].mxu0
    %1464 = vmatprep.mubr.f32.mxu0 0.0
    %1465 = vmatmul.mubr.f32.gmra.mrb[0].mxu0 %v1372
    %v1466 = vpop.f32.mrb[0].mxu0
    %v1467 = vadd.f32 0.0, %v1466
    %v1468 = vpop.f32.mrb[0].mxu0
    %1469 = vmatprep.mubr.f32.mxu0 0.0
    %1470 = vmatmul.mubr.f32.gmra.mrb[0].mxu0 %v1373
    %v1471 = vpop.f32.mrb[0].mxu0
    %v1472 = vadd.f32 0.0, %v1471
    %v1473 = vpop.f32.mrb[0].mxu0
    %1474 = vmatprep.mubr.f32.mxu0 0.0
    %1475 = vmatmul.mubr.f32.gmra.mrb[0].mxu0 %v1374
    %v1476 = vpop.f32.mrb[0].mxu0
    %v1477 = vadd.f32 0.0, %v1476
    %v1478 = vpop.f32.mrb[0].mxu0
    %1479 = vmatprep.mubr.f32.mxu0 0.0
    %1480 = vmatmul.mubr.f32.gmra.mrb[0].mxu0 %v1375
    %v1481 = vpop.f32.mrb[0].mxu0
    %v1482 = vadd.f32 0.0, %v1481
    %v1483 = vpop.f32.mrb[0].mxu0
    %1484 = vmatprep.mubr.f32.mxu0 0.0
    %1485 = vmatmul.mubr.f32.gmra.mrb[0].mxu0 %v1376
    %v1486 = vpop.f32.mrb[0].mxu0
    %v1487 = vadd.f32 0.0, %v1486
    %v1488 = vpop.f32.mrb[0].mxu0
    %1489 = vmatprep.mubr.f32.mxu0 0.0
    %1490 = vmatmul.mubr.f32.gmra.mrb[0].mxu0 %v1377
    %v1491 = vpop.f32.mrb[0].mxu0
    %v1492 = vadd.f32 0.0, %v1491
    %v1493 = vpop.f32.mrb[0].mxu0
    %1494 = vmatprep.mubr.f32.mxu0 0.0
    %1495 = vmatmul.mubr.f32.gmra.mrb[0].mxu0 %v1378
    %v1496 = vpop.f32.mrb[0].mxu0
    %v1497 = vadd.f32 0.0, %v1496
    %v1498 = vpop.f32.mrb[0].mxu0
    %1499 = vmatprep.mubr.f32.mxu0 0.0
    %1500 = vmatmul.mubr.f32.gmra.mrb[0].mxu0 %v1379
    %v1501 = vpop.f32.mrb[0].mxu0
    %v1502 = vadd.f32 0.0, %v1501
    %v1503 = vpop.f32.mrb[0].mxu0
    %1504 = vmatprep.mubr.f32.mxu0 0.0
    %1505 = vmatmul.mubr.f32.gmra.mrb[0].mxu0 %v1380
    %v1506 = vpop.f32.mrb[0].mxu0
    %v1507 = vadd.f32 0.0, %v1506
    %v1508 = vpop.f32.mrb[0].mxu0
    %1509 = vmatprep.mubr.f32.mxu0 0.0
    %1510 = vmatmul.mubr.f32.gmra.mrb[0].mxu0 %v1381
    %v1511 = vpop.f32.mrb[0].mxu0
    %v1512 = vadd.f32 0.0, %v1511
    %v1513 = vpop.f32.mrb[0].mxu0
    %1514 = vmatprep.mubr.f32.mxu0 0.0
    %1515 = vmatmul.mubr.f32.gmra.mrb[0].mxu0 %v1382
    %v1516 = vpop.f32.mrb[0].mxu0
    %v1517 = vadd.f32 0.0, %v1516
    %v1518 = vpop.f32.mrb[0].mxu0
    %1519 = vmatprep.mubr.f32.mxu0 0.0
    %1520 = vmatmul.mubr.f32.gmra.mrb[0].mxu0 %v1383
    %v1521 = vpop.f32.mrb[0].mxu0
    %v1522 = vadd.f32 0.0, %v1521
    %v1523 = vpop.f32.mrb[0].mxu0
    %1524 = vmatprep.mubr.f32.mxu0 0.0
    %1525 = vmatmul.mubr.f32.gmra.mrb[0].mxu0 %v1384
    %v1526 = vpop.f32.mrb[0].mxu0
    %v1527 = vadd.f32 0.0, %v1526
    %v1528 = vpop.f32.mrb[0].mxu0
    %1529 = vdwg.mxu0
    %1546 = vrot.lane.b32.xlu0 %v1284, 32
    %v1547 = vpop.permute.xlu0 %1546
    %1548 = vrot.lane.b32.xlu0 %v1289, 32
    %v1549 = vpop.permute.xlu0 %1548
    %1550 = vrot.lane.b32.xlu0 %v1294, 32
    %v1551 = vpop.permute.xlu0 %1550
    %1552 = vrot.lane.b32.xlu0 %v1299, 32
    %v1553 = vpop.permute.xlu0 %1552
    %1554 = vrot.lane.b32.xlu0 %v1304, 32
    %v1555 = vpop.permute.xlu0 %1554
    %1556 = vrot.lane.b32.xlu0 %v1309, 32
    %v1557 = vpop.permute.xlu0 %1556
    %1558 = vrot.lane.b32.xlu0 %v1314, 32
    %v1559 = vpop.permute.xlu0 %1558
    %1560 = vrot.lane.b32.xlu0 %v1319, 32
    %v1561 = vpop.permute.xlu0 %1560
    %1562 = vrot.lane.b32.xlu0 %v1324, 32
    %v1563 = vpop.permute.xlu0 %1562
    %1564 = vrot.lane.b32.xlu0 %v1329, 32
    %v1565 = vpop.permute.xlu0 %1564
    %1566 = vrot.lane.b32.xlu0 %v1334, 32
    %v1567 = vpop.permute.xlu0 %1566
    %1568 = vrot.lane.b32.xlu0 %v1339, 32
    %v1569 = vpop.permute.xlu0 %1568
    %1570 = vrot.lane.b32.xlu0 %v1344, 32
    %v1571 = vpop.permute.xlu0 %1570
    %1572 = vrot.lane.b32.xlu0 %v1349, 32
    %v1573 = vpop.permute.xlu0 %1572
    %1574 = vrot.lane.b32.xlu0 %v1354, 32
    %v1575 = vpop.permute.xlu0 %1574
    %1576 = vrot.lane.b32.xlu0 %v1359, 32
    %v1577 = vpop.permute.xlu0 %1576
    %1610 = vrot.lane.b32.xlu0 %v1452, 64
    %v1611 = vpop.permute.xlu0 %1610
    %1612 = vrot.lane.b32.xlu0 %v1457, 64
    %v1613 = vpop.permute.xlu0 %1612
    %1614 = vrot.lane.b32.xlu0 %v1462, 64
    %v1615 = vpop.permute.xlu0 %1614
    %1616 = vrot.lane.b32.xlu0 %v1467, 64
    %v1617 = vpop.permute.xlu0 %1616
    %1618 = vrot.lane.b32.xlu0 %v1472, 64
    %v1619 = vpop.permute.xlu0 %1618
    %1620 = vrot.lane.b32.xlu0 %v1477, 64
    %v1621 = vpop.permute.xlu0 %1620
    %1622 = vrot.lane.b32.xlu0 %v1482, 64
    %v1623 = vpop.permute.xlu0 %1622
    %1624 = vrot.lane.b32.xlu0 %v1487, 64
    %v1625 = vpop.permute.xlu0 %1624
    %1626 = vrot.lane.b32.xlu0 %v1492, 64
    %v1627 = vpop.permute.xlu0 %1626
    %1628 = vrot.lane.b32.xlu0 %v1497, 64
    %v1629 = vpop.permute.xlu0 %1628
    %1630 = vrot.lane.b32.xlu0 %v1502, 64
    %v1631 = vpop.permute.xlu0 %1630
    %1632 = vrot.lane.b32.xlu0 %v1507, 64
    %v1633 = vpop.permute.xlu0 %1632
    %1634 = vrot.lane.b32.xlu0 %v1512, 64
    %v1635 = vpop.permute.xlu0 %1634
    %1636 = vrot.lane.b32.xlu0 %v1517, 64
    %v1637 = vpop.permute.xlu0 %1636
    %1638 = vrot.lane.b32.xlu0 %v1522, 64
    %v1639 = vpop.permute.xlu0 %1638
    %1640 = vrot.lane.b32.xlu0 %v1527, 64
    %v1641 = vpop.permute.xlu0 %1640
    %v1658 = vsel %vm560, %v254, %v1547
    %v1659 = vsel %vm560, %v259, %v1549
    %v1660 = vsel %vm560, %v264, %v1551
    %v1661 = vsel %vm560, %v269, %v1553
    %v1662 = vsel %vm560, %v274, %v1555
    %v1663 = vsel %vm560, %v279, %v1557
    %v1664 = vsel %vm560, %v284, %v1559
    %v1665 = vsel %vm560, %v289, %v1561
    %v1666 = vsel %vm560, %v294, %v1563
    %v1667 = vsel %vm560, %v299, %v1565
    %v1668 = vsel %vm560, %v304, %v1567
    %v1669 = vsel %vm560, %v309, %v1569
    %v1670 = vsel %vm560, %v314, %v1571
    %v1671 = vsel %vm560, %v319, %v1573
    %v1672 = vsel %vm560, %v324, %v1575
    %v1673 = vsel %vm560, %v329, %v1577
    %vm1674 = vcmask 523264
    %v1675 = vsel %vm1674, %v1658, %v1611
    %v1676 = vsel %vm1674, %v1659, %v1613
    %v1677 = vsel %vm1674, %v1660, %v1615
    %v1678 = vsel %vm1674, %v1661, %v1617
    %v1679 = vsel %vm1674, %v1662, %v1619
    %v1680 = vsel %vm1674, %v1663, %v1621
    %v1681 = vsel %vm1674, %v1664, %v1623
    %v1682 = vsel %vm1674, %v1665, %v1625
    %v1683 = vsel %vm1674, %v1666, %v1627
    %v1684 = vsel %vm1674, %v1667, %v1629
    %v1685 = vsel %vm1674, %v1668, %v1631
    %v1686 = vsel %vm1674, %v1669, %v1633
    %v1687 = vsel %vm1674, %v1670, %v1635
    %v1688 = vsel %vm1674, %v1671, %v1637
    %v1689 = vsel %vm1674, %v1672, %v1639
    %v1690 = vsel %vm1674, %v1673, %v1641
    %v1691 = vld [vmem:[%s10] sm:$0xff]
    %v1692 = vld [vmem:[%s10 + $0x8] sm:$0xff]
    %v1693 = vld [vmem:[%s10 + $0x10] sm:$0xff]
    %v1694 = vld [vmem:[%s10 + $0x18] sm:$0xff]
    %v1695 = vld [vmem:[%s10 + $0x20] sm:$0xff]
    %v1696 = vld [vmem:[%s10 + $0x28] sm:$0xff]
    %v1697 = vld [vmem:[%s10 + $0x30] sm:$0xff]
    %v1698 = vld [vmem:[%s10 + $0x38] sm:$0xff]
    %v1699 = vld [vmem:[%s10 + $0x40] sm:$0xff]
    %v1700 = vld [vmem:[%s10 + $0x48] sm:$0xff]
    %v1701 = vld [vmem:[%s10 + $0x50] sm:$0xff]
    %v1702 = vld [vmem:[%s10 + $0x58] sm:$0xff]
    %v1703 = vld [vmem:[%s11] sm:$0x1]
    %v1705 = vlaneseq
    %v1706 = vshrl.u32 %v1705, 7
    %v1707 = vsub.s32 0, %v1706
    %v1708 = vrot.slane %v1703, %v1707
    %vm1710 = vcmask 785408
    %v1712 = vsel %vm1710, %v1675, 0
    %v1715 = vsel %vm1710, %v1676, 0
    %v1718 = vsel %vm1710, %v1677, 0
    %v1721 = vsel %vm1710, %v1678, 0
    %v1724 = vsel %vm1710, %v1679, 0
    %v1727 = vsel %vm1710, %v1680, 0
    %v1730 = vsel %vm1710, %v1681, 0
    %v1733 = vsel %vm1710, %v1682, 0
    %v1736 = vsel %vm1710, %v1683, 0
    %v1739 = vsel %vm1710, %v1684, 0
    %v1742 = vsel %vm1710, %v1685, 0
    %v1745 = vsel %vm1710, %v1686, 0
    %v1748 = vsel %vm1710, %v1687, 0
    %v1751 = vsel %vm1710, %v1688, 0
    %v1754 = vsel %vm1710, %v1689, 0
    %v1757 = vsel %vm1710, %v1690, 0
    %1759 = vmatprep.subr.mxu0 0.0
    %1760 = vmatpush1.msra.mxu0 %v1691
    %1761 = vmatprep.subr.mxu0 0.0
    %1762 = vmatpush1.msra.mxu0 %v1692
    %1763 = vmatprep.subr.mxu0 0.0
    %1764 = vmatpush1.msra.mxu0 %v1693
    %1765 = vmatprep.subr.mxu0 0.0
    %1766 = vmatpush1.msra.mxu0 %v1694
    %1767 = vmatprep.subr.mxu0 0.0
    %1768 = vmatpush1.msra.mxu0 %v1695
    %1769 = vmatprep.subr.mxu0 0.0
    %1770 = vmatpush1.msra.mxu0 %v1696
    %1771 = vmatprep.subr.mxu0 0.0
    %1772 = vmatpush1.msra.mxu0 %v1697
    %1773 = vmatprep.subr.mxu0 0.0
    %1774 = vmatpush1.msra.mxu0 %v1698
    %1775 = vmatprep.subr.mxu0 0.0
    %1776 = vmatpush1.msra.mxu0 %v1699
    %1777 = vmatprep.subr.mxu0 0.0
    %1778 = vmatpush1.msra.mxu0 %v1700
    %1779 = vmatprep.subr.mxu0 0.0
    %1780 = vmatpush1.msra.mxu0 %v1701
    %1781 = vmatprep.subr.mxu0 0.0
    %1782 = vmatpush1.msra.mxu0 %v1702
    %1783 = vmatprep.subr.mxu0 0.0
    %1784 = vmatpush1.msra.mxu0 0.0
    %1785 = vmatprep.subr.mxu0 0.0
    %1786 = vmatpush1.msra.mxu0 0.0
    %1787 = vmatprep.subr.mxu0 0.0
    %1788 = vmatpush1.msra.mxu0 0.0
    %1789 = vmatprep.subr.mxu0 0.0
    %1790 = vmatpush1.msra.mxu0 0.0
    %1791 = vmatprep.subr.mxu0 0.0
    %1792 = vmatpush1.msra.mxu0 0.0
    %1793 = vmatprep.subr.mxu0 0.0
    %1794 = vmatpush1.msra.mxu0 0.0
    %1795 = vmatprep.subr.mxu0 0.0
    %1796 = vmatpush1.msra.mxu0 0.0
    %1797 = vmatprep.subr.mxu0 0.0
    %1798 = vmatpush1.msra.mxu0 0.0
    %1799 = vmatprep.subr.mxu0 0.0
    %1800 = vmatpush1.msra.mxu0 0.0
    %1801 = vmatprep.subr.mxu0 0.0
    %1802 = vmatpush1.msra.mxu0 0.0
    %1803 = vmatprep.subr.mxu0 0.0
    %1804 = vmatpush1.msra.mxu0 0.0
    %1805 = vmatprep.subr.mxu0 0.0
    %1806 = vmatpush1.msra.mxu0 0.0
    %1807 = vmatprep.subr.mxu0 0.0
    %1808 = vmatpush1.msra.mxu0 0.0
    %1809 = vmatprep.subr.mxu0 0.0
    %1810 = vmatpush1.msra.mxu0 0.0
    %1811 = vmatprep.subr.mxu0 0.0
    %1812 = vmatpush1.msra.mxu0 0.0
    %1813 = vmatprep.subr.mxu0 0.0
    %1814 = vmatpush1.msra.mxu0 0.0
    %1815 = vmatprep.subr.mxu0 0.0
    %1816 = vmatpush1.msra.mxu0 0.0
    %1817 = vmatprep.subr.mxu0 0.0
    %1818 = vmatpush1.msra.mxu0 0.0
    %1819 = vmatprep.subr.mxu0 0.0
    %1820 = vmatpush1.msra.mxu0 0.0
    %1821 = vmatprep.subr.mxu0 0.0
    %1822 = vmatpush1.msra.mxu0 0.0
    %1823 = vmatprep.mubr.f32.mxu0 0.0
    %1824 = vmatmul.mubr.f32.gmra.mrb[0].mxu0 %v1712
    %v1825 = vpop.f32.mrb[0].mxu0
    %v1826 = vadd.f32 %v1708, %v1825
    %v1827 = vpop.f32.mrb[0].mxu0
    %1828 = vmatprep.mubr.f32.mxu0 0.0
    %1829 = vmatmul.mubr.f32.gmra.mrb[0].mxu0 %v1715
    %v1830 = vpop.f32.mrb[0].mxu0
    %v1831 = vadd.f32 %v1708, %v1830
    %v1832 = vpop.f32.mrb[0].mxu0
    %1833 = vmatprep.mubr.f32.mxu0 0.0
    %1834 = vmatmul.mubr.f32.gmra.mrb[0].mxu0 %v1718
    %v1835 = vpop.f32.mrb[0].mxu0
    %v1836 = vadd.f32 %v1708, %v1835
    %v1837 = vpop.f32.mrb[0].mxu0
    %1838 = vmatprep.mubr.f32.mxu0 0.0
    %1839 = vmatmul.mubr.f32.gmra.mrb[0].mxu0 %v1721
    %v1840 = vpop.f32.mrb[0].mxu0
    %v1841 = vadd.f32 %v1708, %v1840
    %v1842 = vpop.f32.mrb[0].mxu0
    %1843 = vmatprep.mubr.f32.mxu0 0.0
    %1844 = vmatmul.mubr.f32.gmra.mrb[0].mxu0 %v1724
    %v1845 = vpop.f32.mrb[0].mxu0
    %v1846 = vadd.f32 %v1708, %v1845
    %v1847 = vpop.f32.mrb[0].mxu0
    %1848 = vmatprep.mubr.f32.mxu0 0.0
    %1849 = vmatmul.mubr.f32.gmra.mrb[0].mxu0 %v1727
    %v1850 = vpop.f32.mrb[0].mxu0
    %v1851 = vadd.f32 %v1708, %v1850
    %v1852 = vpop.f32.mrb[0].mxu0
    %1853 = vmatprep.mubr.f32.mxu0 0.0
    %1854 = vmatmul.mubr.f32.gmra.mrb[0].mxu0 %v1730
    %v1855 = vpop.f32.mrb[0].mxu0
    %v1856 = vadd.f32 %v1708, %v1855
    %v1857 = vpop.f32.mrb[0].mxu0
    %1858 = vmatprep.mubr.f32.mxu0 0.0
    %1859 = vmatmul.mubr.f32.gmra.mrb[0].mxu0 %v1733
    %v1860 = vpop.f32.mrb[0].mxu0
    %v1861 = vadd.f32 %v1708, %v1860
    %v1862 = vpop.f32.mrb[0].mxu0
    %1863 = vmatprep.mubr.f32.mxu0 0.0
    %1864 = vmatmul.mubr.f32.gmra.mrb[0].mxu0 %v1736
    %v1865 = vpop.f32.mrb[0].mxu0
    %v1866 = vadd.f32 %v1708, %v1865
    %v1867 = vpop.f32.mrb[0].mxu0
    %1868 = vmatprep.mubr.f32.mxu0 0.0
    %1869 = vmatmul.mubr.f32.gmra.mrb[0].mxu0 %v1739
    %v1870 = vpop.f32.mrb[0].mxu0
    %v1871 = vadd.f32 %v1708, %v1870
    %v1872 = vpop.f32.mrb[0].mxu0
    %1873 = vmatprep.mubr.f32.mxu0 0.0
    %1874 = vmatmul.mubr.f32.gmra.mrb[0].mxu0 %v1742
    %v1875 = vpop.f32.mrb[0].mxu0
    %v1876 = vadd.f32 %v1708, %v1875
    %v1877 = vpop.f32.mrb[0].mxu0
    %1878 = vmatprep.mubr.f32.mxu0 0.0
    %1879 = vmatmul.mubr.f32.gmra.mrb[0].mxu0 %v1745
    %v1880 = vpop.f32.mrb[0].mxu0
    %v1881 = vadd.f32 %v1708, %v1880
    %v1882 = vpop.f32.mrb[0].mxu0
    %1883 = vmatprep.mubr.f32.mxu0 0.0
    %1884 = vmatmul.mubr.f32.gmra.mrb[0].mxu0 %v1748
    %v1885 = vpop.f32.mrb[0].mxu0
    %v1886 = vadd.f32 %v1708, %v1885
    %v1887 = vpop.f32.mrb[0].mxu0
    %1888 = vmatprep.mubr.f32.mxu0 0.0
    %1889 = vmatmul.mubr.f32.gmra.mrb[0].mxu0 %v1751
    %v1890 = vpop.f32.mrb[0].mxu0
    %v1891 = vadd.f32 %v1708, %v1890
    %v1892 = vpop.f32.mrb[0].mxu0
    %1893 = vmatprep.mubr.f32.mxu0 0.0
    %1894 = vmatmul.mubr.f32.gmra.mrb[0].mxu0 %v1754
    %v1895 = vpop.f32.mrb[0].mxu0
    %v1896 = vadd.f32 %v1708, %v1895
    %v1897 = vpop.f32.mrb[0].mxu0
    %1898 = vmatprep.mubr.f32.mxu0 0.0
    %1899 = vmatmul.mubr.f32.gmra.mrb[0].mxu0 %v1757
    %v1900 = vpop.f32.mrb[0].mxu0
    %v1901 = vadd.f32 %v1708, %v1900
    %v1902 = vpop.f32.mrb[0].mxu0
    %1903 = vdwg.mxu0
    %v1904 = vmul.f32 %v1826, 0.05
    %v1905 = vmul.f32 %v1831, 0.05
    %v1906 = vmul.f32 %v1836, 0.05
    %v1907 = vmul.f32 %v1841, 0.05
    %v1908 = vmul.f32 %v1846, 0.05
    %v1909 = vmul.f32 %v1851, 0.05
    %v1910 = vmul.f32 %v1856, 0.05
    %v1911 = vmul.f32 %v1861, 0.05
    %v1912 = vmul.f32 %v1866, 0.05
    %v1913 = vmul.f32 %v1871, 0.05
    %v1914 = vmul.f32 %v1876, 0.05
    %v1915 = vmul.f32 %v1881, 0.05
    %v1916 = vmul.f32 %v1886, 0.05
    %v1917 = vmul.f32 %v1891, 0.05
    %v1918 = vmul.f32 %v1896, 0.05
    %v1919 = vmul.f32 %v1901, 0.05
    %v1920 = vxor.u32 %v1904, 2147483648
    %v1921 = vxor.u32 %v1905, 2147483648
    %v1922 = vxor.u32 %v1906, 2147483648
    %v1923 = vxor.u32 %v1907, 2147483648
    %v1924 = vxor.u32 %v1908, 2147483648
    %v1925 = vxor.u32 %v1909, 2147483648
    %v1926 = vxor.u32 %v1910, 2147483648
    %v1927 = vxor.u32 %v1911, 2147483648
    %v1928 = vxor.u32 %v1912, 2147483648
    %v1929 = vxor.u32 %v1913, 2147483648
    %v1930 = vxor.u32 %v1914, 2147483648
    %v1931 = vxor.u32 %v1915, 2147483648
    %v1932 = vxor.u32 %v1916, 2147483648
    %v1933 = vxor.u32 %v1917, 2147483648
    %v1934 = vxor.u32 %v1918, 2147483648
    %v1935 = vxor.u32 %v1919, 2147483648
    %v1936 = vmul.f32 %v1920, 1.442695
    %v1937 = vpow.pop %v1936
    %v1938 = vmul.f32 %v1921, 1.442695
    %v1939 = vpow.pop %v1938
    %v1940 = vmul.f32 %v1922, 1.442695
    %v1941 = vpow.pop %v1940
    %v1942 = vmul.f32 %v1923, 1.442695
    %v1943 = vpow.pop %v1942
    %v1944 = vmul.f32 %v1924, 1.442695
    %v1945 = vpow.pop %v1944
    %v1946 = vmul.f32 %v1925, 1.442695
    %v1947 = vpow.pop %v1946
    %v1948 = vmul.f32 %v1926, 1.442695
    %v1949 = vpow.pop %v1948
    %v1950 = vmul.f32 %v1927, 1.442695
    %v1951 = vpow.pop %v1950
    %v1952 = vmul.f32 %v1928, 1.442695
    %v1953 = vpow.pop %v1952
    %v1954 = vmul.f32 %v1929, 1.442695
    %v1955 = vpow.pop %v1954
    %v1956 = vmul.f32 %v1930, 1.442695
    %v1957 = vpow.pop %v1956
    %v1958 = vmul.f32 %v1931, 1.442695
    %v1959 = vpow.pop %v1958
    %v1960 = vmul.f32 %v1932, 1.442695
    %v1961 = vpow.pop %v1960
    %v1962 = vmul.f32 %v1933, 1.442695
    %v1963 = vpow.pop %v1962
    %v1964 = vmul.f32 %v1934, 1.442695
    %v1965 = vpow.pop %v1964
    %v1966 = vmul.f32 %v1935, 1.442695
    %v1967 = vpow.pop %v1966
    %v1968 = vadd.f32 %v1937, 1.0
    %v1969 = vadd.f32 %v1939, 1.0
    %v1970 = vadd.f32 %v1941, 1.0
    %v1971 = vadd.f32 %v1943, 1.0
    %v1972 = vadd.f32 %v1945, 1.0
    %v1973 = vadd.f32 %v1947, 1.0
    %v1974 = vadd.f32 %v1949, 1.0
    %v1975 = vadd.f32 %v1951, 1.0
    %v1976 = vadd.f32 %v1953, 1.0
    %v1977 = vadd.f32 %v1955, 1.0
    %v1978 = vadd.f32 %v1957, 1.0
    %v1979 = vadd.f32 %v1959, 1.0
    %v1980 = vadd.f32 %v1961, 1.0
    %v1981 = vadd.f32 %v1963, 1.0
    %v1982 = vadd.f32 %v1965, 1.0
    %v1983 = vadd.f32 %v1967, 1.0
    %v1984 = vrcp.pop %v1968
    %v1985 = vmul.f32 1.0, %v1984
    %v1986 = vrcp.pop %v1969
    %v1987 = vmul.f32 1.0, %v1986
    %v1988 = vrcp.pop %v1970
    %v1989 = vmul.f32 1.0, %v1988
    %v1990 = vrcp.pop %v1971
    %v1991 = vmul.f32 1.0, %v1990
    %v1992 = vrcp.pop %v1972
    %v1993 = vmul.f32 1.0, %v1992
    %v1994 = vrcp.pop %v1973
    %v1995 = vmul.f32 1.0, %v1994
    %v1996 = vrcp.pop %v1974
    %v1997 = vmul.f32 1.0, %v1996
    %v1998 = vrcp.pop %v1975
    %v1999 = vmul.f32 1.0, %v1998
    %v2000 = vrcp.pop %v1976
    %v2001 = vmul.f32 1.0, %v2000
    %v2002 = vrcp.pop %v1977
    %v2003 = vmul.f32 1.0, %v2002
    %v2004 = vrcp.pop %v1978
    %v2005 = vmul.f32 1.0, %v2004
    %v2006 = vrcp.pop %v1979
    %v2007 = vmul.f32 1.0, %v2006
    %v2008 = vrcp.pop %v1980
    %v2009 = vmul.f32 1.0, %v2008
    %v2010 = vrcp.pop %v1981
    %v2011 = vmul.f32 1.0, %v2010
    %v2012 = vrcp.pop %v1982
    %v2013 = vmul.f32 1.0, %v2012
    %v2014 = vrcp.pop %v1983
    %v2015 = vmul.f32 1.0, %v2014
    %v2016 = vld [vmem:[%s3] sm:$0xff]
    %v2017 = vld [vmem:[%s3 + $0x8] sm:$0xff]
    %v2018 = vld [vmem:[%s3 + $0x10] sm:$0xff]
    %v2019 = vld [vmem:[%s3 + $0x18] sm:$0xff]
    %v2020 = vld [vmem:[%s3 + $0x20] sm:$0xff]
    %v2021 = vld [vmem:[%s3 + $0x28] sm:$0xff]
    %v2022 = vld [vmem:[%s3 + $0x30] sm:$0xff]
    %v2023 = vld [vmem:[%s3 + $0x38] sm:$0xff]
    %v2024 = vld [vmem:[%s3 + $0x40] sm:$0xff]
    %v2025 = vld [vmem:[%s3 + $0x48] sm:$0xff]
    %v2026 = vld [vmem:[%s3 + $0x50] sm:$0xff]
    %v2027 = vld [vmem:[%s3 + $0x58] sm:$0xff]
    %v2028 = vld [vmem:[%s3 + $0x60] sm:$0xff]
    %v2029 = vld [vmem:[%s3 + $0x68] sm:$0xff]
    %v2030 = vld [vmem:[%s3 + $0x70] sm:$0xff]
    %v2031 = vld [vmem:[%s3 + $0x78] sm:$0xff]
    %v2032 = vmul.f32 %v1985, %v1096
    %v2033 = vmul.f32 %v1987, %v1097
    %v2034 = vmul.f32 %v1989, %v1098
    %v2035 = vmul.f32 %v1991, %v1099
    %v2036 = vmul.f32 %v1993, %v1100
    %v2037 = vmul.f32 %v1995, %v1101
    %v2038 = vmul.f32 %v1997, %v1102
    %v2039 = vmul.f32 %v1999, %v1103
    %v2040 = vmul.f32 %v2001, %v1104
    %v2041 = vmul.f32 %v2003, %v1105
    %v2042 = vmul.f32 %v2005, %v1106
    %v2043 = vmul.f32 %v2007, %v1107
    %v2044 = vmul.f32 %v2009, %v1108
    %v2045 = vmul.f32 %v2011, %v1109
    %v2046 = vmul.f32 %v2013, %v1110
    %v2047 = vmul.f32 %v2015, %v1111
    %v2048 = vsub.f32 1.0, %v1985
    %v2049 = vsub.f32 1.0, %v1987
    %v2050 = vsub.f32 1.0, %v1989
    %v2051 = vsub.f32 1.0, %v1991
    %v2052 = vsub.f32 1.0, %v1993
    %v2053 = vsub.f32 1.0, %v1995
    %v2054 = vsub.f32 1.0, %v1997
    %v2055 = vsub.f32 1.0, %v1999
    %v2056 = vsub.f32 1.0, %v2001
    %v2057 = vsub.f32 1.0, %v2003
    %v2058 = vsub.f32 1.0, %v2005
    %v2059 = vsub.f32 1.0, %v2007
    %v2060 = vsub.f32 1.0, %v2009
    %v2061 = vsub.f32 1.0, %v2011
    %v2062 = vsub.f32 1.0, %v2013
    %v2063 = vsub.f32 1.0, %v2015
    %2080 = vrot.lane.b32.xlu0 %v1826, 80
    %v2081 = vpop.permute.xlu0 %2080
    %2082 = vrot.lane.b32.xlu0 %v1831, 80
    %v2083 = vpop.permute.xlu0 %2082
    %2084 = vrot.lane.b32.xlu0 %v1836, 80
    %v2085 = vpop.permute.xlu0 %2084
    %2086 = vrot.lane.b32.xlu0 %v1841, 80
    %v2087 = vpop.permute.xlu0 %2086
    %2088 = vrot.lane.b32.xlu0 %v1846, 80
    %v2089 = vpop.permute.xlu0 %2088
    %2090 = vrot.lane.b32.xlu0 %v1851, 80
    %v2091 = vpop.permute.xlu0 %2090
    %2092 = vrot.lane.b32.xlu0 %v1856, 80
    %v2093 = vpop.permute.xlu0 %2092
    %2094 = vrot.lane.b32.xlu0 %v1861, 80
    %v2095 = vpop.permute.xlu0 %2094
    %2096 = vrot.lane.b32.xlu0 %v1866, 80
    %v2097 = vpop.permute.xlu0 %2096
    %2098 = vrot.lane.b32.xlu0 %v1871, 80
    %v2099 = vpop.permute.xlu0 %2098
    %2100 = vrot.lane.b32.xlu0 %v1876, 80
    %v2101 = vpop.permute.xlu0 %2100
    %2102 = vrot.lane.b32.xlu0 %v1881, 80
    %v2103 = vpop.permute.xlu0 %2102
    %2104 = vrot.lane.b32.xlu0 %v1886, 80
    %v2105 = vpop.permute.xlu0 %2104
    %2106 = vrot.lane.b32.xlu0 %v1891, 80
    %v2107 = vpop.permute.xlu0 %2106
    %2108 = vrot.lane.b32.xlu0 %v1896, 80
    %v2109 = vpop.permute.xlu0 %2108
    %2110 = vrot.lane.b32.xlu0 %v1901, 80
    %v2111 = vpop.permute.xlu0 %2110
    %v2128 = vmul.f32 %v2048, %v2081
    %v2129 = vmul.f32 %v2049, %v2083
    %v2130 = vmul.f32 %v2050, %v2085
    %v2131 = vmul.f32 %v2051, %v2087
    %v2132 = vmul.f32 %v2052, %v2089
    %v2133 = vmul.f32 %v2053, %v2091
    %v2134 = vmul.f32 %v2054, %v2093
    %v2135 = vmul.f32 %v2055, %v2095
    %v2136 = vmul.f32 %v2056, %v2097
    %v2137 = vmul.f32 %v2057, %v2099
    %v2138 = vmul.f32 %v2058, %v2101
    %v2139 = vmul.f32 %v2059, %v2103
    %v2140 = vmul.f32 %v2060, %v2105
    %v2141 = vmul.f32 %v2061, %v2107
    %v2142 = vmul.f32 %v2062, %v2109
    %v2143 = vmul.f32 %v2063, %v2111
    %v2144 = vadd.f32 %v2032, %v2128
    %v2145 = vadd.f32 %v2033, %v2129
    %v2146 = vadd.f32 %v2034, %v2130
    %v2147 = vadd.f32 %v2035, %v2131
    %v2148 = vadd.f32 %v2036, %v2132
    %v2149 = vadd.f32 %v2037, %v2133
    %v2150 = vadd.f32 %v2038, %v2134
    %v2151 = vadd.f32 %v2039, %v2135
    %v2152 = vadd.f32 %v2040, %v2136
    %v2153 = vadd.f32 %v2041, %v2137
    %v2154 = vadd.f32 %v2042, %v2138
    %v2155 = vadd.f32 %v2043, %v2139
    %v2156 = vadd.f32 %v2044, %v2140
    %v2157 = vadd.f32 %v2045, %v2141
    %v2158 = vadd.f32 %v2046, %v2142
    %v2159 = vadd.f32 %v2047, %v2143
    %2161 = vset.pattern.permute.xlu0 0
    %2162 = vperm.xlu0 %2161, %v2016
    %v2163 = vpop.permute.xlu0 %2162
    %2166 = vset.pattern.permute.xlu0 0
    %2167 = vperm.xlu0 %2166, %v2017
    %v2168 = vpop.permute.xlu0 %2167
    %2171 = vset.pattern.permute.xlu0 0
    %2172 = vperm.xlu0 %2171, %v2018
    %v2173 = vpop.permute.xlu0 %2172
    %2176 = vset.pattern.permute.xlu0 0
    %2177 = vperm.xlu0 %2176, %v2019
    %v2178 = vpop.permute.xlu0 %2177
    %2181 = vset.pattern.permute.xlu0 0
    %2182 = vperm.xlu0 %2181, %v2020
    %v2183 = vpop.permute.xlu0 %2182
    %2186 = vset.pattern.permute.xlu0 0
    %2187 = vperm.xlu0 %2186, %v2021
    %v2188 = vpop.permute.xlu0 %2187
    %2191 = vset.pattern.permute.xlu0 0
    %2192 = vperm.xlu0 %2191, %v2022
    %v2193 = vpop.permute.xlu0 %2192
    %2196 = vset.pattern.permute.xlu0 0
    %2197 = vperm.xlu0 %2196, %v2023
    %v2198 = vpop.permute.xlu0 %2197
    %2201 = vset.pattern.permute.xlu0 0
    %2202 = vperm.xlu0 %2201, %v2024
    %v2203 = vpop.permute.xlu0 %2202
    %2206 = vset.pattern.permute.xlu0 0
    %2207 = vperm.xlu0 %2206, %v2025
    %v2208 = vpop.permute.xlu0 %2207
    %2211 = vset.pattern.permute.xlu0 0
    %2212 = vperm.xlu0 %2211, %v2026
    %v2213 = vpop.permute.xlu0 %2212
    %2216 = vset.pattern.permute.xlu0 0
    %2217 = vperm.xlu0 %2216, %v2027
    %v2218 = vpop.permute.xlu0 %2217
    %2221 = vset.pattern.permute.xlu0 0
    %2222 = vperm.xlu0 %2221, %v2028
    %v2223 = vpop.permute.xlu0 %2222
    %2226 = vset.pattern.permute.xlu0 0
    %2227 = vperm.xlu0 %2226, %v2029
    %v2228 = vpop.permute.xlu0 %2227
    %2231 = vset.pattern.permute.xlu0 0
    %2232 = vperm.xlu0 %2231, %v2030
    %v2233 = vpop.permute.xlu0 %2232
    %2236 = vset.pattern.permute.xlu0 0
    %2237 = vperm.xlu0 %2236, %v2031
    %v2238 = vpop.permute.xlu0 %2237
    %v2240 = vmul.f32 %v2144, %v2163
    %v2241 = vmul.f32 %v2145, %v2168
    %v2242 = vmul.f32 %v2146, %v2173
    %v2243 = vmul.f32 %v2147, %v2178
    %v2244 = vmul.f32 %v2148, %v2183
    %v2245 = vmul.f32 %v2149, %v2188
    %v2246 = vmul.f32 %v2150, %v2193
    %v2247 = vmul.f32 %v2151, %v2198
    %v2248 = vmul.f32 %v2152, %v2203
    %v2249 = vmul.f32 %v2153, %v2208
    %v2250 = vmul.f32 %v2154, %v2213
    %v2251 = vmul.f32 %v2155, %v2218
    %v2252 = vmul.f32 %v2156, %v2223
    %v2253 = vmul.f32 %v2157, %v2228
    %v2254 = vmul.f32 %v2158, %v2233
    %v2255 = vmul.f32 %v2159, %v2238
    %v2256 = vand.u32 %v1113, 15
    %v2257 = vand.u32 %v1114, 15
    %v2258 = vand.u32 %v1115, 15
    %v2259 = vand.u32 %v1116, 15
    %v2260 = vand.u32 %v1117, 15
    %v2261 = vand.u32 %v1118, 15
    %v2262 = vand.u32 %v1119, 15
    %v2263 = vand.u32 %v1120, 15
    %v2264 = vand.u32 %v1121, 15
    %v2265 = vand.u32 %v1122, 15
    %v2266 = vand.u32 %v1123, 15
    %v2267 = vand.u32 %v1124, 15
    %v2268 = vand.u32 %v1125, 15
    %v2269 = vand.u32 %v1126, 15
    %v2270 = vand.u32 %v1127, 15
    %v2271 = vand.u32 %v1128, 15
    %vm2272 = vcmp.ge.s32.totalorder %v2256, 1
    %vm2273 = vcmp.ge.s32.totalorder %v2257, 1
    %vm2274 = vcmp.ge.s32.totalorder %v2258, 1
    %vm2275 = vcmp.ge.s32.totalorder %v2259, 1
    %vm2276 = vcmp.ge.s32.totalorder %v2260, 1
    %vm2277 = vcmp.ge.s32.totalorder %v2261, 1
    %vm2278 = vcmp.ge.s32.totalorder %v2262, 1
    %vm2279 = vcmp.ge.s32.totalorder %v2263, 1
    %vm2280 = vcmp.ge.s32.totalorder %v2264, 1
    %vm2281 = vcmp.ge.s32.totalorder %v2265, 1
    %vm2282 = vcmp.ge.s32.totalorder %v2266, 1
    %vm2283 = vcmp.ge.s32.totalorder %v2267, 1
    %vm2284 = vcmp.ge.s32.totalorder %v2268, 1
    %vm2285 = vcmp.ge.s32.totalorder %v2269, 1
    %vm2286 = vcmp.ge.s32.totalorder %v2270, 1
    %vm2287 = vcmp.ge.s32.totalorder %v2271, 1
    %v2288 = vsel %vm2272, 1, 0
    %v2289 = vsel %vm2273, 1, 0
    %v2290 = vsel %vm2274, 1, 0
    %v2291 = vsel %vm2275, 1, 0
    %v2292 = vsel %vm2276, 1, 0
    %v2293 = vsel %vm2277, 1, 0
    %v2294 = vsel %vm2278, 1, 0
    %v2295 = vsel %vm2279, 1, 0
    %v2296 = vsel %vm2280, 1, 0
    %v2297 = vsel %vm2281, 1, 0
    %v2298 = vsel %vm2282, 1, 0
    %v2299 = vsel %vm2283, 1, 0
    %v2300 = vsel %vm2284, 1, 0
    %v2301 = vsel %vm2285, 1, 0
    %v2302 = vsel %vm2286, 1, 0
    %v2303 = vsel %vm2287, 1, 0
    %v2304 = vcvt.s32.f32 %v2288
    %v2305 = vcvt.s32.f32 %v2289
    %v2306 = vcvt.s32.f32 %v2290
    %v2307 = vcvt.s32.f32 %v2291
    %v2308 = vcvt.s32.f32 %v2292
    %v2309 = vcvt.s32.f32 %v2293
    %v2310 = vcvt.s32.f32 %v2294
    %v2311 = vcvt.s32.f32 %v2295
    %v2312 = vcvt.s32.f32 %v2296
    %v2313 = vcvt.s32.f32 %v2297
    %v2314 = vcvt.s32.f32 %v2298
    %v2315 = vcvt.s32.f32 %v2299
    %v2316 = vcvt.s32.f32 %v2300
    %v2317 = vcvt.s32.f32 %v2301
    %v2318 = vcvt.s32.f32 %v2302
    %v2319 = vcvt.s32.f32 %v2303
    %vm2320 = vcmp.le.s32.totalorder %v2256, 14
    %vm2321 = vcmp.le.s32.totalorder %v2257, 14
    %vm2322 = vcmp.le.s32.totalorder %v2258, 14
    %vm2323 = vcmp.le.s32.totalorder %v2259, 14
    %vm2324 = vcmp.le.s32.totalorder %v2260, 14
    %vm2325 = vcmp.le.s32.totalorder %v2261, 14
    %vm2326 = vcmp.le.s32.totalorder %v2262, 14
    %vm2327 = vcmp.le.s32.totalorder %v2263, 14
    %vm2328 = vcmp.le.s32.totalorder %v2264, 14
    %vm2329 = vcmp.le.s32.totalorder %v2265, 14
    %vm2330 = vcmp.le.s32.totalorder %v2266, 14
    %vm2331 = vcmp.le.s32.totalorder %v2267, 14
    %vm2332 = vcmp.le.s32.totalorder %v2268, 14
    %vm2333 = vcmp.le.s32.totalorder %v2269, 14
    %vm2334 = vcmp.le.s32.totalorder %v2270, 14
    %vm2335 = vcmp.le.s32.totalorder %v2271, 14
    %v2336 = vsel %vm2320, 1, 0
    %v2337 = vsel %vm2321, 1, 0
    %v2338 = vsel %vm2322, 1, 0
    %v2339 = vsel %vm2323, 1, 0
    %v2340 = vsel %vm2324, 1, 0
    %v2341 = vsel %vm2325, 1, 0
    %v2342 = vsel %vm2326, 1, 0
    %v2343 = vsel %vm2327, 1, 0
    %v2344 = vsel %vm2328, 1, 0
    %v2345 = vsel %vm2329, 1, 0
    %v2346 = vsel %vm2330, 1, 0
    %v2347 = vsel %vm2331, 1, 0
    %v2348 = vsel %vm2332, 1, 0
    %v2349 = vsel %vm2333, 1, 0
    %v2350 = vsel %vm2334, 1, 0
    %v2351 = vsel %vm2335, 1, 0
    %v2352 = vcvt.s32.f32 %v2336
    %v2353 = vcvt.s32.f32 %v2337
    %v2354 = vcvt.s32.f32 %v2338
    %v2355 = vcvt.s32.f32 %v2339
    %v2356 = vcvt.s32.f32 %v2340
    %v2357 = vcvt.s32.f32 %v2341
    %v2358 = vcvt.s32.f32 %v2342
    %v2359 = vcvt.s32.f32 %v2343
    %v2360 = vcvt.s32.f32 %v2344
    %v2361 = vcvt.s32.f32 %v2345
    %v2362 = vcvt.s32.f32 %v2346
    %v2363 = vcvt.s32.f32 %v2347
    %v2364 = vcvt.s32.f32 %v2348
    %v2365 = vcvt.s32.f32 %v2349
    %v2366 = vcvt.s32.f32 %v2350
    %v2367 = vcvt.s32.f32 %v2351
    %v2368 = vrot.slane %v2240, 7
    %v2369 = vrot.slane %v2241, 7
    %v2370 = vrot.slane %v2242, 7
    %v2371 = vrot.slane %v2243, 7
    %v2372 = vrot.slane %v2244, 7
    %v2373 = vrot.slane %v2245, 7
    %v2374 = vrot.slane %v2246, 7
    %v2375 = vrot.slane %v2247, 7
    %v2376 = vrot.slane %v2248, 7
    %v2377 = vrot.slane %v2249, 7
    %v2378 = vrot.slane %v2250, 7
    %v2379 = vrot.slane %v2251, 7
    %v2380 = vrot.slane %v2252, 7
    %v2381 = vrot.slane %v2253, 7
    %v2382 = vrot.slane %v2254, 7
    %v2383 = vrot.slane %v2255, 7
    %vm2384 = vcmp.lt.s32.totalorder %v1113, 1
    %v2385 = vsel %vm2384, %v2382, %v2383
    %v2386 = vsel %vm2384, %v2381, %v2382
    %v2387 = vsel %vm2384, %v2380, %v2381
    %v2388 = vsel %vm2384, %v2379, %v2380
    %v2389 = vsel %vm2384, %v2378, %v2379
    %v2390 = vsel %vm2384, %v2377, %v2378
    %v2391 = vsel %vm2384, %v2376, %v2377
    %v2392 = vsel %vm2384, %v2375, %v2376
    %v2393 = vsel %vm2384, %v2374, %v2375
    %v2394 = vsel %vm2384, %v2373, %v2374
    %v2395 = vsel %vm2384, %v2372, %v2373
    %v2396 = vsel %vm2384, %v2371, %v2372
    %v2397 = vsel %vm2384, %v2370, %v2371
    %v2398 = vsel %vm2384, %v2369, %v2370
    %v2399 = vsel %vm2384, %v2368, %v2369
    %v2400 = vsel %vm2384, %v2383, %v2368
    %v2401 = vmul.f32 %v2400, %v2304
    %v2402 = vmul.f32 %v2399, %v2305
    %v2403 = vmul.f32 %v2398, %v2306
    %v2404 = vmul.f32 %v2397, %v2307
    %v2405 = vmul.f32 %v2396, %v2308
    %v2406 = vmul.f32 %v2395, %v2309
    %v2407 = vmul.f32 %v2394, %v2310
    %v2408 = vmul.f32 %v2393, %v2311
    %v2409 = vmul.f32 %v2392, %v2312
    %v2410 = vmul.f32 %v2391, %v2313
    %v2411 = vmul.f32 %v2390, %v2314
    %v2412 = vmul.f32 %v2389, %v2315
    %v2413 = vmul.f32 %v2388, %v2316
    %v2414 = vmul.f32 %v2387, %v2317
    %v2415 = vmul.f32 %v2386, %v2318
    %v2416 = vmul.f32 %v2385, %v2319
    %v2417 = vrot.slane %v2240, 1
    %v2418 = vrot.slane %v2241, 1
    %v2419 = vrot.slane %v2242, 1
    %v2420 = vrot.slane %v2243, 1
    %v2421 = vrot.slane %v2244, 1
    %v2422 = vrot.slane %v2245, 1
    %v2423 = vrot.slane %v2246, 1
    %v2424 = vrot.slane %v2247, 1
    %v2425 = vrot.slane %v2248, 1
    %v2426 = vrot.slane %v2249, 1
    %v2427 = vrot.slane %v2250, 1
    %v2428 = vrot.slane %v2251, 1
    %v2429 = vrot.slane %v2252, 1
    %v2430 = vrot.slane %v2253, 1
    %v2431 = vrot.slane %v2254, 1
    %v2432 = vrot.slane %v2255, 1
    %vm2433 = vcmp.lt.s32.totalorder %v1113, 7
    %v2434 = vsel %vm2433, %v2431, %v2432
    %v2435 = vsel %vm2433, %v2430, %v2431
    %v2436 = vsel %vm2433, %v2429, %v2430
    %v2437 = vsel %vm2433, %v2428, %v2429
    %v2438 = vsel %vm2433, %v2427, %v2428
    %v2439 = vsel %vm2433, %v2426, %v2427
    %v2440 = vsel %vm2433, %v2425, %v2426
    %v2441 = vsel %vm2433, %v2424, %v2425
    %v2442 = vsel %vm2433, %v2423, %v2424
    %v2443 = vsel %vm2433, %v2422, %v2423
    %v2444 = vsel %vm2433, %v2421, %v2422
    %v2445 = vsel %vm2433, %v2420, %v2421
    %v2446 = vsel %vm2433, %v2419, %v2420
    %v2447 = vsel %vm2433, %v2418, %v2419
    %v2448 = vsel %vm2433, %v2417, %v2418
    %v2449 = vsel %vm2433, %v2432, %v2417
    %v2450 = vmul.f32 %v2448, %v2352
    %v2451 = vmul.f32 %v2447, %v2353
    %v2452 = vmul.f32 %v2446, %v2354
    %v2453 = vmul.f32 %v2445, %v2355
    %v2454 = vmul.f32 %v2444, %v2356
    %v2455 = vmul.f32 %v2443, %v2357
    %v2456 = vmul.f32 %v2442, %v2358
    %v2457 = vmul.f32 %v2441, %v2359
    %v2458 = vmul.f32 %v2440, %v2360
    %v2459 = vmul.f32 %v2439, %v2361
    %v2460 = vmul.f32 %v2438, %v2362
    %v2461 = vmul.f32 %v2437, %v2363
    %v2462 = vmul.f32 %v2436, %v2364
    %v2463 = vmul.f32 %v2435, %v2365
    %v2464 = vmul.f32 %v2434, %v2366
    %v2465 = vmul.f32 %v2449, %v2367
    %v2466 = vld [vmem:[%s12] sm:$0xff]
    %v2467 = vld [vmem:[%s12 + $0x8] sm:$0xff]
    %v2468 = vld [vmem:[%s12 + $0x10] sm:$0xff]
    %v2469 = vld [vmem:[%s12 + $0x18] sm:$0xff]
    %v2470 = vld [vmem:[%s12 + $0x20] sm:$0xff]
    %v2471 = vld [vmem:[%s12 + $0x28] sm:$0xff]
    %s2472 = scalar_lea.vmem %s12, 48
    %v2473 = vld [vmem:[%s2472] sm:$0xff]
    %v2474 = vld [vmem:[%s2472 + $0x8] sm:$0xff]
    %v2475 = vld [vmem:[%s2472 + $0x10] sm:$0xff]
    %v2476 = vld [vmem:[%s2472 + $0x18] sm:$0xff]
    %v2477 = vld [vmem:[%s2472 + $0x20] sm:$0xff]
    %v2478 = vld [vmem:[%s2472 + $0x28] sm:$0xff]
    %vm2479 = vcmask 392192
    %v2481 = vsel %vm2479, %v2240, 0
    %v2484 = vsel %vm2479, %v2241, 0
    %v2487 = vsel %vm2479, %v2242, 0
    %v2490 = vsel %vm2479, %v2243, 0
    %v2493 = vsel %vm2479, %v2244, 0
    %v2496 = vsel %vm2479, %v2245, 0
    %v2499 = vsel %vm2479, %v2246, 0
    %v2502 = vsel %vm2479, %v2247, 0
    %v2505 = vsel %vm2479, %v2248, 0
    %v2508 = vsel %vm2479, %v2249, 0
    %v2511 = vsel %vm2479, %v2250, 0
    %v2514 = vsel %vm2479, %v2251, 0
    %v2517 = vsel %vm2479, %v2252, 0
    %v2520 = vsel %vm2479, %v2253, 0
    %v2523 = vsel %vm2479, %v2254, 0
    %v2526 = vsel %vm2479, %v2255, 0
    %2528 = vmatprep.subr.mxu0 0.0
    %2529 = vmatpush1.msra.mxu0 %v2473
    %2530 = vmatprep.subr.mxu0 0.0
    %2531 = vmatpush1.msra.mxu0 %v2474
    %2532 = vmatprep.subr.mxu0 0.0
    %2533 = vmatpush1.msra.mxu0 %v2475
    %2534 = vmatprep.subr.mxu0 0.0
    %2535 = vmatpush1.msra.mxu0 %v2476
    %2536 = vmatprep.subr.mxu0 0.0
    %2537 = vmatpush1.msra.mxu0 %v2477
    %2538 = vmatprep.subr.mxu0 0.0
    %2539 = vmatpush1.msra.mxu0 %v2478
    %2540 = vmatprep.subr.mxu0 0.0
    %2541 = vmatpush1.msra.mxu0 0.0
    %2542 = vmatprep.subr.mxu0 0.0
    %2543 = vmatpush1.msra.mxu0 0.0
    %2544 = vmatprep.subr.mxu0 0.0
    %2545 = vmatpush1.msra.mxu0 0.0
    %2546 = vmatprep.subr.mxu0 0.0
    %2547 = vmatpush1.msra.mxu0 0.0
    %2548 = vmatprep.subr.mxu0 0.0
    %2549 = vmatpush1.msra.mxu0 0.0
    %2550 = vmatprep.subr.mxu0 0.0
    %2551 = vmatpush1.msra.mxu0 0.0
    %2552 = vmatprep.subr.mxu0 0.0
    %2553 = vmatpush1.msra.mxu0 0.0
    %2554 = vmatprep.subr.mxu0 0.0
    %2555 = vmatpush1.msra.mxu0 0.0
    %2556 = vmatprep.subr.mxu0 0.0
    %2557 = vmatpush1.msra.mxu0 0.0
    %2558 = vmatprep.subr.mxu0 0.0
    %2559 = vmatpush1.msra.mxu0 0.0
    %2560 = vmatprep.subr.mxu0 0.0
    %2561 = vmatpush1.msra.mxu0 0.0
    %2562 = vmatprep.subr.mxu0 0.0
    %2563 = vmatpush1.msra.mxu0 0.0
    %2564 = vmatprep.subr.mxu0 0.0
    %2565 = vmatpush1.msra.mxu0 0.0
    %2566 = vmatprep.subr.mxu0 0.0
    %2567 = vmatpush1.msra.mxu0 0.0
    %2568 = vmatprep.subr.mxu0 0.0
    %2569 = vmatpush1.msra.mxu0 0.0
    %2570 = vmatprep.subr.mxu0 0.0
    %2571 = vmatpush1.msra.mxu0 0.0
    %2572 = vmatprep.subr.mxu0 0.0
    %2573 = vmatpush1.msra.mxu0 0.0
    %2574 = vmatprep.subr.mxu0 0.0
    %2575 = vmatpush1.msra.mxu0 0.0
    %2576 = vmatprep.subr.mxu0 0.0
    %2577 = vmatpush1.msra.mxu0 0.0
    %2578 = vmatprep.subr.mxu0 0.0
    %2579 = vmatpush1.msra.mxu0 0.0
    %2580 = vmatprep.subr.mxu0 0.0
    %2581 = vmatpush1.msra.mxu0 0.0
    %2582 = vmatprep.subr.mxu0 0.0
    %2583 = vmatpush1.msra.mxu0 0.0
    %2584 = vmatprep.subr.mxu0 0.0
    %2585 = vmatpush1.msra.mxu0 0.0
    %2586 = vmatprep.subr.mxu0 0.0
    %2587 = vmatpush1.msra.mxu0 0.0
    %2588 = vmatprep.subr.mxu0 0.0
    %2589 = vmatpush1.msra.mxu0 0.0
    %2590 = vmatprep.subr.mxu0 0.0
    %2591 = vmatpush1.msra.mxu0 0.0
    %2592 = vmatprep.mubr.f32.mxu0 0.0
    %2593 = vmatmul.mubr.f32.gmra.mrb[0].mxu0 %v2481
    %v2594 = vpop.f32.mrb[0].mxu0
    %v2595 = vadd.f32 0.0, %v2594
    %v2596 = vpop.f32.mrb[0].mxu0
    %2597 = vmatprep.mubr.f32.mxu0 0.0
    %2598 = vmatmul.mubr.f32.gmra.mrb[0].mxu0 %v2484
    %v2599 = vpop.f32.mrb[0].mxu0
    %v2600 = vadd.f32 0.0, %v2599
    %v2601 = vpop.f32.mrb[0].mxu0
    %2602 = vmatprep.mubr.f32.mxu0 0.0
    %2603 = vmatmul.mubr.f32.gmra.mrb[0].mxu0 %v2487
    %v2604 = vpop.f32.mrb[0].mxu0
    %v2605 = vadd.f32 0.0, %v2604
    %v2606 = vpop.f32.mrb[0].mxu0
    %2607 = vmatprep.mubr.f32.mxu0 0.0
    %2608 = vmatmul.mubr.f32.gmra.mrb[0].mxu0 %v2490
    %v2609 = vpop.f32.mrb[0].mxu0
    %v2610 = vadd.f32 0.0, %v2609
    %v2611 = vpop.f32.mrb[0].mxu0
    %2612 = vmatprep.mubr.f32.mxu0 0.0
    %2613 = vmatmul.mubr.f32.gmra.mrb[0].mxu0 %v2493
    %v2614 = vpop.f32.mrb[0].mxu0
    %v2615 = vadd.f32 0.0, %v2614
    %v2616 = vpop.f32.mrb[0].mxu0
    %2617 = vmatprep.mubr.f32.mxu0 0.0
    %2618 = vmatmul.mubr.f32.gmra.mrb[0].mxu0 %v2496
    %v2619 = vpop.f32.mrb[0].mxu0
    %v2620 = vadd.f32 0.0, %v2619
    %v2621 = vpop.f32.mrb[0].mxu0
    %2622 = vmatprep.mubr.f32.mxu0 0.0
    %2623 = vmatmul.mubr.f32.gmra.mrb[0].mxu0 %v2499
    %v2624 = vpop.f32.mrb[0].mxu0
    %v2625 = vadd.f32 0.0, %v2624
    %v2626 = vpop.f32.mrb[0].mxu0
    %2627 = vmatprep.mubr.f32.mxu0 0.0
    %2628 = vmatmul.mubr.f32.gmra.mrb[0].mxu0 %v2502
    %v2629 = vpop.f32.mrb[0].mxu0
    %v2630 = vadd.f32 0.0, %v2629
    %v2631 = vpop.f32.mrb[0].mxu0
    %2632 = vmatprep.mubr.f32.mxu0 0.0
    %2633 = vmatmul.mubr.f32.gmra.mrb[0].mxu0 %v2505
    %v2634 = vpop.f32.mrb[0].mxu0
    %v2635 = vadd.f32 0.0, %v2634
    %v2636 = vpop.f32.mrb[0].mxu0
    %2637 = vmatprep.mubr.f32.mxu0 0.0
    %2638 = vmatmul.mubr.f32.gmra.mrb[0].mxu0 %v2508
    %v2639 = vpop.f32.mrb[0].mxu0
    %v2640 = vadd.f32 0.0, %v2639
    %v2641 = vpop.f32.mrb[0].mxu0
    %2642 = vmatprep.mubr.f32.mxu0 0.0
    %2643 = vmatmul.mubr.f32.gmra.mrb[0].mxu0 %v2511
    %v2644 = vpop.f32.mrb[0].mxu0
    %v2645 = vadd.f32 0.0, %v2644
    %v2646 = vpop.f32.mrb[0].mxu0
    %2647 = vmatprep.mubr.f32.mxu0 0.0
    %2648 = vmatmul.mubr.f32.gmra.mrb[0].mxu0 %v2514
    %v2649 = vpop.f32.mrb[0].mxu0
    %v2650 = vadd.f32 0.0, %v2649
    %v2651 = vpop.f32.mrb[0].mxu0
    %2652 = vmatprep.mubr.f32.mxu0 0.0
    %2653 = vmatmul.mubr.f32.gmra.mrb[0].mxu0 %v2517
    %v2654 = vpop.f32.mrb[0].mxu0
    %v2655 = vadd.f32 0.0, %v2654
    %v2656 = vpop.f32.mrb[0].mxu0
    %2657 = vmatprep.mubr.f32.mxu0 0.0
    %2658 = vmatmul.mubr.f32.gmra.mrb[0].mxu0 %v2520
    %v2659 = vpop.f32.mrb[0].mxu0
    %v2660 = vadd.f32 0.0, %v2659
    %v2661 = vpop.f32.mrb[0].mxu0
    %2662 = vmatprep.mubr.f32.mxu0 0.0
    %2663 = vmatmul.mubr.f32.gmra.mrb[0].mxu0 %v2523
    %v2664 = vpop.f32.mrb[0].mxu0
    %v2665 = vadd.f32 0.0, %v2664
    %v2666 = vpop.f32.mrb[0].mxu0
    %2667 = vmatprep.mubr.f32.mxu0 0.0
    %2668 = vmatmul.mubr.f32.gmra.mrb[0].mxu0 %v2526
    %v2669 = vpop.f32.mrb[0].mxu0
    %v2670 = vadd.f32 0.0, %v2669
    %v2671 = vpop.f32.mrb[0].mxu0
    %2672 = vdwg.mxu0
    %v2674 = vsel %vm2479, %v2401, 0
    %v2677 = vsel %vm2479, %v2402, 0
    %v2680 = vsel %vm2479, %v2403, 0
    %v2683 = vsel %vm2479, %v2404, 0
    %v2686 = vsel %vm2479, %v2405, 0
    %v2689 = vsel %vm2479, %v2406, 0
    %v2692 = vsel %vm2479, %v2407, 0
    %v2695 = vsel %vm2479, %v2408, 0
    %v2698 = vsel %vm2479, %v2409, 0
    %v2701 = vsel %vm2479, %v2410, 0
    %v2704 = vsel %vm2479, %v2411, 0
    %v2707 = vsel %vm2479, %v2412, 0
    %v2710 = vsel %vm2479, %v2413, 0
    %v2713 = vsel %vm2479, %v2414, 0
    %v2716 = vsel %vm2479, %v2415, 0
    %v2719 = vsel %vm2479, %v2416, 0
    %2721 = vmatprep.subr.mxu0 0.0
    %2722 = vmatpush1.msra.mxu0 %v2466
    %2723 = vmatprep.subr.mxu0 0.0
    %2724 = vmatpush1.msra.mxu0 %v2467
    %2725 = vmatprep.subr.mxu0 0.0
    %2726 = vmatpush1.msra.mxu0 %v2468
    %2727 = vmatprep.subr.mxu0 0.0
    %2728 = vmatpush1.msra.mxu0 %v2469
    %2729 = vmatprep.subr.mxu0 0.0
    %2730 = vmatpush1.msra.mxu0 %v2470
    %2731 = vmatprep.subr.mxu0 0.0
    %2732 = vmatpush1.msra.mxu0 %v2471
    %2733 = vmatprep.subr.mxu0 0.0
    %2734 = vmatpush1.msra.mxu0 0.0
    %2735 = vmatprep.subr.mxu0 0.0
    %2736 = vmatpush1.msra.mxu0 0.0
    %2737 = vmatprep.subr.mxu0 0.0
    %2738 = vmatpush1.msra.mxu0 0.0
    %2739 = vmatprep.subr.mxu0 0.0
    %2740 = vmatpush1.msra.mxu0 0.0
    %2741 = vmatprep.subr.mxu0 0.0
    %2742 = vmatpush1.msra.mxu0 0.0
    %2743 = vmatprep.subr.mxu0 0.0
    %2744 = vmatpush1.msra.mxu0 0.0
    %2745 = vmatprep.subr.mxu0 0.0
    %2746 = vmatpush1.msra.mxu0 0.0
    %2747 = vmatprep.subr.mxu0 0.0
    %2748 = vmatpush1.msra.mxu0 0.0
    %2749 = vmatprep.subr.mxu0 0.0
    %2750 = vmatpush1.msra.mxu0 0.0
    %2751 = vmatprep.subr.mxu0 0.0
    %2752 = vmatpush1.msra.mxu0 0.0
    %2753 = vmatprep.subr.mxu0 0.0
    %2754 = vmatpush1.msra.mxu0 0.0
    %2755 = vmatprep.subr.mxu0 0.0
    %2756 = vmatpush1.msra.mxu0 0.0
    %2757 = vmatprep.subr.mxu0 0.0
    %2758 = vmatpush1.msra.mxu0 0.0
    %2759 = vmatprep.subr.mxu0 0.0
    %2760 = vmatpush1.msra.mxu0 0.0
    %2761 = vmatprep.subr.mxu0 0.0
    %2762 = vmatpush1.msra.mxu0 0.0
    %2763 = vmatprep.subr.mxu0 0.0
    %2764 = vmatpush1.msra.mxu0 0.0
    %2765 = vmatprep.subr.mxu0 0.0
    %2766 = vmatpush1.msra.mxu0 0.0
    %2767 = vmatprep.subr.mxu0 0.0
    %2768 = vmatpush1.msra.mxu0 0.0
    %2769 = vmatprep.subr.mxu0 0.0
    %2770 = vmatpush1.msra.mxu0 0.0
    %2771 = vmatprep.subr.mxu0 0.0
    %2772 = vmatpush1.msra.mxu0 0.0
    %2773 = vmatprep.subr.mxu0 0.0
    %2774 = vmatpush1.msra.mxu0 0.0
    %2775 = vmatprep.subr.mxu0 0.0
    %2776 = vmatpush1.msra.mxu0 0.0
    %2777 = vmatprep.subr.mxu0 0.0
    %2778 = vmatpush1.msra.mxu0 0.0
    %2779 = vmatprep.subr.mxu0 0.0
    %2780 = vmatpush1.msra.mxu0 0.0
    %2781 = vmatprep.subr.mxu0 0.0
    %2782 = vmatpush1.msra.mxu0 0.0
    %2783 = vmatprep.subr.mxu0 0.0
    %2784 = vmatpush1.msra.mxu0 0.0
    %2785 = vmatprep.mubr.f32.mxu0 0.0
    %2786 = vmatmul.mubr.f32.gmra.mrb[0].mxu0 %v2674
    %v2787 = vpop.f32.mrb[0].mxu0
    %v2788 = vadd.f32 %v2595, %v2787
    %v2789 = vpop.f32.mrb[0].mxu0
    %2790 = vmatprep.mubr.f32.mxu0 0.0
    %2791 = vmatmul.mubr.f32.gmra.mrb[0].mxu0 %v2677
    %v2792 = vpop.f32.mrb[0].mxu0
    %v2793 = vadd.f32 %v2600, %v2792
    %v2794 = vpop.f32.mrb[0].mxu0
    %2795 = vmatprep.mubr.f32.mxu0 0.0
    %2796 = vmatmul.mubr.f32.gmra.mrb[0].mxu0 %v2680
    %v2797 = vpop.f32.mrb[0].mxu0
    %v2798 = vadd.f32 %v2605, %v2797
    %v2799 = vpop.f32.mrb[0].mxu0
    %2800 = vmatprep.mubr.f32.mxu0 0.0
    %2801 = vmatmul.mubr.f32.gmra.mrb[0].mxu0 %v2683
    %v2802 = vpop.f32.mrb[0].mxu0
    %v2803 = vadd.f32 %v2610, %v2802
    %v2804 = vpop.f32.mrb[0].mxu0
    %2805 = vmatprep.mubr.f32.mxu0 0.0
    %2806 = vmatmul.mubr.f32.gmra.mrb[0].mxu0 %v2686
    %v2807 = vpop.f32.mrb[0].mxu0
    %v2808 = vadd.f32 %v2615, %v2807
    %v2809 = vpop.f32.mrb[0].mxu0
    %2810 = vmatprep.mubr.f32.mxu0 0.0
    %2811 = vmatmul.mubr.f32.gmra.mrb[0].mxu0 %v2689
    %v2812 = vpop.f32.mrb[0].mxu0
    %v2813 = vadd.f32 %v2620, %v2812
    %v2814 = vpop.f32.mrb[0].mxu0
    %2815 = vmatprep.mubr.f32.mxu0 0.0
    %2816 = vmatmul.mubr.f32.gmra.mrb[0].mxu0 %v2692
    %v2817 = vpop.f32.mrb[0].mxu0
    %v2818 = vadd.f32 %v2625, %v2817
    %v2819 = vpop.f32.mrb[0].mxu0
    %2820 = vmatprep.mubr.f32.mxu0 0.0
    %2821 = vmatmul.mubr.f32.gmra.mrb[0].mxu0 %v2695
    %v2822 = vpop.f32.mrb[0].mxu0
    %v2823 = vadd.f32 %v2630, %v2822
    %v2824 = vpop.f32.mrb[0].mxu0
    %2825 = vmatprep.mubr.f32.mxu0 0.0
    %2826 = vmatmul.mubr.f32.gmra.mrb[0].mxu0 %v2698
    %v2827 = vpop.f32.mrb[0].mxu0
    %v2828 = vadd.f32 %v2635, %v2827
    %v2829 = vpop.f32.mrb[0].mxu0
    %2830 = vmatprep.mubr.f32.mxu0 0.0
    %2831 = vmatmul.mubr.f32.gmra.mrb[0].mxu0 %v2701
    %v2832 = vpop.f32.mrb[0].mxu0
    %v2833 = vadd.f32 %v2640, %v2832
    %v2834 = vpop.f32.mrb[0].mxu0
    %2835 = vmatprep.mubr.f32.mxu0 0.0
    %2836 = vmatmul.mubr.f32.gmra.mrb[0].mxu0 %v2704
    %v2837 = vpop.f32.mrb[0].mxu0
    %v2838 = vadd.f32 %v2645, %v2837
    %v2839 = vpop.f32.mrb[0].mxu0
    %2840 = vmatprep.mubr.f32.mxu0 0.0
    %2841 = vmatmul.mubr.f32.gmra.mrb[0].mxu0 %v2707
    %v2842 = vpop.f32.mrb[0].mxu0
    %v2843 = vadd.f32 %v2650, %v2842
    %v2844 = vpop.f32.mrb[0].mxu0
    %2845 = vmatprep.mubr.f32.mxu0 0.0
    %2846 = vmatmul.mubr.f32.gmra.mrb[0].mxu0 %v2710
    %v2847 = vpop.f32.mrb[0].mxu0
    %v2848 = vadd.f32 %v2655, %v2847
    %v2849 = vpop.f32.mrb[0].mxu0
    %2850 = vmatprep.mubr.f32.mxu0 0.0
    %2851 = vmatmul.mubr.f32.gmra.mrb[0].mxu0 %v2713
    %v2852 = vpop.f32.mrb[0].mxu0
    %v2853 = vadd.f32 %v2660, %v2852
    %v2854 = vpop.f32.mrb[0].mxu0
    %2855 = vmatprep.mubr.f32.mxu0 0.0
    %2856 = vmatmul.mubr.f32.gmra.mrb[0].mxu0 %v2716
    %v2857 = vpop.f32.mrb[0].mxu0
    %v2858 = vadd.f32 %v2665, %v2857
    %v2859 = vpop.f32.mrb[0].mxu0
    %2860 = vmatprep.mubr.f32.mxu0 0.0
    %2861 = vmatmul.mubr.f32.gmra.mrb[0].mxu0 %v2719
    %v2862 = vpop.f32.mrb[0].mxu0
    %v2863 = vadd.f32 %v2670, %v2862
    %v2864 = vpop.f32.mrb[0].mxu0
    %2865 = vdwg.mxu0
    %s2866 = scalar_lea.vmem %s12, 96
    %v2867 = vld [vmem:[%s2866] sm:$0xff]
    %v2868 = vld [vmem:[%s2866 + $0x8] sm:$0xff]
    %v2869 = vld [vmem:[%s2866 + $0x10] sm:$0xff]
    %v2870 = vld [vmem:[%s2866 + $0x18] sm:$0xff]
    %v2871 = vld [vmem:[%s2866 + $0x20] sm:$0xff]
    %v2872 = vld [vmem:[%s2866 + $0x28] sm:$0xff]
    %v2874 = vsel %vm2479, %v2450, 0
    %v2877 = vsel %vm2479, %v2451, 0
    %v2880 = vsel %vm2479, %v2452, 0
    %v2883 = vsel %vm2479, %v2453, 0
    %v2886 = vsel %vm2479, %v2454, 0
    %v2889 = vsel %vm2479, %v2455, 0
    %v2892 = vsel %vm2479, %v2456, 0
    %v2895 = vsel %vm2479, %v2457, 0
    %v2898 = vsel %vm2479, %v2458, 0
    %v2901 = vsel %vm2479, %v2459, 0
    %v2904 = vsel %vm2479, %v2460, 0
    %v2907 = vsel %vm2479, %v2461, 0
    %v2910 = vsel %vm2479, %v2462, 0
    %v2913 = vsel %vm2479, %v2463, 0
    %v2916 = vsel %vm2479, %v2464, 0
    %v2919 = vsel %vm2479, %v2465, 0
    %2921 = vmatprep.subr.mxu0 0.0
    %2922 = vmatpush1.msra.mxu0 %v2867
    %2923 = vmatprep.subr.mxu0 0.0
    %2924 = vmatpush1.msra.mxu0 %v2868
    %2925 = vmatprep.subr.mxu0 0.0
    %2926 = vmatpush1.msra.mxu0 %v2869
    %2927 = vmatprep.subr.mxu0 0.0
    %2928 = vmatpush1.msra.mxu0 %v2870
    %2929 = vmatprep.subr.mxu0 0.0
    %2930 = vmatpush1.msra.mxu0 %v2871
    %2931 = vmatprep.subr.mxu0 0.0
    %2932 = vmatpush1.msra.mxu0 %v2872
    %2933 = vmatprep.subr.mxu0 0.0
    %2934 = vmatpush1.msra.mxu0 0.0
    %2935 = vmatprep.subr.mxu0 0.0
    %2936 = vmatpush1.msra.mxu0 0.0
    %2937 = vmatprep.subr.mxu0 0.0
    %2938 = vmatpush1.msra.mxu0 0.0
    %2939 = vmatprep.subr.mxu0 0.0
    %2940 = vmatpush1.msra.mxu0 0.0
    %2941 = vmatprep.subr.mxu0 0.0
    %2942 = vmatpush1.msra.mxu0 0.0
    %2943 = vmatprep.subr.mxu0 0.0
    %2944 = vmatpush1.msra.mxu0 0.0
    %2945 = vmatprep.subr.mxu0 0.0
    %2946 = vmatpush1.msra.mxu0 0.0
    %2947 = vmatprep.subr.mxu0 0.0
    %2948 = vmatpush1.msra.mxu0 0.0
    %2949 = vmatprep.subr.mxu0 0.0
    %2950 = vmatpush1.msra.mxu0 0.0
    %2951 = vmatprep.subr.mxu0 0.0
    %2952 = vmatpush1.msra.mxu0 0.0
    %2953 = vmatprep.subr.mxu0 0.0
    %2954 = vmatpush1.msra.mxu0 0.0
    %2955 = vmatprep.subr.mxu0 0.0
    %2956 = vmatpush1.msra.mxu0 0.0
    %2957 = vmatprep.subr.mxu0 0.0
    %2958 = vmatpush1.msra.mxu0 0.0
    %2959 = vmatprep.subr.mxu0 0.0
    %2960 = vmatpush1.msra.mxu0 0.0
    %2961 = vmatprep.subr.mxu0 0.0
    %2962 = vmatpush1.msra.mxu0 0.0
    %2963 = vmatprep.subr.mxu0 0.0
    %2964 = vmatpush1.msra.mxu0 0.0
    %2965 = vmatprep.subr.mxu0 0.0
    %2966 = vmatpush1.msra.mxu0 0.0
    %2967 = vmatprep.subr.mxu0 0.0
    %2968 = vmatpush1.msra.mxu0 0.0
    %2969 = vmatprep.subr.mxu0 0.0
    %2970 = vmatpush1.msra.mxu0 0.0
    %2971 = vmatprep.subr.mxu0 0.0
    %2972 = vmatpush1.msra.mxu0 0.0
    %2973 = vmatprep.subr.mxu0 0.0
    %2974 = vmatpush1.msra.mxu0 0.0
    %2975 = vmatprep.subr.mxu0 0.0
    %2976 = vmatpush1.msra.mxu0 0.0
    %2977 = vmatprep.subr.mxu0 0.0
    %2978 = vmatpush1.msra.mxu0 0.0
    %2979 = vmatprep.subr.mxu0 0.0
    %2980 = vmatpush1.msra.mxu0 0.0
    %2981 = vmatprep.subr.mxu0 0.0
    %2982 = vmatpush1.msra.mxu0 0.0
    %2983 = vmatprep.subr.mxu0 0.0
    %2984 = vmatpush1.msra.mxu0 0.0
    %2985 = vmatprep.mubr.f32.mxu0 0.0
    %2986 = vmatmul.mubr.f32.gmra.mrb[0].mxu0 %v2874
    %v2987 = vpop.f32.mrb[0].mxu0
    %v2988 = vadd.f32 0.0, %v2987
    %v2989 = vpop.f32.mrb[0].mxu0
    %2990 = vmatprep.mubr.f32.mxu0 0.0
    %2991 = vmatmul.mubr.f32.gmra.mrb[0].mxu0 %v2877
    %v2992 = vpop.f32.mrb[0].mxu0
    %v2993 = vadd.f32 0.0, %v2992
    %v2994 = vpop.f32.mrb[0].mxu0
    %2995 = vmatprep.mubr.f32.mxu0 0.0
    %2996 = vmatmul.mubr.f32.gmra.mrb[0].mxu0 %v2880
    %v2997 = vpop.f32.mrb[0].mxu0
    %v2998 = vadd.f32 0.0, %v2997
    %v2999 = vpop.f32.mrb[0].mxu0
    %3000 = vmatprep.mubr.f32.mxu0 0.0
    %3001 = vmatmul.mubr.f32.gmra.mrb[0].mxu0 %v2883
    %v3002 = vpop.f32.mrb[0].mxu0
    %v3003 = vadd.f32 0.0, %v3002
    %v3004 = vpop.f32.mrb[0].mxu0
    %3005 = vmatprep.mubr.f32.mxu0 0.0
    %3006 = vmatmul.mubr.f32.gmra.mrb[0].mxu0 %v2886
    %v3007 = vpop.f32.mrb[0].mxu0
    %v3008 = vadd.f32 0.0, %v3007
    %v3009 = vpop.f32.mrb[0].mxu0
    %3010 = vmatprep.mubr.f32.mxu0 0.0
    %3011 = vmatmul.mubr.f32.gmra.mrb[0].mxu0 %v2889
    %v3012 = vpop.f32.mrb[0].mxu0
    %v3013 = vadd.f32 0.0, %v3012
    %v3014 = vpop.f32.mrb[0].mxu0
    %3015 = vmatprep.mubr.f32.mxu0 0.0
    %3016 = vmatmul.mubr.f32.gmra.mrb[0].mxu0 %v2892
    %v3017 = vpop.f32.mrb[0].mxu0
    %v3018 = vadd.f32 0.0, %v3017
    %v3019 = vpop.f32.mrb[0].mxu0
    %3020 = vmatprep.mubr.f32.mxu0 0.0
    %3021 = vmatmul.mubr.f32.gmra.mrb[0].mxu0 %v2895
    %v3022 = vpop.f32.mrb[0].mxu0
    %v3023 = vadd.f32 0.0, %v3022
    %v3024 = vpop.f32.mrb[0].mxu0
    %3025 = vmatprep.mubr.f32.mxu0 0.0
    %3026 = vmatmul.mubr.f32.gmra.mrb[0].mxu0 %v2898
    %v3027 = vpop.f32.mrb[0].mxu0
    %v3028 = vadd.f32 0.0, %v3027
    %v3029 = vpop.f32.mrb[0].mxu0
    %3030 = vmatprep.mubr.f32.mxu0 0.0
    %3031 = vmatmul.mubr.f32.gmra.mrb[0].mxu0 %v2901
    %v3032 = vpop.f32.mrb[0].mxu0
    %v3033 = vadd.f32 0.0, %v3032
    %v3034 = vpop.f32.mrb[0].mxu0
    %3035 = vmatprep.mubr.f32.mxu0 0.0
    %3036 = vmatmul.mubr.f32.gmra.mrb[0].mxu0 %v2904
    %v3037 = vpop.f32.mrb[0].mxu0
    %v3038 = vadd.f32 0.0, %v3037
    %v3039 = vpop.f32.mrb[0].mxu0
    %3040 = vmatprep.mubr.f32.mxu0 0.0
    %3041 = vmatmul.mubr.f32.gmra.mrb[0].mxu0 %v2907
    %v3042 = vpop.f32.mrb[0].mxu0
    %v3043 = vadd.f32 0.0, %v3042
    %v3044 = vpop.f32.mrb[0].mxu0
    %3045 = vmatprep.mubr.f32.mxu0 0.0
    %3046 = vmatmul.mubr.f32.gmra.mrb[0].mxu0 %v2910
    %v3047 = vpop.f32.mrb[0].mxu0
    %v3048 = vadd.f32 0.0, %v3047
    %v3049 = vpop.f32.mrb[0].mxu0
    %3050 = vmatprep.mubr.f32.mxu0 0.0
    %3051 = vmatmul.mubr.f32.gmra.mrb[0].mxu0 %v2913
    %v3052 = vpop.f32.mrb[0].mxu0
    %v3053 = vadd.f32 0.0, %v3052
    %v3054 = vpop.f32.mrb[0].mxu0
    %3055 = vmatprep.mubr.f32.mxu0 0.0
    %3056 = vmatmul.mubr.f32.gmra.mrb[0].mxu0 %v2916
    %v3057 = vpop.f32.mrb[0].mxu0
    %v3058 = vadd.f32 0.0, %v3057
    %v3059 = vpop.f32.mrb[0].mxu0
    %3060 = vmatprep.mubr.f32.mxu0 0.0
    %3061 = vmatmul.mubr.f32.gmra.mrb[0].mxu0 %v2919
    %v3062 = vpop.f32.mrb[0].mxu0
    %v3063 = vadd.f32 0.0, %v3062
    %v3064 = vpop.f32.mrb[0].mxu0
    %3065 = vdwg.mxu0
    %v3066 = vadd.f32 %v2788, %v2988
    %v3067 = vadd.f32 %v2793, %v2993
    %v3068 = vadd.f32 %v2798, %v2998
    %v3069 = vadd.f32 %v2803, %v3003
    %v3070 = vadd.f32 %v2808, %v3008
    %v3071 = vadd.f32 %v2813, %v3013
    %v3072 = vadd.f32 %v2818, %v3018
    %v3073 = vadd.f32 %v2823, %v3023
    %v3074 = vadd.f32 %v2828, %v3028
    %v3075 = vadd.f32 %v2833, %v3033
    %v3076 = vadd.f32 %v2838, %v3038
    %v3077 = vadd.f32 %v2843, %v3043
    %v3078 = vadd.f32 %v2848, %v3048
    %v3079 = vadd.f32 %v2853, %v3053
    %v3080 = vadd.f32 %v2858, %v3058
    %v3081 = vadd.f32 %v2863, %v3063
    %v3082 = vld [vmem:[%s13] sm:$0x1]
    %v3084 = vlaneseq
    %v3085 = vshrl.u32 %v3084, 7
    %v3086 = vsub.s32 0, %v3085
    %v3087 = vrot.slane %v3082, %v3086
    %v3089 = vadd.f32 %v3066, %v3087
    %v3090 = vadd.f32 %v3067, %v3087
    %v3091 = vadd.f32 %v3068, %v3087
    %v3092 = vadd.f32 %v3069, %v3087
    %v3093 = vadd.f32 %v3070, %v3087
    %v3094 = vadd.f32 %v3071, %v3087
    %v3095 = vadd.f32 %v3072, %v3087
    %v3096 = vadd.f32 %v3073, %v3087
    %v3097 = vadd.f32 %v3074, %v3087
    %v3098 = vadd.f32 %v3075, %v3087
    %v3099 = vadd.f32 %v3076, %v3087
    %v3100 = vadd.f32 %v3077, %v3087
    %v3101 = vadd.f32 %v3078, %v3087
    %v3102 = vadd.f32 %v3079, %v3087
    %v3103 = vadd.f32 %v3080, %v3087
    %v3104 = vadd.f32 %v3081, %v3087
    %v3105 = vld [vmem:[%s4] sm:$0xff]
    %v3106 = vld [vmem:[%s4 + $0x8] sm:$0xff]
    %v3107 = vld [vmem:[%s4 + $0x10] sm:$0xff]
    %v3108 = vld [vmem:[%s4 + $0x18] sm:$0xff]
    %v3109 = vld [vmem:[%s4 + $0x20] sm:$0xff]
    %v3110 = vld [vmem:[%s4 + $0x28] sm:$0xff]
    %v3111 = vld [vmem:[%s4 + $0x30] sm:$0xff]
    %v3112 = vld [vmem:[%s4 + $0x38] sm:$0xff]
    %v3113 = vld [vmem:[%s4 + $0x40] sm:$0xff]
    %v3114 = vld [vmem:[%s4 + $0x48] sm:$0xff]
    %v3115 = vld [vmem:[%s4 + $0x50] sm:$0xff]
    %v3116 = vld [vmem:[%s4 + $0x58] sm:$0xff]
    %v3117 = vld [vmem:[%s4 + $0x60] sm:$0xff]
    %v3118 = vld [vmem:[%s4 + $0x68] sm:$0xff]
    %v3119 = vld [vmem:[%s4 + $0x70] sm:$0xff]
    %v3120 = vld [vmem:[%s4 + $0x78] sm:$0xff]
    %vm3121 = vcmp.gt.f32.partialorder %v3105, 0.5
    %vm3122 = vcmp.gt.f32.partialorder %v3106, 0.5
    %vm3123 = vcmp.gt.f32.partialorder %v3107, 0.5
    %vm3124 = vcmp.gt.f32.partialorder %v3108, 0.5
    %vm3125 = vcmp.gt.f32.partialorder %v3109, 0.5
    %vm3126 = vcmp.gt.f32.partialorder %v3110, 0.5
    %vm3127 = vcmp.gt.f32.partialorder %v3111, 0.5
    %vm3128 = vcmp.gt.f32.partialorder %v3112, 0.5
    %vm3129 = vcmp.gt.f32.partialorder %v3113, 0.5
    %vm3130 = vcmp.gt.f32.partialorder %v3114, 0.5
    %vm3131 = vcmp.gt.f32.partialorder %v3115, 0.5
    %vm3132 = vcmp.gt.f32.partialorder %v3116, 0.5
    %vm3133 = vcmp.gt.f32.partialorder %v3117, 0.5
    %vm3134 = vcmp.gt.f32.partialorder %v3118, 0.5
    %vm3135 = vcmp.gt.f32.partialorder %v3119, 0.5
    %vm3136 = vcmp.gt.f32.partialorder %v3120, 0.5
    %v3137 = vsel %vm3121, 1, 0
    %v3138 = vsel %vm3122, 1, 0
    %v3139 = vsel %vm3123, 1, 0
    %v3140 = vsel %vm3124, 1, 0
    %v3141 = vsel %vm3125, 1, 0
    %v3142 = vsel %vm3126, 1, 0
    %v3143 = vsel %vm3127, 1, 0
    %v3144 = vsel %vm3128, 1, 0
    %v3145 = vsel %vm3129, 1, 0
    %v3146 = vsel %vm3130, 1, 0
    %v3147 = vsel %vm3131, 1, 0
    %v3148 = vsel %vm3132, 1, 0
    %v3149 = vsel %vm3133, 1, 0
    %v3150 = vsel %vm3134, 1, 0
    %v3151 = vsel %vm3135, 1, 0
    %v3152 = vsel %vm3136, 1, 0
    %3153 = vset.pattern.permute.xlu0 0
    %3154 = vperm.xlu0 %3153, %v3137
    %v3155 = vpop.permute.xlu0 %3154
    %3156 = vset.pattern.permute.xlu0 0
    %3157 = vperm.xlu0 %3156, %v3138
    %v3158 = vpop.permute.xlu0 %3157
    %3159 = vset.pattern.permute.xlu0 0
    %3160 = vperm.xlu0 %3159, %v3139
    %v3161 = vpop.permute.xlu0 %3160
    %3162 = vset.pattern.permute.xlu0 0
    %3163 = vperm.xlu0 %3162, %v3140
    %v3164 = vpop.permute.xlu0 %3163
    %3165 = vset.pattern.permute.xlu0 0
    %3166 = vperm.xlu0 %3165, %v3141
    %v3167 = vpop.permute.xlu0 %3166
    %3168 = vset.pattern.permute.xlu0 0
    %3169 = vperm.xlu0 %3168, %v3142
    %v3170 = vpop.permute.xlu0 %3169
    %3171 = vset.pattern.permute.xlu0 0
    %3172 = vperm.xlu0 %3171, %v3143
    %v3173 = vpop.permute.xlu0 %3172
    %3174 = vset.pattern.permute.xlu0 0
    %3175 = vperm.xlu0 %3174, %v3144
    %v3176 = vpop.permute.xlu0 %3175
    %3177 = vset.pattern.permute.xlu0 0
    %3178 = vperm.xlu0 %3177, %v3145
    %v3179 = vpop.permute.xlu0 %3178
    %3180 = vset.pattern.permute.xlu0 0
    %3181 = vperm.xlu0 %3180, %v3146
    %v3182 = vpop.permute.xlu0 %3181
    %3183 = vset.pattern.permute.xlu0 0
    %3184 = vperm.xlu0 %3183, %v3147
    %v3185 = vpop.permute.xlu0 %3184
    %3186 = vset.pattern.permute.xlu0 0
    %3187 = vperm.xlu0 %3186, %v3148
    %v3188 = vpop.permute.xlu0 %3187
    %3189 = vset.pattern.permute.xlu0 0
    %3190 = vperm.xlu0 %3189, %v3149
    %v3191 = vpop.permute.xlu0 %3190
    %3192 = vset.pattern.permute.xlu0 0
    %3193 = vperm.xlu0 %3192, %v3150
    %v3194 = vpop.permute.xlu0 %3193
    %3195 = vset.pattern.permute.xlu0 0
    %3196 = vperm.xlu0 %3195, %v3151
    %v3197 = vpop.permute.xlu0 %3196
    %3198 = vset.pattern.permute.xlu0 0
    %3199 = vperm.xlu0 %3198, %v3152
    %v3200 = vpop.permute.xlu0 %3199
    %vm3201 = vcmp.eq.s32.totalorder %v3155, 1
    %vm3202 = vcmp.eq.s32.totalorder %v3158, 1
    %vm3203 = vcmp.eq.s32.totalorder %v3161, 1
    %vm3204 = vcmp.eq.s32.totalorder %v3164, 1
    %vm3205 = vcmp.eq.s32.totalorder %v3167, 1
    %vm3206 = vcmp.eq.s32.totalorder %v3170, 1
    %vm3207 = vcmp.eq.s32.totalorder %v3173, 1
    %vm3208 = vcmp.eq.s32.totalorder %v3176, 1
    %vm3209 = vcmp.eq.s32.totalorder %v3179, 1
    %vm3210 = vcmp.eq.s32.totalorder %v3182, 1
    %vm3211 = vcmp.eq.s32.totalorder %v3185, 1
    %vm3212 = vcmp.eq.s32.totalorder %v3188, 1
    %vm3213 = vcmp.eq.s32.totalorder %v3191, 1
    %vm3214 = vcmp.eq.s32.totalorder %v3194, 1
    %vm3215 = vcmp.eq.s32.totalorder %v3197, 1
    %vm3216 = vcmp.eq.s32.totalorder %v3200, 1
    %v3217 = vsel %vm3201, %v3089, -1e+30
    %v3218 = vsel %vm3202, %v3090, -1e+30
    %v3219 = vsel %vm3203, %v3091, -1e+30
    %v3220 = vsel %vm3204, %v3092, -1e+30
    %v3221 = vsel %vm3205, %v3093, -1e+30
    %v3222 = vsel %vm3206, %v3094, -1e+30
    %v3223 = vsel %vm3207, %v3095, -1e+30
    %v3224 = vsel %vm3208, %v3096, -1e+30
    %v3225 = vsel %vm3209, %v3097, -1e+30
    %v3226 = vsel %vm3210, %v3098, -1e+30
    %v3227 = vsel %vm3211, %v3099, -1e+30
    %v3228 = vsel %vm3212, %v3100, -1e+30
    %v3229 = vsel %vm3213, %v3101, -1e+30
    %v3230 = vsel %vm3214, %v3102, -1e+30
    %v3231 = vsel %vm3215, %v3103, -1e+30
    %v3232 = vsel %vm3216, %v3104, -1e+30
    %v3233 = vsel %vm560, %v3217, -inf
    %v3234 = vsel %vm560, %v3218, -inf
    %v3235 = vmax.f32 %v3233, %v3234
    %v3236 = vrot.slane %v3235, 4
    %v3237 = vmax.f32 %v3235, %v3236
    %v3238 = vrot.slane %v3237, 2
    %v3239 = vmax.f32 %v3237, %v3238
    %v3240 = vrot.slane %v3239, 1
    %v3241 = vmax.f32 %v3239, %v3240
    %v3242 = vsel %vm560, %v3219, -inf
    %v3243 = vsel %vm560, %v3220, -inf
    %v3244 = vmax.f32 %v3242, %v3243
    %v3245 = vrot.slane %v3244, 4
    %v3246 = vmax.f32 %v3244, %v3245
    %v3247 = vrot.slane %v3246, 2
    %v3248 = vmax.f32 %v3246, %v3247
    %v3249 = vrot.slane %v3248, 1
    %v3250 = vmax.f32 %v3248, %v3249
    %v3251 = vsel %vm560, %v3221, -inf
    %v3252 = vsel %vm560, %v3222, -inf
    %v3253 = vmax.f32 %v3251, %v3252
    %v3254 = vrot.slane %v3253, 4
    %v3255 = vmax.f32 %v3253, %v3254
    %v3256 = vrot.slane %v3255, 2
    %v3257 = vmax.f32 %v3255, %v3256
    %v3258 = vrot.slane %v3257, 1
    %v3259 = vmax.f32 %v3257, %v3258
    %v3260 = vsel %vm560, %v3223, -inf
    %v3261 = vsel %vm560, %v3224, -inf
    %v3262 = vmax.f32 %v3260, %v3261
    %v3263 = vrot.slane %v3262, 4
    %v3264 = vmax.f32 %v3262, %v3263
    %v3265 = vrot.slane %v3264, 2
    %v3266 = vmax.f32 %v3264, %v3265
    %v3267 = vrot.slane %v3266, 1
    %v3268 = vmax.f32 %v3266, %v3267
    %v3269 = vsel %vm560, %v3225, -inf
    %v3270 = vsel %vm560, %v3226, -inf
    %v3271 = vmax.f32 %v3269, %v3270
    %v3272 = vrot.slane %v3271, 4
    %v3273 = vmax.f32 %v3271, %v3272
    %v3274 = vrot.slane %v3273, 2
    %v3275 = vmax.f32 %v3273, %v3274
    %v3276 = vrot.slane %v3275, 1
    %v3277 = vmax.f32 %v3275, %v3276
    %v3278 = vsel %vm560, %v3227, -inf
    %v3279 = vsel %vm560, %v3228, -inf
    %v3280 = vmax.f32 %v3278, %v3279
    %v3281 = vrot.slane %v3280, 4
    %v3282 = vmax.f32 %v3280, %v3281
    %v3283 = vrot.slane %v3282, 2
    %v3284 = vmax.f32 %v3282, %v3283
    %v3285 = vrot.slane %v3284, 1
    %v3286 = vmax.f32 %v3284, %v3285
    %v3287 = vsel %vm560, %v3229, -inf
    %v3288 = vsel %vm560, %v3230, -inf
    %v3289 = vmax.f32 %v3287, %v3288
    %v3290 = vrot.slane %v3289, 4
    %v3291 = vmax.f32 %v3289, %v3290
    %v3292 = vrot.slane %v3291, 2
    %v3293 = vmax.f32 %v3291, %v3292
    %v3294 = vrot.slane %v3293, 1
    %v3295 = vmax.f32 %v3293, %v3294
    %v3296 = vsel %vm560, %v3231, -inf
    %v3297 = vsel %vm560, %v3232, -inf
    %v3298 = vmax.f32 %v3296, %v3297
    %v3299 = vrot.slane %v3298, 4
    %v3300 = vmax.f32 %v3298, %v3299
    %v3301 = vrot.slane %v3300, 2
    %v3302 = vmax.f32 %v3300, %v3301
    %v3303 = vrot.slane %v3302, 1
    %v3304 = vmax.f32 %v3302, %v3303
    %3305 = vset.pattern.permute.xlu0 1
    %3306 = vperm.xlu0 %3305, %v3137
    %v3307 = vpop.permute.xlu0 %3306
    %3308 = vset.pattern.permute.xlu0 1
    %3309 = vperm.xlu0 %3308, %v3138
    %v3310 = vpop.permute.xlu0 %3309
    %3311 = vset.pattern.permute.xlu0 1
    %3312 = vperm.xlu0 %3311, %v3139
    %v3313 = vpop.permute.xlu0 %3312
    %3314 = vset.pattern.permute.xlu0 1
    %3315 = vperm.xlu0 %3314, %v3140
    %v3316 = vpop.permute.xlu0 %3315
    %3317 = vset.pattern.permute.xlu0 1
    %3318 = vperm.xlu0 %3317, %v3141
    %v3319 = vpop.permute.xlu0 %3318
    %3320 = vset.pattern.permute.xlu0 1
    %3321 = vperm.xlu0 %3320, %v3142
    %v3322 = vpop.permute.xlu0 %3321
    %3323 = vset.pattern.permute.xlu0 1
    %3324 = vperm.xlu0 %3323, %v3143
    %v3325 = vpop.permute.xlu0 %3324
    %3326 = vset.pattern.permute.xlu0 1
    %3327 = vperm.xlu0 %3326, %v3144
    %v3328 = vpop.permute.xlu0 %3327
    %3329 = vset.pattern.permute.xlu0 1
    %3330 = vperm.xlu0 %3329, %v3145
    %v3331 = vpop.permute.xlu0 %3330
    %3332 = vset.pattern.permute.xlu0 1
    %3333 = vperm.xlu0 %3332, %v3146
    %v3334 = vpop.permute.xlu0 %3333
    %3335 = vset.pattern.permute.xlu0 1
    %3336 = vperm.xlu0 %3335, %v3147
    %v3337 = vpop.permute.xlu0 %3336
    %3338 = vset.pattern.permute.xlu0 1
    %3339 = vperm.xlu0 %3338, %v3148
    %v3340 = vpop.permute.xlu0 %3339
    %3341 = vset.pattern.permute.xlu0 1
    %3342 = vperm.xlu0 %3341, %v3149
    %v3343 = vpop.permute.xlu0 %3342
    %3344 = vset.pattern.permute.xlu0 1
    %3345 = vperm.xlu0 %3344, %v3150
    %v3346 = vpop.permute.xlu0 %3345
    %3347 = vset.pattern.permute.xlu0 1
    %3348 = vperm.xlu0 %3347, %v3151
    %v3349 = vpop.permute.xlu0 %3348
    %3350 = vset.pattern.permute.xlu0 1
    %3351 = vperm.xlu0 %3350, %v3152
    %v3352 = vpop.permute.xlu0 %3351
    %vm3353 = vcmp.eq.s32.totalorder %v3307, 1
    %vm3354 = vcmp.eq.s32.totalorder %v3310, 1
    %vm3355 = vcmp.eq.s32.totalorder %v3313, 1
    %vm3356 = vcmp.eq.s32.totalorder %v3316, 1
    %vm3357 = vcmp.eq.s32.totalorder %v3319, 1
    %vm3358 = vcmp.eq.s32.totalorder %v3322, 1
    %vm3359 = vcmp.eq.s32.totalorder %v3325, 1
    %vm3360 = vcmp.eq.s32.totalorder %v3328, 1
    %vm3361 = vcmp.eq.s32.totalorder %v3331, 1
    %vm3362 = vcmp.eq.s32.totalorder %v3334, 1
    %vm3363 = vcmp.eq.s32.totalorder %v3337, 1
    %vm3364 = vcmp.eq.s32.totalorder %v3340, 1
    %vm3365 = vcmp.eq.s32.totalorder %v3343, 1
    %vm3366 = vcmp.eq.s32.totalorder %v3346, 1
    %vm3367 = vcmp.eq.s32.totalorder %v3349, 1
    %vm3368 = vcmp.eq.s32.totalorder %v3352, 1
    %v3369 = vsel %vm3353, %v3089, -1e+30
    %v3370 = vsel %vm3354, %v3090, -1e+30
    %v3371 = vsel %vm3355, %v3091, -1e+30
    %v3372 = vsel %vm3356, %v3092, -1e+30
    %v3373 = vsel %vm3357, %v3093, -1e+30
    %v3374 = vsel %vm3358, %v3094, -1e+30
    %v3375 = vsel %vm3359, %v3095, -1e+30
    %v3376 = vsel %vm3360, %v3096, -1e+30
    %v3377 = vsel %vm3361, %v3097, -1e+30
    %v3378 = vsel %vm3362, %v3098, -1e+30
    %v3379 = vsel %vm3363, %v3099, -1e+30
    %v3380 = vsel %vm3364, %v3100, -1e+30
    %v3381 = vsel %vm3365, %v3101, -1e+30
    %v3382 = vsel %vm3366, %v3102, -1e+30
    %v3383 = vsel %vm3367, %v3103, -1e+30
    %v3384 = vsel %vm3368, %v3104, -1e+30
    %v3385 = vsel %vm560, %v3369, -inf
    %v3386 = vsel %vm560, %v3370, -inf
    %v3387 = vmax.f32 %v3385, %v3386
    %v3388 = vrot.slane %v3387, 4
    %v3389 = vmax.f32 %v3387, %v3388
    %v3390 = vrot.slane %v3389, 2
    %v3391 = vmax.f32 %v3389, %v3390
    %v3392 = vrot.slane %v3391, 1
    %v3393 = vmax.f32 %v3391, %v3392
    %v3394 = vsel %vm560, %v3371, -inf
    %v3395 = vsel %vm560, %v3372, -inf
    %v3396 = vmax.f32 %v3394, %v3395
    %v3397 = vrot.slane %v3396, 4
    %v3398 = vmax.f32 %v3396, %v3397
    %v3399 = vrot.slane %v3398, 2
    %v3400 = vmax.f32 %v3398, %v3399
    %v3401 = vrot.slane %v3400, 1
    %v3402 = vmax.f32 %v3400, %v3401
    %v3403 = vsel %vm560, %v3373, -inf
    %v3404 = vsel %vm560, %v3374, -inf
    %v3405 = vmax.f32 %v3403, %v3404
    %v3406 = vrot.slane %v3405, 4
    %v3407 = vmax.f32 %v3405, %v3406
    %v3408 = vrot.slane %v3407, 2
    %v3409 = vmax.f32 %v3407, %v3408
    %v3410 = vrot.slane %v3409, 1
    %v3411 = vmax.f32 %v3409, %v3410
    %v3412 = vsel %vm560, %v3375, -inf
    %v3413 = vsel %vm560, %v3376, -inf
    %v3414 = vmax.f32 %v3412, %v3413
    %v3415 = vrot.slane %v3414, 4
    %v3416 = vmax.f32 %v3414, %v3415
    %v3417 = vrot.slane %v3416, 2
    %v3418 = vmax.f32 %v3416, %v3417
    %v3419 = vrot.slane %v3418, 1
    %v3420 = vmax.f32 %v3418, %v3419
    %v3421 = vsel %vm560, %v3377, -inf
    %v3422 = vsel %vm560, %v3378, -inf
    %v3423 = vmax.f32 %v3421, %v3422
    %v3424 = vrot.slane %v3423, 4
    %v3425 = vmax.f32 %v3423, %v3424
    %v3426 = vrot.slane %v3425, 2
    %v3427 = vmax.f32 %v3425, %v3426
    %v3428 = vrot.slane %v3427, 1
    %v3429 = vmax.f32 %v3427, %v3428
    %v3430 = vsel %vm560, %v3379, -inf
    %v3431 = vsel %vm560, %v3380, -inf
    %v3432 = vmax.f32 %v3430, %v3431
    %v3433 = vrot.slane %v3432, 4
    %v3434 = vmax.f32 %v3432, %v3433
    %v3435 = vrot.slane %v3434, 2
    %v3436 = vmax.f32 %v3434, %v3435
    %v3437 = vrot.slane %v3436, 1
    %v3438 = vmax.f32 %v3436, %v3437
    %v3439 = vsel %vm560, %v3381, -inf
    %v3440 = vsel %vm560, %v3382, -inf
    %v3441 = vmax.f32 %v3439, %v3440
    %v3442 = vrot.slane %v3441, 4
    %v3443 = vmax.f32 %v3441, %v3442
    %v3444 = vrot.slane %v3443, 2
    %v3445 = vmax.f32 %v3443, %v3444
    %v3446 = vrot.slane %v3445, 1
    %v3447 = vmax.f32 %v3445, %v3446
    %v3448 = vsel %vm560, %v3383, -inf
    %v3449 = vsel %vm560, %v3384, -inf
    %v3450 = vmax.f32 %v3448, %v3449
    %v3451 = vrot.slane %v3450, 4
    %v3452 = vmax.f32 %v3450, %v3451
    %v3453 = vrot.slane %v3452, 2
    %v3454 = vmax.f32 %v3452, %v3453
    %v3455 = vrot.slane %v3454, 1
    %v3456 = vmax.f32 %v3454, %v3455
    %3457 = vset.pattern.permute.xlu0 2
    %3458 = vperm.xlu0 %3457, %v3137
    %v3459 = vpop.permute.xlu0 %3458
    %3460 = vset.pattern.permute.xlu0 2
    %3461 = vperm.xlu0 %3460, %v3138
    %v3462 = vpop.permute.xlu0 %3461
    %3463 = vset.pattern.permute.xlu0 2
    %3464 = vperm.xlu0 %3463, %v3139
    %v3465 = vpop.permute.xlu0 %3464
    %3466 = vset.pattern.permute.xlu0 2
    %3467 = vperm.xlu0 %3466, %v3140
    %v3468 = vpop.permute.xlu0 %3467
    %3469 = vset.pattern.permute.xlu0 2
    %3470 = vperm.xlu0 %3469, %v3141
    %v3471 = vpop.permute.xlu0 %3470
    %3472 = vset.pattern.permute.xlu0 2
    %3473 = vperm.xlu0 %3472, %v3142
    %v3474 = vpop.permute.xlu0 %3473
    %3475 = vset.pattern.permute.xlu0 2
    %3476 = vperm.xlu0 %3475, %v3143
    %v3477 = vpop.permute.xlu0 %3476
    %3478 = vset.pattern.permute.xlu0 2
    %3479 = vperm.xlu0 %3478, %v3144
    %v3480 = vpop.permute.xlu0 %3479
    %3481 = vset.pattern.permute.xlu0 2
    %3482 = vperm.xlu0 %3481, %v3145
    %v3483 = vpop.permute.xlu0 %3482
    %3484 = vset.pattern.permute.xlu0 2
    %3485 = vperm.xlu0 %3484, %v3146
    %v3486 = vpop.permute.xlu0 %3485
    %3487 = vset.pattern.permute.xlu0 2
    %3488 = vperm.xlu0 %3487, %v3147
    %v3489 = vpop.permute.xlu0 %3488
    %3490 = vset.pattern.permute.xlu0 2
    %3491 = vperm.xlu0 %3490, %v3148
    %v3492 = vpop.permute.xlu0 %3491
    %3493 = vset.pattern.permute.xlu0 2
    %3494 = vperm.xlu0 %3493, %v3149
    %v3495 = vpop.permute.xlu0 %3494
    %3496 = vset.pattern.permute.xlu0 2
    %3497 = vperm.xlu0 %3496, %v3150
    %v3498 = vpop.permute.xlu0 %3497
    %3499 = vset.pattern.permute.xlu0 2
    %3500 = vperm.xlu0 %3499, %v3151
    %v3501 = vpop.permute.xlu0 %3500
    %3502 = vset.pattern.permute.xlu0 2
    %3503 = vperm.xlu0 %3502, %v3152
    %v3504 = vpop.permute.xlu0 %3503
    %vm3505 = vcmp.eq.s32.totalorder %v3459, 1
    %vm3506 = vcmp.eq.s32.totalorder %v3462, 1
    %vm3507 = vcmp.eq.s32.totalorder %v3465, 1
    %vm3508 = vcmp.eq.s32.totalorder %v3468, 1
    %vm3509 = vcmp.eq.s32.totalorder %v3471, 1
    %vm3510 = vcmp.eq.s32.totalorder %v3474, 1
    %vm3511 = vcmp.eq.s32.totalorder %v3477, 1
    %vm3512 = vcmp.eq.s32.totalorder %v3480, 1
    %vm3513 = vcmp.eq.s32.totalorder %v3483, 1
    %vm3514 = vcmp.eq.s32.totalorder %v3486, 1
    %vm3515 = vcmp.eq.s32.totalorder %v3489, 1
    %vm3516 = vcmp.eq.s32.totalorder %v3492, 1
    %vm3517 = vcmp.eq.s32.totalorder %v3495, 1
    %vm3518 = vcmp.eq.s32.totalorder %v3498, 1
    %vm3519 = vcmp.eq.s32.totalorder %v3501, 1
    %vm3520 = vcmp.eq.s32.totalorder %v3504, 1
    %v3521 = vsel %vm3505, %v3089, -1e+30
    %v3522 = vsel %vm3506, %v3090, -1e+30
    %v3523 = vsel %vm3507, %v3091, -1e+30
    %v3524 = vsel %vm3508, %v3092, -1e+30
    %v3525 = vsel %vm3509, %v3093, -1e+30
    %v3526 = vsel %vm3510, %v3094, -1e+30
    %v3527 = vsel %vm3511, %v3095, -1e+30
    %v3528 = vsel %vm3512, %v3096, -1e+30
    %v3529 = vsel %vm3513, %v3097, -1e+30
    %v3530 = vsel %vm3514, %v3098, -1e+30
    %v3531 = vsel %vm3515, %v3099, -1e+30
    %v3532 = vsel %vm3516, %v3100, -1e+30
    %v3533 = vsel %vm3517, %v3101, -1e+30
    %v3534 = vsel %vm3518, %v3102, -1e+30
    %v3535 = vsel %vm3519, %v3103, -1e+30
    %v3536 = vsel %vm3520, %v3104, -1e+30
    %v3537 = vsel %vm560, %v3521, -inf
    %v3538 = vsel %vm560, %v3522, -inf
    %v3539 = vmax.f32 %v3537, %v3538
    %v3540 = vrot.slane %v3539, 4
    %v3541 = vmax.f32 %v3539, %v3540
    %v3542 = vrot.slane %v3541, 2
    %v3543 = vmax.f32 %v3541, %v3542
    %v3544 = vrot.slane %v3543, 1
    %v3545 = vmax.f32 %v3543, %v3544
    %v3546 = vsel %vm560, %v3523, -inf
    %v3547 = vsel %vm560, %v3524, -inf
    %v3548 = vmax.f32 %v3546, %v3547
    %v3549 = vrot.slane %v3548, 4
    %v3550 = vmax.f32 %v3548, %v3549
    %v3551 = vrot.slane %v3550, 2
    %v3552 = vmax.f32 %v3550, %v3551
    %v3553 = vrot.slane %v3552, 1
    %v3554 = vmax.f32 %v3552, %v3553
    %v3555 = vsel %vm560, %v3525, -inf
    %v3556 = vsel %vm560, %v3526, -inf
    %v3557 = vmax.f32 %v3555, %v3556
    %v3558 = vrot.slane %v3557, 4
    %v3559 = vmax.f32 %v3557, %v3558
    %v3560 = vrot.slane %v3559, 2
    %v3561 = vmax.f32 %v3559, %v3560
    %v3562 = vrot.slane %v3561, 1
    %v3563 = vmax.f32 %v3561, %v3562
    %v3564 = vsel %vm560, %v3527, -inf
    %v3565 = vsel %vm560, %v3528, -inf
    %v3566 = vmax.f32 %v3564, %v3565
    %v3567 = vrot.slane %v3566, 4
    %v3568 = vmax.f32 %v3566, %v3567
    %v3569 = vrot.slane %v3568, 2
    %v3570 = vmax.f32 %v3568, %v3569
    %v3571 = vrot.slane %v3570, 1
    %v3572 = vmax.f32 %v3570, %v3571
    %v3573 = vsel %vm560, %v3529, -inf
    %v3574 = vsel %vm560, %v3530, -inf
    %v3575 = vmax.f32 %v3573, %v3574
    %v3576 = vrot.slane %v3575, 4
    %v3577 = vmax.f32 %v3575, %v3576
    %v3578 = vrot.slane %v3577, 2
    %v3579 = vmax.f32 %v3577, %v3578
    %v3580 = vrot.slane %v3579, 1
    %v3581 = vmax.f32 %v3579, %v3580
    %v3582 = vsel %vm560, %v3531, -inf
    %v3583 = vsel %vm560, %v3532, -inf
    %v3584 = vmax.f32 %v3582, %v3583
    %v3585 = vrot.slane %v3584, 4
    %v3586 = vmax.f32 %v3584, %v3585
    %v3587 = vrot.slane %v3586, 2
    %v3588 = vmax.f32 %v3586, %v3587
    %v3589 = vrot.slane %v3588, 1
    %v3590 = vmax.f32 %v3588, %v3589
    %v3591 = vsel %vm560, %v3533, -inf
    %v3592 = vsel %vm560, %v3534, -inf
    %v3593 = vmax.f32 %v3591, %v3592
    %v3594 = vrot.slane %v3593, 4
    %v3595 = vmax.f32 %v3593, %v3594
    %v3596 = vrot.slane %v3595, 2
    %v3597 = vmax.f32 %v3595, %v3596
    %v3598 = vrot.slane %v3597, 1
    %v3599 = vmax.f32 %v3597, %v3598
    %v3600 = vsel %vm560, %v3535, -inf
    %v3601 = vsel %vm560, %v3536, -inf
    %v3602 = vmax.f32 %v3600, %v3601
    %v3603 = vrot.slane %v3602, 4
    %v3604 = vmax.f32 %v3602, %v3603
    %v3605 = vrot.slane %v3604, 2
    %v3606 = vmax.f32 %v3604, %v3605
    %v3607 = vrot.slane %v3606, 1
    %v3608 = vmax.f32 %v3606, %v3607
    %vm3617 = vcmask 1041409
    %v3618 = vsel %vm3617, %v3250, %v3241
    %vm3619 = vcmask 1042434
    %v3620 = vsel %vm3619, %v3259, %v3618
    %vm3621 = vcmask 1043459
    %v3622 = vsel %vm3621, %v3268, %v3620
    %vm3623 = vcmask 1044484
    %v3624 = vsel %vm3623, %v3277, %v3622
    %vm3625 = vcmask 1045509
    %v3626 = vsel %vm3625, %v3286, %v3624
    %vm3627 = vcmask 1046534
    %v3628 = vsel %vm3627, %v3295, %v3626
    %vm3629 = vcmask 1047559
    %v3630 = vsel %vm3629, %v3304, %v3628
    %v3640 = vsel %vm3617, %v3402, %v3393
    %v3641 = vsel %vm3619, %v3411, %v3640
    %v3642 = vsel %vm3621, %v3420, %v3641
    %v3643 = vsel %vm3623, %v3429, %v3642
    %v3644 = vsel %vm3625, %v3438, %v3643
    %v3645 = vsel %vm3627, %v3447, %v3644
    %v3646 = vsel %vm3629, %v3456, %v3645
    %3647 = vrot.lane.b32.xlu0 %v3646, 32
    %v3648 = vpop.permute.xlu0 %3647
    %v3658 = vsel %vm3617, %v3554, %v3545
    %v3659 = vsel %vm3619, %v3563, %v3658
    %v3660 = vsel %vm3621, %v3572, %v3659
    %v3661 = vsel %vm3623, %v3581, %v3660
    %v3662 = vsel %vm3625, %v3590, %v3661
    %v3663 = vsel %vm3627, %v3599, %v3662
    %v3664 = vsel %vm3629, %v3608, %v3663
    %3665 = vrot.lane.b32.xlu0 %v3664, 64
    %v3666 = vpop.permute.xlu0 %3665
    %v3668 = vsel %vm560, %v3630, %v3648
    %v3669 = vsel %vm1674, %v3668, %v3666
    %v3670 = vtanh.pop %v3669
    %v3671 = vld [vmem:[%s14] sm:$0x3]
    %vm3672 = vcmask 64512
    %v3674 = vsel %vm3672, %v3671, 0
    %3676 = vmatprep.subr.mxu0 0.0
    %3677 = vmatpush1.msra.mxu0 %v3670
    %3678 = vmatprep.subr.mxu0 0.0
    %3679 = vmatpush1.msra.mxu0 0.0
    %3680 = vmatprep.subr.mxu0 0.0
    %3681 = vmatpush1.msra.mxu0 0.0
    %3682 = vmatprep.subr.mxu0 0.0
    %3683 = vmatpush1.msra.mxu0 0.0
    %3684 = vmatprep.subr.mxu0 0.0
    %3685 = vmatpush1.msra.mxu0 0.0
    %3686 = vmatprep.subr.mxu0 0.0
    %3687 = vmatpush1.msra.mxu0 0.0
    %3688 = vmatprep.subr.mxu0 0.0
    %3689 = vmatpush1.msra.mxu0 0.0
    %3690 = vmatprep.subr.mxu0 0.0
    %3691 = vmatpush1.msra.mxu0 0.0
    %3692 = vmatprep.subr.mxu0 0.0
    %3693 = vmatpush1.msra.mxu0 0.0
    %3694 = vmatprep.subr.mxu0 0.0
    %3695 = vmatpush1.msra.mxu0 0.0
    %3696 = vmatprep.subr.mxu0 0.0
    %3697 = vmatpush1.msra.mxu0 0.0
    %3698 = vmatprep.subr.mxu0 0.0
    %3699 = vmatpush1.msra.mxu0 0.0
    %3700 = vmatprep.subr.mxu0 0.0
    %3701 = vmatpush1.msra.mxu0 0.0
    %3702 = vmatprep.subr.mxu0 0.0
    %3703 = vmatpush1.msra.mxu0 0.0
    %3704 = vmatprep.subr.mxu0 0.0
    %3705 = vmatpush1.msra.mxu0 0.0
    %3706 = vmatprep.subr.mxu0 0.0
    %3707 = vmatpush1.msra.mxu0 0.0
    %3708 = vmatprep.subr.mxu0 0.0
    %3709 = vmatpush1.msra.mxu0 0.0
    %3710 = vmatprep.subr.mxu0 0.0
    %3711 = vmatpush1.msra.mxu0 0.0
    %3712 = vmatprep.subr.mxu0 0.0
    %3713 = vmatpush1.msra.mxu0 0.0
    %3714 = vmatprep.subr.mxu0 0.0
    %3715 = vmatpush1.msra.mxu0 0.0
    %3716 = vmatprep.subr.mxu0 0.0
    %3717 = vmatpush1.msra.mxu0 0.0
    %3718 = vmatprep.subr.mxu0 0.0
    %3719 = vmatpush1.msra.mxu0 0.0
    %3720 = vmatprep.subr.mxu0 0.0
    %3721 = vmatpush1.msra.mxu0 0.0
    %3722 = vmatprep.subr.mxu0 0.0
    %3723 = vmatpush1.msra.mxu0 0.0
    %3724 = vmatprep.subr.mxu0 0.0
    %3725 = vmatpush1.msra.mxu0 0.0
    %3726 = vmatprep.subr.mxu0 0.0
    %3727 = vmatpush1.msra.mxu0 0.0
    %3728 = vmatprep.subr.mxu0 0.0
    %3729 = vmatpush1.msra.mxu0 0.0
    %3730 = vmatprep.subr.mxu0 0.0
    %3731 = vmatpush1.msra.mxu0 0.0
    %3732 = vmatprep.subr.mxu0 0.0
    %3733 = vmatpush1.msra.mxu0 0.0
    %3734 = vmatprep.subr.mxu0 0.0
    %3735 = vmatpush1.msra.mxu0 0.0
    %3736 = vmatprep.subr.mxu0 0.0
    %3737 = vmatpush1.msra.mxu0 0.0
    %3738 = vmatprep.subr.mxu0 0.0
    %3739 = vmatpush1.msra.mxu0 0.0
    %3740 = vmatprep.mubr.f32.mxu0 0.0
    %3741 = vmatmul.mubr.f32.gmra.mrb[0].mxu0 %v3674
    %v3742 = vpop.f32.mrb[0].mxu0
    %v3743 = vadd.f32 0.0, %v3742
    %v3744 = vpop.f32.mrb[0].mxu0
    %3745 = vdwg.mxu0
    %v3746 = vld [vmem:[%s15] sm:$0xff]
    %v3747 = vld [vmem:[%s15 + $0x8] sm:$0xff]
    %v3748 = vld [vmem:[%s15 + $0x10] sm:$0xff]
    %v3749 = vld [vmem:[%s15 + $0x18] sm:$0xff]
    %v3750 = vld [vmem:[%s15 + $0x20] sm:$0xff]
    %v3751 = vld [vmem:[%s15 + $0x28] sm:$0xff]
    %v3752 = vld [vmem:[%s15 + $0x30] sm:$0xff]
    %v3753 = vld [vmem:[%s15 + $0x38] sm:$0xff]
    %v3754 = vld [vmem:[%s15 + $0x40] sm:$0xff]
    %v3755 = vld [vmem:[%s15 + $0x48] sm:$0xff]
    %v3756 = vld [vmem:[%s15 + $0x50] sm:$0xff]
    %v3757 = vld [vmem:[%s15 + $0x58] sm:$0xff]
    %v3758 = vld [vmem:[%s16] sm:$0x1]
    %v3760 = vlaneseq
    %v3761 = vshrl.u32 %v3760, 7
    %v3762 = vsub.s32 0, %v3761
    %v3763 = vrot.slane %v3758, %v3762
    %v3766 = vsel %vm1710, %v3743, 0
    %3768 = vmatprep.subr.mxu0 0.0
    %3769 = vmatpush1.msra.mxu0 %v3746
    %3770 = vmatprep.subr.mxu0 0.0
    %3771 = vmatpush1.msra.mxu0 %v3747
    %3772 = vmatprep.subr.mxu0 0.0
    %3773 = vmatpush1.msra.mxu0 %v3748
    %3774 = vmatprep.subr.mxu0 0.0
    %3775 = vmatpush1.msra.mxu0 %v3749
    %3776 = vmatprep.subr.mxu0 0.0
    %3777 = vmatpush1.msra.mxu0 %v3750
    %3778 = vmatprep.subr.mxu0 0.0
    %3779 = vmatpush1.msra.mxu0 %v3751
    %3780 = vmatprep.subr.mxu0 0.0
    %3781 = vmatpush1.msra.mxu0 %v3752
    %3782 = vmatprep.subr.mxu0 0.0
    %3783 = vmatpush1.msra.mxu0 %v3753
    %3784 = vmatprep.subr.mxu0 0.0
    %3785 = vmatpush1.msra.mxu0 %v3754
    %3786 = vmatprep.subr.mxu0 0.0
    %3787 = vmatpush1.msra.mxu0 %v3755
    %3788 = vmatprep.subr.mxu0 0.0
    %3789 = vmatpush1.msra.mxu0 %v3756
    %3790 = vmatprep.subr.mxu0 0.0
    %3791 = vmatpush1.msra.mxu0 %v3757
    %3792 = vmatprep.subr.mxu0 0.0
    %3793 = vmatpush1.msra.mxu0 0.0
    %3794 = vmatprep.subr.mxu0 0.0
    %3795 = vmatpush1.msra.mxu0 0.0
    %3796 = vmatprep.subr.mxu0 0.0
    %3797 = vmatpush1.msra.mxu0 0.0
    %3798 = vmatprep.subr.mxu0 0.0
    %3799 = vmatpush1.msra.mxu0 0.0
    %3800 = vmatprep.subr.mxu0 0.0
    %3801 = vmatpush1.msra.mxu0 0.0
    %3802 = vmatprep.subr.mxu0 0.0
    %3803 = vmatpush1.msra.mxu0 0.0
    %3804 = vmatprep.subr.mxu0 0.0
    %3805 = vmatpush1.msra.mxu0 0.0
    %3806 = vmatprep.subr.mxu0 0.0
    %3807 = vmatpush1.msra.mxu0 0.0
    %3808 = vmatprep.subr.mxu0 0.0
    %3809 = vmatpush1.msra.mxu0 0.0
    %3810 = vmatprep.subr.mxu0 0.0
    %3811 = vmatpush1.msra.mxu0 0.0
    %3812 = vmatprep.subr.mxu0 0.0
    %3813 = vmatpush1.msra.mxu0 0.0
    %3814 = vmatprep.subr.mxu0 0.0
    %3815 = vmatpush1.msra.mxu0 0.0
    %3816 = vmatprep.subr.mxu0 0.0
    %3817 = vmatpush1.msra.mxu0 0.0
    %3818 = vmatprep.subr.mxu0 0.0
    %3819 = vmatpush1.msra.mxu0 0.0
    %3820 = vmatprep.subr.mxu0 0.0
    %3821 = vmatpush1.msra.mxu0 0.0
    %3822 = vmatprep.subr.mxu0 0.0
    %3823 = vmatpush1.msra.mxu0 0.0
    %3824 = vmatprep.subr.mxu0 0.0
    %3825 = vmatpush1.msra.mxu0 0.0
    %3826 = vmatprep.subr.mxu0 0.0
    %3827 = vmatpush1.msra.mxu0 0.0
    %3828 = vmatprep.subr.mxu0 0.0
    %3829 = vmatpush1.msra.mxu0 0.0
    %3830 = vmatprep.subr.mxu0 0.0
    %3831 = vmatpush1.msra.mxu0 0.0
    %3832 = vmatprep.mubr.f32.mxu0 0.0
    %3833 = vmatmul.mubr.f32.gmra.mrb[0].mxu0 %v3766
    %v3834 = vpop.f32.mrb[0].mxu0
    %v3835 = vadd.f32 %v3763, %v3834
    %v3836 = vpop.f32.mrb[0].mxu0
    %3837 = vdwg.mxu0
    %vm3838 = vcmask 33792
    %3839 = vst.msk [vmem:[#allocation2] sm:$0x3] %vm3838, %v3835
    // Predicated region
    $region70: #{seg_forward.1} parent=1 // pred_check
      _
    $region71: #{seg_forward.1} parent=1 // pred_check_branch
      %3841 = sbr.rel (0) target = $region73
    $region72: #{seg_forward.1} parent=1 // pred_region
      %s3843 = ssub.s32 32, 32
      %3844 = vsyncadd [#allocation3], %s3843
      %s3846 = sshll.u32 [#allocation2], 4
      %s3847 = int_to_ptr.vmem [resolvable:$true] %s3846
      %3849 = dma.vmem_to_hbm [thread:$0]  %s3847, 32, %s17, [#allocation3]
    $region73: #{seg_forward.1} parent=1 // pred_fallthru
      _
    // Predicated region
    $region74: #{seg_forward.1} parent=1 // pred_check
      _
    $region75: #{seg_forward.1} parent=1 // pred_check_branch
      %3851 = sbr.rel (0) target = $region77
    $region76: #{seg_forward.1} parent=1 // pred_region
      %3852 = dma.done [#allocation3], 32
    $region77: #{seg_forward.1} parent=1 // pred_fallthru
      _
    %3853 = vsyncpa [#allocation3], 1

</llo_original>
